<compile_context>
chip_gen: v5e
topology: v5e:2x2
jax: 0.10.0
libtpu: 0.0.40
codegen_flags: <defaults>
</compile_context>

<pallas_src>
import functools

import numpy as np

import jax
import jax.numpy as jnp
from jax.experimental import pallas as pl
from jax.experimental.pallas import tpu as pltpu


# ---------------------------------------------------------------------------
# In-kernel helpers
# ---------------------------------------------------------------------------
def _zero_pad_hw(x4):
    """x4: (B, H, W, C) -> (B, H+2, W+2, C) zero-padded spatially, same dtype."""
    B, H, W, C = x4.shape
    zrow = jnp.zeros((B, 1, W, C), x4.dtype)
    x4 = jnp.concatenate([zrow, x4, zrow], axis=1)
    zcol = jnp.zeros((B, H + 2, 1, C), x4.dtype)
    return jnp.concatenate([zcol, x4, zcol], axis=2)


def _im2col3x3(xp, H, W):
    """xp: (B, H+2, W+2, C) zero-padded -> (B*H*W, 9*C) patch matrix.

    Tap order is (dy, dx) row-major with channels fastest inside each tap,
    matching the weight layout produced by `_w3x3_im2col` (and the centre-tap
    placement of the folded 1x1 conv).
    """
    B, _, _, C = xp.shape
    taps = [xp[:, dy:dy + H, dx:dx + W, :] for dy in range(3) for dx in range(3)]
    return jnp.concatenate(taps, axis=-1).reshape(B * H * W, 9 * C)


# ---------------------------------------------------------------------------
# Fused forward kernel: one grid step processes B batch items, 4 matmuls total.
# ---------------------------------------------------------------------------
def _base_fused_kernel(x_ref, m_ref, w1_ref, wp_ref, w2_ref, sb_ref, o_ref,
                       *, H, W, shp, dim, B):
    f32 = jnp.float32
    bf16 = jnp.bfloat16
    dim2 = dim // 2

    # Packed per-channel BN scale/bias (f32): rows
    #   0/1: combined [p1_conv1-BN | bn1]   (width dim2+dim)
    #   2/3: p_bn1                           (first dim cols valid)
    #   4/5: conv2-BN                        (first dim cols valid)
    sb = sb_ref[...]
    s1, b1 = sb[0:1, :], sb[1:2, :]
    sp, bp = sb[2:3, :dim], sb[3:4, :dim]
    s2, b2 = sb[4:5, :dim], sb[5:6, :dim]

    # ---- layer 1 (fused): [relu(bn(p1_conv1(x))) | bn1(conv1(x))] at H x W ----
    xp = _zero_pad_hw(x_ref[...])                                   # (B, H+2, W+2, dim) bf16
    p = _im2col3x3(xp, H, W)                                        # (B*H*W, 9*dim)
    y = jnp.dot(p, w1_ref[...], preferred_element_type=f32)         # (B*H*W, dim2+dim)
    y = y * s1 + b1
    col = jax.lax.broadcasted_iota(jnp.int32, y.shape, 1)
    y = jnp.where(col < dim2, jnp.maximum(y, 0.0), y)               # ReLU only on p1 branch

    # ---- single bilinear upsample (align_corners=True), block-diag over B ----
    # up commutes with the 1x1 conv + BN (interp rows sum to 1), so applying the
    # interp AFTER bn1(conv1(x)) reproduces bn1(conv1(up(x))).
    u = jnp.dot(m_ref[...], y.astype(bf16), preferred_element_type=f32)  # (B*shp*shp, dim2+dim)
    y1u = u[:, :dim2]                                                # up(pool1 branch)
    bn1 = u[:, dim2:]                                                # bn1(conv1(up(x)))

    # ---- pool1 = p_bn1(p_conv1(y1u)) : 3x3 conv dim/2 -> dim, no relu --------
    p = _im2col3x3(_zero_pad_hw(y1u.astype(bf16).reshape(B, shp, shp, dim2)), shp, shp)
    pool1 = jnp.dot(p, wp_ref[...], preferred_element_type=f32) * sp + bp   # (B*shp*shp, dim)

    # ---- out = relu(bn(conv2(relu(pool1 + bn1)))) ----------------------------
    a = jnp.maximum(pool1 + bn1, 0.0).astype(bf16)
    p = _im2col3x3(_zero_pad_hw(a.reshape(B, shp, shp, dim)), shp, shp)
    out = jnp.dot(p, w2_ref[...], preferred_element_type=f32)
    out = jnp.maximum(out * s2 + b2, 0.0)                            # (B*shp*shp, dim)

    o_ref[...] = out.reshape(B, shp, shp, dim).astype(o_ref.dtype)


# ---------------------------------------------------------------------------
# Parameter / constant preparation
# ---------------------------------------------------------------------------
def fold_bn(gamma, beta, mean, var, eps=1e-5):
    scale = gamma / jnp.sqrt(var + eps)
    bias = beta - mean * scale
    return scale.astype(jnp.float32), bias.astype(jnp.float32)


def _w3x3_im2col(w):
    # torch layout (Cout, Cin, 3, 3) -> (9*Cin, Cout), rows ordered (ky, kx, cin).
    cout, cin = w.shape[0], w.shape[1]
    return jnp.transpose(w, (2, 3, 1, 0)).reshape(9 * cin, cout)


def _bilinear_matrix_np(out_size, in_size):
    # align_corners=True mapping: src = i * (in-1) / (out-1)
    if out_size > 1:
        src = np.arange(out_size, dtype=np.float64) * (in_size - 1) / (out_size - 1)
    else:
        src = np.zeros((out_size,), np.float64)
    i0 = np.clip(np.floor(src).astype(np.int64), 0, in_size - 1)
    i1 = np.minimum(i0 + 1, in_size - 1)
    frac = src - i0
    m = np.zeros((out_size, in_size), np.float64)
    rows = np.arange(out_size)
    np.add.at(m, (rows, i0), 1.0 - frac)
    np.add.at(m, (rows, i1), frac)
    return m


@functools.lru_cache(maxsize=None)
def _interp_matrix_np(shp, H, W, B):
    """Block-diagonal kron(I_B, bilinear) matrix, (B*shp*shp, B*H*W), numpy f32.

    Caching the NUMPY array (not a device array) avoids pinning a constant to the
    first device it was created on.
    """
    m = np.kron(_bilinear_matrix_np(shp, H), _bilinear_matrix_np(shp, W))
    return np.kron(np.eye(B), m).astype(np.float32)


def init_params(key, dim):
    dim2 = dim // 2
    keys = jax.random.split(key, 8)

    def conv_w(k, cout, cin, ksz):
        fan = cin * ksz * ksz
        return jax.random.normal(k, (cout, cin, ksz, ksz), jnp.float32) * (fan ** -0.5)

    def bn_p(k, c):
        k1, k2, k3, k4 = jax.random.split(k, 4)
        gamma = 1.0 + 0.1 * jax.random.normal(k1, (c,), jnp.float32)
        beta = 0.1 * jax.random.normal(k2, (c,), jnp.float32)
        mean = 0.1 * jax.random.normal(k3, (c,), jnp.float32)
        var = jax.random.uniform(k4, (c,), jnp.float32, minval=0.5, maxval=1.5)
        return gamma, beta, mean, var

    return {
        "p1_conv1_w": conv_w(keys[0], dim2, dim, 3),
        "p1_conv1_bn": bn_p(keys[1], dim2),
        "p_conv1_w": conv_w(keys[2], dim, dim2, 3),
        "p_bn1": bn_p(keys[3], dim),
        "conv1_w": conv_w(keys[4], dim, dim, 1),
        "bn1": bn_p(keys[5], dim),
        "conv2_w": conv_w(keys[6], dim, dim, 3),
        "conv2_bn": bn_p(keys[7], dim),
    }


# ---------------------------------------------------------------------------
# Public forward (NCHW in / NCHW out, matching the PyTorch module)
# ---------------------------------------------------------------------------
def base_forward(x_nchw, params, *, shp, block_batch=None):
    N, dim, H, W = x_nchw.shape
    dim2 = dim // 2
    wide = dim2 + dim

    # Batch items per grid step.  Default: whole batch in one step (best on the
    # single-TensorCore v5e/v6e; see TODO above for v7x dual-core splitting).
    B = N if block_batch is None else block_batch
    assert N % B == 0, (N, B)

    x = jnp.transpose(x_nchw, (0, 2, 3, 1)).astype(jnp.bfloat16)     # NHWC bf16, unpadded

    m = jnp.asarray(_interp_matrix_np(shp, H, W, B), dtype=jnp.bfloat16)  # (B*shp*shp, B*H*W)

    # Fold BN running stats into per-channel scale/bias.
    s_p1, b_p1 = fold_bn(*params["p1_conv1_bn"])      # (dim2,)
    s_c1, b_c1 = fold_bn(*params["bn1"])              # (dim,)
    s_p, b_p = fold_bn(*params["p_bn1"])              # (dim,)
    s_c2, b_c2 = fold_bn(*params["conv2_bn"])         # (dim,)

    # Combined first-layer weight: p1_conv1 (3x3 im2col) in cols [0,dim2);
    # conv1 (1x1) placed only on the centre-tap rows [4*dim,5*dim) of cols [dim2,wide).
    w_p1 = _w3x3_im2col(params["p1_conv1_w"])                        # (9*dim, dim2)
    w_c1 = jnp.transpose(params["conv1_w"][:, :, 0, 0], (1, 0))      # (dim, dim)
    w_c1_blk = jnp.pad(w_c1, ((4 * dim, 4 * dim), (0, 0)))           # (9*dim, dim)
    w_comb = jnp.concatenate([w_p1, w_c1_blk], axis=1).astype(jnp.bfloat16)   # (9*dim, wide)

    w_p = _w3x3_im2col(params["p_conv1_w"]).astype(jnp.bfloat16)     # (9*dim2, dim)
    w_c2 = _w3x3_im2col(params["conv2_w"]).astype(jnp.bfloat16)      # (9*dim,  dim)

    def padw(v):
        return jnp.pad(v, (0, wide - v.shape[0]))

    sb = jnp.stack([jnp.concatenate([s_p1, s_c1]),
                    jnp.concatenate([b_p1, b_c1]),
                    padw(s_p), padw(b_p),
                    padw(s_c2), padw(b_c2)]).astype(jnp.float32)     # (6, wide)

    kernel = functools.partial(_base_fused_kernel, H=H, W=W, shp=shp, dim=dim, B=B)

    def full(shape):
        return pl.BlockSpec(shape, lambda n, _s=shape: (0,) * len(_s))

    out = pl.pallas_call(
        kernel,
        out_shape=jax.ShapeDtypeStruct((N, shp, shp, dim), x_nchw.dtype),
        grid=(N // B,),
        in_specs=[
            pl.BlockSpec((B, H, W, dim), lambda n: (n, 0, 0, 0)),    # x (NHWC, unpadded)
            full((B * shp * shp, B * H * W)),                        # block-diag interp matrix
            full((9 * dim, wide)),                                   # fused p1_conv1 | conv1
            full((9 * dim2, dim)),                                   # p_conv1
            full((9 * dim, dim)),                                    # conv2
            full((6, wide)),                                         # packed BN scale/bias
        ],
        out_specs=pl.BlockSpec((B, shp, shp, dim), lambda n: (n, 0, 0, 0)),
        compiler_params=pltpu.CompilerParams(
            dimension_semantics=("parallel",)),
    )(x, m, w_comb, w_p, w_c2, sb)

    return jnp.transpose(out, (0, 3, 1, 2))                          # back to NCHW


if __name__ == "__main__":
    # Small shapes consistent with Base(dim, shp): x is (N, dim, H, W).
    N, dim, H, W, shp = 2, 32, 8, 8, 16
    key = jax.random.PRNGKey(0)
    kx, kp = jax.random.split(key)
    x = jax.random.normal(kx, (N, dim, H, W), jnp.float32)
    params = init_params(kp, dim)

    fwd = jax.jit(functools.partial(base_forward, shp=shp))
    out = fwd(x, params)
    out = jax.block_until_ready(out)
    assert out.shape == (N, dim, shp, shp), out.shape
    assert jnp.all(jnp.isfinite(out))
    print("KERNEL_OK")
</pallas_src>

<mosaic_0001>
module attributes {stable_mosaic.version = 11 : i64} {
  func.func @_base_fused_kernel(%arg0: i32, %arg1: memref<2x8x8x32xbf16, #tpu.memory_space<vmem>>, %arg2: memref<512x128xbf16, #tpu.memory_space<vmem>>, %arg3: memref<288x48xbf16, #tpu.memory_space<vmem>>, %arg4: memref<144x32xbf16, #tpu.memory_space<vmem>>, %arg5: memref<288x32xbf16, #tpu.memory_space<vmem>>, %arg6: memref<6x48xf32, #tpu.memory_space<vmem>>, %arg7: memref<2x16x16x32xf32, #tpu.memory_space<vmem>>) attributes {dimension_semantics = [#tpu.dimension_semantics<parallel>], iteration_bounds = array<i64: 1>, scalar_prefetch = 0 : i64, scratch_operands = 0 : i64, tpu.core_type = #tpu.core_type<tc>, window_params = [{transform_indices = @transform_0, window_bounds = array<i64: 2, 8, 8, 32>}, {pipeline_mode = #tpu.pipeline_mode<synchronous>, transform_indices = @transform_1, window_bounds = array<i64: 512, 128>}, {pipeline_mode = #tpu.pipeline_mode<synchronous>, transform_indices = @transform_2, window_bounds = array<i64: 288, 48>}, {pipeline_mode = #tpu.pipeline_mode<synchronous>, transform_indices = @transform_3, window_bounds = array<i64: 144, 32>}, {pipeline_mode = #tpu.pipeline_mode<synchronous>, transform_indices = @transform_4, window_bounds = array<i64: 288, 32>}, {pipeline_mode = #tpu.pipeline_mode<synchronous>, transform_indices = @transform_5, window_bounds = array<i64: 6, 48>}, {transform_indices = @transform_6, window_bounds = array<i64: 2, 16, 16, 32>}]} {
    %c0 = arith.constant 0 : index
    %c0_0 = arith.constant 0 : index
    %0 = vector.load %arg6[%c0, %c0_0] : memref<6x48xf32, #tpu.memory_space<vmem>>, vector<6x48xf32>
    %1 = vector.extract_strided_slice %0 {offsets = [0, 0], sizes = [1, 48], strides = [1, 1]} : vector<6x48xf32> to vector<1x48xf32>
    %2 = vector.extract_strided_slice %0 {offsets = [1, 0], sizes = [1, 48], strides = [1, 1]} : vector<6x48xf32> to vector<1x48xf32>
    %3 = vector.extract_strided_slice %0 {offsets = [2, 0], sizes = [1, 32], strides = [1, 1]} : vector<6x48xf32> to vector<1x32xf32>
    %4 = vector.extract_strided_slice %0 {offsets = [3, 0], sizes = [1, 32], strides = [1, 1]} : vector<6x48xf32> to vector<1x32xf32>
    %5 = vector.extract_strided_slice %0 {offsets = [4, 0], sizes = [1, 32], strides = [1, 1]} : vector<6x48xf32> to vector<1x32xf32>
    %6 = vector.extract_strided_slice %0 {offsets = [5, 0], sizes = [1, 32], strides = [1, 1]} : vector<6x48xf32> to vector<1x32xf32>
    %c0_1 = arith.constant 0 : index
    %c0_2 = arith.constant 0 : index
    %c0_3 = arith.constant 0 : index
    %c0_4 = arith.constant 0 : index
    %7 = vector.load %arg1[%c0_1, %c0_2, %c0_3, %c0_4] : memref<2x8x8x32xbf16, #tpu.memory_space<vmem>>, vector<2x8x8x32xbf16>
    %cst = arith.constant 0.000000e+00 : bf16
    %8 = vector.broadcast %cst : bf16 to vector<2x1x8x32xbf16>
    %9 = tpu.concatenate %8, %7, %8 in 1 : vector<2x1x8x32xbf16>, vector<2x8x8x32xbf16>, vector<2x1x8x32xbf16> -> vector<2x10x8x32xbf16>
    %cst_5 = arith.constant 0.000000e+00 : bf16
    %10 = vector.broadcast %cst_5 : bf16 to vector<2x10x1x32xbf16>
    %11 = tpu.concatenate %10, %9, %10 in 2 : vector<2x10x1x32xbf16>, vector<2x10x8x32xbf16>, vector<2x10x1x32xbf16> -> vector<2x10x10x32xbf16>
    %12 = vector.extract_strided_slice %11 {offsets = [0, 0, 0, 0], sizes = [2, 8, 8, 32], strides = [1, 1, 1, 1]} : vector<2x10x10x32xbf16> to vector<2x8x8x32xbf16>
    %13 = vector.extract_strided_slice %11 {offsets = [0, 0, 1, 0], sizes = [2, 8, 8, 32], strides = [1, 1, 1, 1]} : vector<2x10x10x32xbf16> to vector<2x8x8x32xbf16>
    %14 = vector.extract_strided_slice %11 {offsets = [0, 0, 2, 0], sizes = [2, 8, 8, 32], strides = [1, 1, 1, 1]} : vector<2x10x10x32xbf16> to vector<2x8x8x32xbf16>
    %15 = vector.extract_strided_slice %11 {offsets = [0, 1, 0, 0], sizes = [2, 8, 8, 32], strides = [1, 1, 1, 1]} : vector<2x10x10x32xbf16> to vector<2x8x8x32xbf16>
    %16 = vector.extract_strided_slice %11 {offsets = [0, 1, 1, 0], sizes = [2, 8, 8, 32], strides = [1, 1, 1, 1]} : vector<2x10x10x32xbf16> to vector<2x8x8x32xbf16>
    %17 = vector.extract_strided_slice %11 {offsets = [0, 1, 2, 0], sizes = [2, 8, 8, 32], strides = [1, 1, 1, 1]} : vector<2x10x10x32xbf16> to vector<2x8x8x32xbf16>
    %18 = vector.extract_strided_slice %11 {offsets = [0, 2, 0, 0], sizes = [2, 8, 8, 32], strides = [1, 1, 1, 1]} : vector<2x10x10x32xbf16> to vector<2x8x8x32xbf16>
    %19 = vector.extract_strided_slice %11 {offsets = [0, 2, 1, 0], sizes = [2, 8, 8, 32], strides = [1, 1, 1, 1]} : vector<2x10x10x32xbf16> to vector<2x8x8x32xbf16>
    %20 = vector.extract_strided_slice %11 {offsets = [0, 2, 2, 0], sizes = [2, 8, 8, 32], strides = [1, 1, 1, 1]} : vector<2x10x10x32xbf16> to vector<2x8x8x32xbf16>
    %21 = tpu.concatenate %12, %13, %14, %15, %16, %17, %18, %19, %20 in 3 : vector<2x8x8x32xbf16>, vector<2x8x8x32xbf16>, vector<2x8x8x32xbf16>, vector<2x8x8x32xbf16>, vector<2x8x8x32xbf16>, vector<2x8x8x32xbf16>, vector<2x8x8x32xbf16>, vector<2x8x8x32xbf16>, vector<2x8x8x32xbf16> -> vector<2x8x8x288xbf16>
    %22 = vector.shape_cast %21 : vector<2x8x8x288xbf16> to vector<128x288xbf16>
    %c0_6 = arith.constant 0 : index
    %c0_7 = arith.constant 0 : index
    %23 = vector.load %arg3[%c0_6, %c0_7] : memref<288x48xbf16, #tpu.memory_space<vmem>>, vector<288x48xbf16>
    %cst_8 = arith.constant dense<0.000000e+00> : vector<128x48xf32>
    %24 = tpu.matmul %22, %23, %cst_8 {dimension_numbers = #tpu.dot_dimension_numbers<[1], [0], [0], [1], [0, 0, 1, 1], [], []>} : vector<128x288xbf16>, vector<288x48xbf16>, vector<128x48xf32> -> vector<128x48xf32>
    %25 = vector.broadcast %1 : vector<1x48xf32> to vector<128x48xf32>
    %26 = arith.mulf %24, %25 : vector<128x48xf32>
    %27 = vector.broadcast %2 : vector<1x48xf32> to vector<128x48xf32>
    %28 = arith.addf %26, %27 : vector<128x48xf32>
    %29 = tpu.iota {dimensions = array<i32: 1>} : vector<128x48xi32>
    %c16_i32 = arith.constant 16 : i32
    %30 = vector.broadcast %c16_i32 : i32 to vector<128x48xi32>
    %31 = arith.cmpi slt, %29, %30 : vector<128x48xi32>
    %cst_9 = arith.constant 0.000000e+00 : f32
    %32 = vector.broadcast %cst_9 : f32 to vector<128x48xf32>
    %33 = arith.maximumf %28, %32 : vector<128x48xf32>
    %34 = arith.select %31, %33, %28 : vector<128x48xi1>, vector<128x48xf32>
    %c0_10 = arith.constant 0 : index
    %c0_11 = arith.constant 0 : index
    %35 = vector.load %arg2[%c0_10, %c0_11] : memref<512x128xbf16, #tpu.memory_space<vmem>>, vector<512x128xbf16>
    %36 = arith.truncf %34 : vector<128x48xf32> to vector<128x48xbf16>
    %cst_12 = arith.constant dense<0.000000e+00> : vector<512x48xf32>
    %37 = tpu.matmul %35, %36, %cst_12 {dimension_numbers = #tpu.dot_dimension_numbers<[1], [0], [0], [1], [0, 0, 1, 1], [], []>} : vector<512x128xbf16>, vector<128x48xbf16>, vector<512x48xf32> -> vector<512x48xf32>
    %38 = vector.extract_strided_slice %37 {offsets = [0, 0], sizes = [512, 16], strides = [1, 1]} : vector<512x48xf32> to vector<512x16xf32>
    %39 = vector.extract_strided_slice %37 {offsets = [0, 16], sizes = [512, 32], strides = [1, 1]} : vector<512x48xf32> to vector<512x32xf32>
    %40 = arith.truncf %38 : vector<512x16xf32> to vector<512x16xbf16>
    %41 = vector.shape_cast %40 : vector<512x16xbf16> to vector<2x16x16x16xbf16>
    %cst_13 = arith.constant 0.000000e+00 : bf16
    %42 = vector.broadcast %cst_13 : bf16 to vector<2x1x16x16xbf16>
    %43 = tpu.concatenate %42, %41, %42 in 1 : vector<2x1x16x16xbf16>, vector<2x16x16x16xbf16>, vector<2x1x16x16xbf16> -> vector<2x18x16x16xbf16>
    %cst_14 = arith.constant 0.000000e+00 : bf16
    %44 = vector.broadcast %cst_14 : bf16 to vector<2x18x1x16xbf16>
    %45 = tpu.concatenate %44, %43, %44 in 2 : vector<2x18x1x16xbf16>, vector<2x18x16x16xbf16>, vector<2x18x1x16xbf16> -> vector<2x18x18x16xbf16>
    %46 = vector.extract_strided_slice %45 {offsets = [0, 0, 0, 0], sizes = [2, 16, 16, 16], strides = [1, 1, 1, 1]} : vector<2x18x18x16xbf16> to vector<2x16x16x16xbf16>
    %47 = vector.extract_strided_slice %45 {offsets = [0, 0, 1, 0], sizes = [2, 16, 16, 16], strides = [1, 1, 1, 1]} : vector<2x18x18x16xbf16> to vector<2x16x16x16xbf16>
    %48 = vector.extract_strided_slice %45 {offsets = [0, 0, 2, 0], sizes = [2, 16, 16, 16], strides = [1, 1, 1, 1]} : vector<2x18x18x16xbf16> to vector<2x16x16x16xbf16>
    %49 = vector.extract_strided_slice %45 {offsets = [0, 1, 0, 0], sizes = [2, 16, 16, 16], strides = [1, 1, 1, 1]} : vector<2x18x18x16xbf16> to vector<2x16x16x16xbf16>
    %50 = vector.extract_strided_slice %45 {offsets = [0, 1, 1, 0], sizes = [2, 16, 16, 16], strides = [1, 1, 1, 1]} : vector<2x18x18x16xbf16> to vector<2x16x16x16xbf16>
    %51 = vector.extract_strided_slice %45 {offsets = [0, 1, 2, 0], sizes = [2, 16, 16, 16], strides = [1, 1, 1, 1]} : vector<2x18x18x16xbf16> to vector<2x16x16x16xbf16>
    %52 = vector.extract_strided_slice %45 {offsets = [0, 2, 0, 0], sizes = [2, 16, 16, 16], strides = [1, 1, 1, 1]} : vector<2x18x18x16xbf16> to vector<2x16x16x16xbf16>
    %53 = vector.extract_strided_slice %45 {offsets = [0, 2, 1, 0], sizes = [2, 16, 16, 16], strides = [1, 1, 1, 1]} : vector<2x18x18x16xbf16> to vector<2x16x16x16xbf16>
    %54 = vector.extract_strided_slice %45 {offsets = [0, 2, 2, 0], sizes = [2, 16, 16, 16], strides = [1, 1, 1, 1]} : vector<2x18x18x16xbf16> to vector<2x16x16x16xbf16>
    %55 = tpu.concatenate %46, %47, %48, %49, %50, %51, %52, %53, %54 in 3 : vector<2x16x16x16xbf16>, vector<2x16x16x16xbf16>, vector<2x16x16x16xbf16>, vector<2x16x16x16xbf16>, vector<2x16x16x16xbf16>, vector<2x16x16x16xbf16>, vector<2x16x16x16xbf16>, vector<2x16x16x16xbf16>, vector<2x16x16x16xbf16> -> vector<2x16x16x144xbf16>
    %56 = vector.shape_cast %55 : vector<2x16x16x144xbf16> to vector<512x144xbf16>
    %c0_15 = arith.constant 0 : index
    %c0_16 = arith.constant 0 : index
    %57 = vector.load %arg4[%c0_15, %c0_16] : memref<144x32xbf16, #tpu.memory_space<vmem>>, vector<144x32xbf16>
    %cst_17 = arith.constant dense<0.000000e+00> : vector<512x32xf32>
    %58 = tpu.matmul %56, %57, %cst_17 {dimension_numbers = #tpu.dot_dimension_numbers<[1], [0], [0], [1], [0, 0, 1, 1], [], []>} : vector<512x144xbf16>, vector<144x32xbf16>, vector<512x32xf32> -> vector<512x32xf32>
    %59 = vector.broadcast %3 : vector<1x32xf32> to vector<512x32xf32>
    %60 = arith.mulf %58, %59 : vector<512x32xf32>
    %61 = vector.broadcast %4 : vector<1x32xf32> to vector<512x32xf32>
    %62 = arith.addf %60, %61 : vector<512x32xf32>
    %63 = arith.addf %62, %39 : vector<512x32xf32>
    %cst_18 = arith.constant 0.000000e+00 : f32
    %64 = vector.broadcast %cst_18 : f32 to vector<512x32xf32>
    %65 = arith.maximumf %63, %64 : vector<512x32xf32>
    %66 = arith.truncf %65 : vector<512x32xf32> to vector<512x32xbf16>
    %67 = vector.shape_cast %66 : vector<512x32xbf16> to vector<2x16x16x32xbf16>
    %cst_19 = arith.constant 0.000000e+00 : bf16
    %68 = vector.broadcast %cst_19 : bf16 to vector<2x1x16x32xbf16>
    %69 = tpu.concatenate %68, %67, %68 in 1 : vector<2x1x16x32xbf16>, vector<2x16x16x32xbf16>, vector<2x1x16x32xbf16> -> vector<2x18x16x32xbf16>
    %cst_20 = arith.constant 0.000000e+00 : bf16
    %70 = vector.broadcast %cst_20 : bf16 to vector<2x18x1x32xbf16>
    %71 = tpu.concatenate %70, %69, %70 in 2 : vector<2x18x1x32xbf16>, vector<2x18x16x32xbf16>, vector<2x18x1x32xbf16> -> vector<2x18x18x32xbf16>
    %72 = vector.extract_strided_slice %71 {offsets = [0, 0, 0, 0], sizes = [2, 16, 16, 32], strides = [1, 1, 1, 1]} : vector<2x18x18x32xbf16> to vector<2x16x16x32xbf16>
    %73 = vector.extract_strided_slice %71 {offsets = [0, 0, 1, 0], sizes = [2, 16, 16, 32], strides = [1, 1, 1, 1]} : vector<2x18x18x32xbf16> to vector<2x16x16x32xbf16>
    %74 = vector.extract_strided_slice %71 {offsets = [0, 0, 2, 0], sizes = [2, 16, 16, 32], strides = [1, 1, 1, 1]} : vector<2x18x18x32xbf16> to vector<2x16x16x32xbf16>
    %75 = vector.extract_strided_slice %71 {offsets = [0, 1, 0, 0], sizes = [2, 16, 16, 32], strides = [1, 1, 1, 1]} : vector<2x18x18x32xbf16> to vector<2x16x16x32xbf16>
    %76 = vector.extract_strided_slice %71 {offsets = [0, 1, 1, 0], sizes = [2, 16, 16, 32], strides = [1, 1, 1, 1]} : vector<2x18x18x32xbf16> to vector<2x16x16x32xbf16>
    %77 = vector.extract_strided_slice %71 {offsets = [0, 1, 2, 0], sizes = [2, 16, 16, 32], strides = [1, 1, 1, 1]} : vector<2x18x18x32xbf16> to vector<2x16x16x32xbf16>
    %78 = vector.extract_strided_slice %71 {offsets = [0, 2, 0, 0], sizes = [2, 16, 16, 32], strides = [1, 1, 1, 1]} : vector<2x18x18x32xbf16> to vector<2x16x16x32xbf16>
    %79 = vector.extract_strided_slice %71 {offsets = [0, 2, 1, 0], sizes = [2, 16, 16, 32], strides = [1, 1, 1, 1]} : vector<2x18x18x32xbf16> to vector<2x16x16x32xbf16>
    %80 = vector.extract_strided_slice %71 {offsets = [0, 2, 2, 0], sizes = [2, 16, 16, 32], strides = [1, 1, 1, 1]} : vector<2x18x18x32xbf16> to vector<2x16x16x32xbf16>
    %81 = tpu.concatenate %72, %73, %74, %75, %76, %77, %78, %79, %80 in 3 : vector<2x16x16x32xbf16>, vector<2x16x16x32xbf16>, vector<2x16x16x32xbf16>, vector<2x16x16x32xbf16>, vector<2x16x16x32xbf16>, vector<2x16x16x32xbf16>, vector<2x16x16x32xbf16>, vector<2x16x16x32xbf16>, vector<2x16x16x32xbf16> -> vector<2x16x16x288xbf16>
    %82 = vector.shape_cast %81 : vector<2x16x16x288xbf16> to vector<512x288xbf16>
    %c0_21 = arith.constant 0 : index
    %c0_22 = arith.constant 0 : index
    %83 = vector.load %arg5[%c0_21, %c0_22] : memref<288x32xbf16, #tpu.memory_space<vmem>>, vector<288x32xbf16>
    %cst_23 = arith.constant dense<0.000000e+00> : vector<512x32xf32>
    %84 = tpu.matmul %82, %83, %cst_23 {dimension_numbers = #tpu.dot_dimension_numbers<[1], [0], [0], [1], [0, 0, 1, 1], [], []>} : vector<512x288xbf16>, vector<288x32xbf16>, vector<512x32xf32> -> vector<512x32xf32>
    %85 = vector.broadcast %5 : vector<1x32xf32> to vector<512x32xf32>
    %86 = arith.mulf %84, %85 : vector<512x32xf32>
    %87 = vector.broadcast %6 : vector<1x32xf32> to vector<512x32xf32>
    %88 = arith.addf %86, %87 : vector<512x32xf32>
    %cst_24 = arith.constant 0.000000e+00 : f32
    %89 = vector.broadcast %cst_24 : f32 to vector<512x32xf32>
    %90 = arith.maximumf %88, %89 : vector<512x32xf32>
    %91 = vector.shape_cast %90 : vector<512x32xf32> to vector<2x16x16x32xf32>
    %c0_25 = arith.constant 0 : index
    %c0_26 = arith.constant 0 : index
    %c0_27 = arith.constant 0 : index
    %c0_28 = arith.constant 0 : index
    %92 = vector.load %arg7[%c0_25, %c0_26, %c0_27, %c0_28] : memref<2x16x16x32xf32, #tpu.memory_space<vmem>>, vector<2x16x16x32xf32>
    tpu.vector_store %arg7[%c0_25, %c0_26, %c0_27, %c0_28], %91 {strides = array<i32>} : memref<2x16x16x32xf32, #tpu.memory_space<vmem>>, vector<2x16x16x32xf32>,
    return
  }
  func.func @transform_0(%arg0: i32) -> (i32, i32, i32, i32) {
    %c0_i32 = arith.constant 0 : i32
    %c0_i32_0 = arith.constant 0 : i32
    %c0_i32_1 = arith.constant 0 : i32
    %c0_i32_2 = arith.constant 0 : i32
    return %arg0, %c0_i32, %c0_i32_0, %c0_i32_1 : i32, i32, i32, i32
  }
  func.func @transform_1(%arg0: i32) -> (i32, i32) {
    %c0_i32 = arith.constant 0 : i32
    %c0_i32_0 = arith.constant 0 : i32
    %c0_i32_1 = arith.constant 0 : i32
    return %c0_i32, %c0_i32_0 : i32, i32
  }
  func.func @transform_2(%arg0: i32) -> (i32, i32) {
    %c0_i32 = arith.constant 0 : i32
    %c0_i32_0 = arith.constant 0 : i32
    %c0_i32_1 = arith.constant 0 : i32
    return %c0_i32, %c0_i32_0 : i32, i32
  }
  func.func @transform_3(%arg0: i32) -> (i32, i32) {
    %c0_i32 = arith.constant 0 : i32
    %c0_i32_0 = arith.constant 0 : i32
    %c0_i32_1 = arith.constant 0 : i32
    return %c0_i32, %c0_i32_0 : i32, i32
  }
  func.func @transform_4(%arg0: i32) -> (i32, i32) {
    %c0_i32 = arith.constant 0 : i32
    %c0_i32_0 = arith.constant 0 : i32
    %c0_i32_1 = arith.constant 0 : i32
    return %c0_i32, %c0_i32_0 : i32, i32
  }
  func.func @transform_5(%arg0: i32) -> (i32, i32) {
    %c0_i32 = arith.constant 0 : i32
    %c0_i32_0 = arith.constant 0 : i32
    %c0_i32_1 = arith.constant 0 : i32
    return %c0_i32, %c0_i32_0 : i32, i32
  }
  func.func @transform_6(%arg0: i32) -> (i32, i32, i32, i32) {
    %c0_i32 = arith.constant 0 : i32
    %c0_i32_0 = arith.constant 0 : i32
    %c0_i32_1 = arith.constant 0 : i32
    %c0_i32_2 = arith.constant 0 : i32
    return %arg0, %c0_i32, %c0_i32_0, %c0_i32_1 : i32, i32, i32, i32
  }
}

</mosaic_0001>

<llo_original>
// kernel: base_forward.1
$region0: #{base_forward.1}
  #allocation0 [shape = 'u32[]', space=smem, size = 0x4, offset = 0x4, fixed_abs, tag = 'smem constant byte address 0x4 - core index']
  #allocation1 [shape = 'u32[72,128]{1,0:T(1,128)}', space=vmem, size = 0x9000, scoped, tag = 'internal scratch']
  %s0 = inlined_call_operand.vmem [shape: bf16[2,8,8,32], index: 0, kind: input, shape index: {}]
  %s1 = inlined_call_operand.vmem [shape: bf16[512,128], index: 1, kind: input, shape index: {}]
  %s2 = inlined_call_operand.vmem [shape: bf16[288,48], index: 2, kind: input, shape index: {}]
  %s3 = inlined_call_operand.vmem [shape: bf16[144,32], index: 3, kind: input, shape index: {}]
  %s4 = inlined_call_operand.vmem [shape: bf16[288,32], index: 4, kind: input, shape index: {}]
  %s5 = inlined_call_operand.vmem [shape: f32[6,48], index: 5, kind: input, shape index: {}]
  %s6 = inlined_call_operand.hbm [shape: f32[2,16,16,32], index: 6, kind: output, shape index: {}]
  %s7 = sld [smem:[#allocation0]]
  $region34: #{base_forward.1} parent=0
    _
  %s9 = ssub.s32 1, %s7
  %s10 = scalar_select 0, %s9, %s7
  $region1: #{base_forward.1} parent=0
    #allocation2 [shape = 'u8[262144]{0}', space=vmem, size = 0x40000, scoped, tag = 'output window, operand 0, single buffered']
    #allocation3 [shape = 's32[1]{0}', space=sflag, size = 0x4, scoped, tag = 'scoped memory for base_forward.1']
    %11 = vsyncpa [#allocation3], 0
    // Predicated region
    $region2: #{base_forward.1} parent=1 // pred_check
      _
    $region3: #{base_forward.1} parent=1 // pred_check_branch
      %13 = sbr.rel (0) target = $region5
    $region4: #{base_forward.1} parent=1 // pred_region
      _
    $region5: #{base_forward.1} parent=1 // pred_fallthru
      _
    // Predicated region
    $region6: #{base_forward.1} parent=1 // pred_check
      _
    $region7: #{base_forward.1} parent=1 // pred_check_branch
      %15 = sbr.rel (0) target = $region9
    $region8: #{base_forward.1} parent=1 // pred_region
      _
    $region9: #{base_forward.1} parent=1 // pred_fallthru
      _
    // Predicated region
    $region10: #{base_forward.1} parent=1 // pred_check
      _
    $region11: #{base_forward.1} parent=1 // pred_check_branch
      %17 = sbr.rel (0) target = $region13
    $region12: #{base_forward.1} parent=1 // pred_region
      _
    $region13: #{base_forward.1} parent=1 // pred_fallthru
      _
    // Predicated region
    $region14: #{base_forward.1} parent=1 // pred_check
      _
    $region15: #{base_forward.1} parent=1 // pred_check_branch
      %19 = sbr.rel (0) target = $region17
    $region16: #{base_forward.1} parent=1 // pred_region
      _
    $region17: #{base_forward.1} parent=1 // pred_fallthru
      _
    // Predicated region
    $region18: #{base_forward.1} parent=1 // pred_check
      _
    $region19: #{base_forward.1} parent=1 // pred_check_branch
      %21 = sbr.rel (0) target = $region21
    $region20: #{base_forward.1} parent=1 // pred_region
      _
    $region21: #{base_forward.1} parent=1 // pred_fallthru
      _
    // Predicated region
    $region22: #{base_forward.1} parent=1 // pred_check
      _
    $region23: #{base_forward.1} parent=1 // pred_check_branch
      %23 = sbr.rel (0) target = $region25
    $region24: #{base_forward.1} parent=1 // pred_region
      _
    $region25: #{base_forward.1} parent=1 // pred_fallthru
      _
    %v25 = vld [vmem:[%s5] sm:$0x3f]
    %v26 = vld [vmem:[%s0] sm:$0xf]
    %v27 = vld [vmem:[%s0 + $0x4] sm:$0xf]
    %v28 = vld [vmem:[%s0 + $0x8] sm:$0xf]
    %v29 = vld [vmem:[%s0 + $0xc] sm:$0xf]
    %v30 = vld [vmem:[%s0 + $0x10] sm:$0xf]
    %v31 = vld [vmem:[%s0 + $0x14] sm:$0xf]
    %v32 = vld [vmem:[%s0 + $0x18] sm:$0xf]
    %v33 = vld [vmem:[%s0 + $0x1c] sm:$0xf]
    %v34 = vld [vmem:[%s0 + $0x20] sm:$0xf]
    %v35 = vld [vmem:[%s0 + $0x24] sm:$0xf]
    %v36 = vld [vmem:[%s0 + $0x28] sm:$0xf]
    %v37 = vld [vmem:[%s0 + $0x2c] sm:$0xf]
    %v38 = vld [vmem:[%s0 + $0x30] sm:$0xf]
    %v39 = vld [vmem:[%s0 + $0x34] sm:$0xf]
    %v40 = vld [vmem:[%s0 + $0x38] sm:$0xf]
    %v41 = vld [vmem:[%s0 + $0x3c] sm:$0xf]
    %v43 = vshrl.u32 0, 16
    %v45 = vrot.slane %v43, 7
    %v46 = vshll.u32 0, 16
    %v48 = vor.u32 %v45, %v46
    %v50 = vshrl.u32 %v26, 16
    %v52 = vrot.slane %v50, 7
    %v53 = vshll.u32 %v26, 16
    %v55 = vor.u32 %v52, %v53
    %v57 = vshrl.u32 %v27, 16
    %v59 = vrot.slane %v57, 7
    %v60 = vshll.u32 %v27, 16
    %v62 = vor.u32 %v59, %v60
    %v64 = vshrl.u32 %v28, 16
    %v66 = vrot.slane %v64, 7
    %v67 = vshll.u32 %v28, 16
    %v69 = vor.u32 %v66, %v67
    %v71 = vshrl.u32 %v29, 16
    %v73 = vrot.slane %v71, 7
    %v74 = vshll.u32 %v29, 16
    %v76 = vor.u32 %v73, %v74
    %v78 = vshrl.u32 %v30, 16
    %v80 = vrot.slane %v78, 7
    %v81 = vshll.u32 %v30, 16
    %v83 = vor.u32 %v80, %v81
    %v85 = vshrl.u32 %v31, 16
    %v87 = vrot.slane %v85, 7
    %v88 = vshll.u32 %v31, 16
    %v90 = vor.u32 %v87, %v88
    %v92 = vshrl.u32 %v32, 16
    %v94 = vrot.slane %v92, 7
    %v95 = vshll.u32 %v32, 16
    %v97 = vor.u32 %v94, %v95
    %v99 = vshrl.u32 %v33, 16
    %v101 = vrot.slane %v99, 7
    %v102 = vshll.u32 %v33, 16
    %v104 = vor.u32 %v101, %v102
    %v106 = vshrl.u32 %v34, 16
    %v108 = vrot.slane %v106, 7
    %v109 = vshll.u32 %v34, 16
    %v111 = vor.u32 %v108, %v109
    %v113 = vshrl.u32 %v35, 16
    %v115 = vrot.slane %v113, 7
    %v116 = vshll.u32 %v35, 16
    %v118 = vor.u32 %v115, %v116
    %v120 = vshrl.u32 %v36, 16
    %v122 = vrot.slane %v120, 7
    %v123 = vshll.u32 %v36, 16
    %v125 = vor.u32 %v122, %v123
    %v127 = vshrl.u32 %v37, 16
    %v129 = vrot.slane %v127, 7
    %v130 = vshll.u32 %v37, 16
    %v132 = vor.u32 %v129, %v130
    %v134 = vshrl.u32 %v38, 16
    %v136 = vrot.slane %v134, 7
    %v137 = vshll.u32 %v38, 16
    %v139 = vor.u32 %v136, %v137
    %v141 = vshrl.u32 %v39, 16
    %v143 = vrot.slane %v141, 7
    %v144 = vshll.u32 %v39, 16
    %v146 = vor.u32 %v143, %v144
    %v148 = vshrl.u32 %v40, 16
    %v150 = vrot.slane %v148, 7
    %v151 = vshll.u32 %v40, 16
    %v153 = vor.u32 %v150, %v151
    %v155 = vshrl.u32 %v41, 16
    %v157 = vrot.slane %v155, 7
    %v158 = vshll.u32 %v41, 16
    %v160 = vor.u32 %v157, %v158
    %vm178 = vcmask 1040384
    %vm179 = vsmask.f32 256
    %vm180 = vmand %vm178, %vm179
    %v181 = vsel %vm180, 0, %v48
    %v182 = vsel %vm180, 0, %v55
    %v183 = vsel %vm180, 0, %v62
    %v184 = vsel %vm180, 0, %v69
    %v185 = vsel %vm180, 0, %v76
    %v186 = vsel %vm180, 0, %v83
    %v187 = vsel %vm180, 0, %v90
    %v188 = vsel %vm180, 0, %v97
    %v189 = vsel %vm180, 0, %v104
    %v190 = vsel %vm180, 0, %v111
    %v191 = vsel %vm180, 0, %v118
    %v192 = vsel %vm180, 0, %v125
    %v193 = vsel %vm180, 0, %v132
    %v194 = vsel %vm180, 0, %v139
    %v195 = vsel %vm180, 0, %v146
    %v196 = vsel %vm180, 0, %v153
    %v197 = vsel %vm180, 0, %v160
    %vm198 = vcmask 1044480
    %vm199 = vsmask.f32 4352
    %vm200 = vmand %vm198, %vm199
    %v201 = vsel %vm200, %v181, 0
    %v202 = vsel %vm200, %v182, 0
    %v203 = vsel %vm200, %v183, 0
    %v204 = vsel %vm200, %v184, 0
    %v205 = vsel %vm200, %v185, 0
    %v206 = vsel %vm200, %v186, 0
    %v207 = vsel %vm200, %v187, 0
    %v208 = vsel %vm200, %v188, 0
    %v209 = vsel %vm200, %v189, 0
    %v210 = vsel %vm200, %v190, 0
    %v211 = vsel %vm200, %v191, 0
    %v212 = vsel %vm200, %v192, 0
    %v213 = vsel %vm200, %v193, 0
    %v214 = vsel %vm200, %v194, 0
    %v215 = vsel %vm200, %v195, 0
    %v216 = vsel %vm200, %v196, 0
    %v217 = vsel %vm200, %v197, 0
    %v219 = vshrl.u32 %v201, 16
    %v221 = vshll.u32 %v201, 16
    %v223 = vrot.slane %v221, 1
    %v224 = vor.u32 %v219, %v223
    %v226 = vshrl.u32 %v202, 16
    %v228 = vshll.u32 %v202, 16
    %v230 = vrot.slane %v228, 1
    %v231 = vor.u32 %v226, %v230
    %v233 = vshrl.u32 %v203, 16
    %v235 = vshll.u32 %v203, 16
    %v237 = vrot.slane %v235, 1
    %v238 = vor.u32 %v233, %v237
    %v240 = vshrl.u32 %v204, 16
    %v242 = vshll.u32 %v204, 16
    %v244 = vrot.slane %v242, 1
    %v245 = vor.u32 %v240, %v244
    %v247 = vshrl.u32 %v205, 16
    %v249 = vshll.u32 %v205, 16
    %v251 = vrot.slane %v249, 1
    %v252 = vor.u32 %v247, %v251
    %v254 = vshrl.u32 %v206, 16
    %v256 = vshll.u32 %v206, 16
    %v258 = vrot.slane %v256, 1
    %v259 = vor.u32 %v254, %v258
    %v261 = vshrl.u32 %v207, 16
    %v263 = vshll.u32 %v207, 16
    %v265 = vrot.slane %v263, 1
    %v266 = vor.u32 %v261, %v265
    %v268 = vshrl.u32 %v208, 16
    %v270 = vshll.u32 %v208, 16
    %v272 = vrot.slane %v270, 1
    %v273 = vor.u32 %v268, %v272
    %v275 = vshrl.u32 %v210, 16
    %v277 = vshll.u32 %v210, 16
    %v279 = vrot.slane %v277, 1
    %v280 = vor.u32 %v275, %v279
    %v282 = vshrl.u32 %v211, 16
    %v284 = vshll.u32 %v211, 16
    %v286 = vrot.slane %v284, 1
    %v287 = vor.u32 %v282, %v286
    %v289 = vshrl.u32 %v212, 16
    %v291 = vshll.u32 %v212, 16
    %v293 = vrot.slane %v291, 1
    %v294 = vor.u32 %v289, %v293
    %v296 = vshrl.u32 %v213, 16
    %v298 = vshll.u32 %v213, 16
    %v300 = vrot.slane %v298, 1
    %v301 = vor.u32 %v296, %v300
    %v303 = vshrl.u32 %v214, 16
    %v305 = vshll.u32 %v214, 16
    %v307 = vrot.slane %v305, 1
    %v308 = vor.u32 %v303, %v307
    %v310 = vshrl.u32 %v215, 16
    %v312 = vshll.u32 %v215, 16
    %v314 = vrot.slane %v312, 1
    %v315 = vor.u32 %v310, %v314
    %v317 = vshrl.u32 %v216, 16
    %v319 = vshll.u32 %v216, 16
    %v321 = vrot.slane %v319, 1
    %v322 = vor.u32 %v317, %v321
    %323 = vrot.lane.b32.xlu0 %v224, 32
    %v324 = vpop.permute.xlu0 %323
    %325 = vrot.lane.b32.xlu0 %v231, 32
    %v326 = vpop.permute.xlu0 %325
    %327 = vrot.lane.b32.xlu0 %v238, 32
    %v328 = vpop.permute.xlu0 %327
    %329 = vrot.lane.b32.xlu0 %v245, 32
    %v330 = vpop.permute.xlu0 %329
    %331 = vrot.lane.b32.xlu0 %v252, 32
    %v332 = vpop.permute.xlu0 %331
    %333 = vrot.lane.b32.xlu0 %v259, 32
    %v334 = vpop.permute.xlu0 %333
    %335 = vrot.lane.b32.xlu0 %v266, 32
    %v336 = vpop.permute.xlu0 %335
    %337 = vrot.lane.b32.xlu0 %v273, 32
    %v338 = vpop.permute.xlu0 %337
    %339 = vrot.lane.b32.xlu0 %v280, 32
    %v340 = vpop.permute.xlu0 %339
    %341 = vrot.lane.b32.xlu0 %v287, 32
    %v342 = vpop.permute.xlu0 %341
    %343 = vrot.lane.b32.xlu0 %v294, 32
    %v344 = vpop.permute.xlu0 %343
    %345 = vrot.lane.b32.xlu0 %v301, 32
    %v346 = vpop.permute.xlu0 %345
    %347 = vrot.lane.b32.xlu0 %v308, 32
    %v348 = vpop.permute.xlu0 %347
    %349 = vrot.lane.b32.xlu0 %v315, 32
    %v350 = vpop.permute.xlu0 %349
    %351 = vrot.lane.b32.xlu0 %v322, 32
    %v352 = vpop.permute.xlu0 %351
    %v368 = vrot.slane %v201, 1
    %v369 = vrot.slane %v202, 1
    %v370 = vrot.slane %v203, 1
    %v371 = vrot.slane %v204, 1
    %v372 = vrot.slane %v205, 1
    %v373 = vrot.slane %v206, 1
    %v374 = vrot.slane %v207, 1
    %v375 = vrot.slane %v208, 1
    %v376 = vrot.slane %v210, 1
    %v377 = vrot.slane %v211, 1
    %v378 = vrot.slane %v212, 1
    %v379 = vrot.slane %v213, 1
    %v380 = vrot.slane %v214, 1
    %v381 = vrot.slane %v215, 1
    %v382 = vrot.slane %v216, 1
    %383 = vrot.lane.b32.xlu0 %v368, 64
    %v384 = vpop.permute.xlu0 %383
    %385 = vrot.lane.b32.xlu0 %v369, 64
    %v386 = vpop.permute.xlu0 %385
    %387 = vrot.lane.b32.xlu0 %v370, 64
    %v388 = vpop.permute.xlu0 %387
    %389 = vrot.lane.b32.xlu0 %v371, 64
    %v390 = vpop.permute.xlu0 %389
    %391 = vrot.lane.b32.xlu0 %v372, 64
    %v392 = vpop.permute.xlu0 %391
    %393 = vrot.lane.b32.xlu0 %v373, 64
    %v394 = vpop.permute.xlu0 %393
    %395 = vrot.lane.b32.xlu0 %v374, 64
    %v396 = vpop.permute.xlu0 %395
    %397 = vrot.lane.b32.xlu0 %v375, 64
    %v398 = vpop.permute.xlu0 %397
    %399 = vrot.lane.b32.xlu0 %v376, 64
    %v400 = vpop.permute.xlu0 %399
    %401 = vrot.lane.b32.xlu0 %v377, 64
    %v402 = vpop.permute.xlu0 %401
    %403 = vrot.lane.b32.xlu0 %v378, 64
    %v404 = vpop.permute.xlu0 %403
    %405 = vrot.lane.b32.xlu0 %v379, 64
    %v406 = vpop.permute.xlu0 %405
    %407 = vrot.lane.b32.xlu0 %v380, 64
    %v408 = vpop.permute.xlu0 %407
    %409 = vrot.lane.b32.xlu0 %v381, 64
    %v410 = vpop.permute.xlu0 %409
    %411 = vrot.lane.b32.xlu0 %v382, 64
    %v412 = vpop.permute.xlu0 %411
    %415 = vrot.lane.b32.xlu0 %v202, 96
    %v416 = vpop.permute.xlu0 %415
    %417 = vrot.lane.b32.xlu0 %v203, 96
    %v418 = vpop.permute.xlu0 %417
    %419 = vrot.lane.b32.xlu0 %v204, 96
    %v420 = vpop.permute.xlu0 %419
    %421 = vrot.lane.b32.xlu0 %v205, 96
    %v422 = vpop.permute.xlu0 %421
    %423 = vrot.lane.b32.xlu0 %v206, 96
    %v424 = vpop.permute.xlu0 %423
    %425 = vrot.lane.b32.xlu0 %v207, 96
    %v426 = vpop.permute.xlu0 %425
    %427 = vrot.lane.b32.xlu0 %v208, 96
    %v428 = vpop.permute.xlu0 %427
    %429 = vrot.lane.b32.xlu0 %v209, 96
    %v430 = vpop.permute.xlu0 %429
    %431 = vrot.lane.b32.xlu0 %v210, 96
    %v432 = vpop.permute.xlu0 %431
    %433 = vrot.lane.b32.xlu0 %v211, 96
    %v434 = vpop.permute.xlu0 %433
    %435 = vrot.lane.b32.xlu0 %v212, 96
    %v436 = vpop.permute.xlu0 %435
    %437 = vrot.lane.b32.xlu0 %v213, 96
    %v438 = vpop.permute.xlu0 %437
    %439 = vrot.lane.b32.xlu0 %v214, 96
    %v440 = vpop.permute.xlu0 %439
    %441 = vrot.lane.b32.xlu0 %v215, 96
    %v442 = vpop.permute.xlu0 %441
    %443 = vrot.lane.b32.xlu0 %v216, 96
    %v444 = vpop.permute.xlu0 %443
    %445 = vrot.lane.b32.xlu0 %v217, 96
    %v446 = vpop.permute.xlu0 %445
    %v448 = vshrl.u32 %v209, 16
    %v450 = vshll.u32 %v209, 16
    %v452 = vrot.slane %v450, 1
    %v453 = vor.u32 %v448, %v452
    %v455 = vshrl.u32 %v217, 16
    %v457 = vshll.u32 %v217, 16
    %v459 = vrot.slane %v457, 1
    %v460 = vor.u32 %v455, %v459
    %v461 = vrot.slane %v209, 1
    %v462 = vrot.slane %v217, 1
    %463 = vrot.lane.b32.xlu0 %v369, 32
    %v464 = vpop.permute.xlu0 %463
    %465 = vrot.lane.b32.xlu0 %v370, 32
    %v466 = vpop.permute.xlu0 %465
    %467 = vrot.lane.b32.xlu0 %v371, 32
    %v468 = vpop.permute.xlu0 %467
    %469 = vrot.lane.b32.xlu0 %v372, 32
    %v470 = vpop.permute.xlu0 %469
    %471 = vrot.lane.b32.xlu0 %v373, 32
    %v472 = vpop.permute.xlu0 %471
    %473 = vrot.lane.b32.xlu0 %v374, 32
    %v474 = vpop.permute.xlu0 %473
    %475 = vrot.lane.b32.xlu0 %v375, 32
    %v476 = vpop.permute.xlu0 %475
    %477 = vrot.lane.b32.xlu0 %v461, 32
    %v478 = vpop.permute.xlu0 %477
    %479 = vrot.lane.b32.xlu0 %v376, 32
    %v480 = vpop.permute.xlu0 %479
    %481 = vrot.lane.b32.xlu0 %v377, 32
    %v482 = vpop.permute.xlu0 %481
    %483 = vrot.lane.b32.xlu0 %v378, 32
    %v484 = vpop.permute.xlu0 %483
    %485 = vrot.lane.b32.xlu0 %v379, 32
    %v486 = vpop.permute.xlu0 %485
    %487 = vrot.lane.b32.xlu0 %v380, 32
    %v488 = vpop.permute.xlu0 %487
    %489 = vrot.lane.b32.xlu0 %v381, 32
    %v490 = vpop.permute.xlu0 %489
    %491 = vrot.lane.b32.xlu0 %v382, 32
    %v492 = vpop.permute.xlu0 %491
    %493 = vrot.lane.b32.xlu0 %v462, 32
    %v494 = vpop.permute.xlu0 %493
    %495 = vrot.lane.b32.xlu0 %v203, 64
    %v496 = vpop.permute.xlu0 %495
    %497 = vrot.lane.b32.xlu0 %v204, 64
    %v498 = vpop.permute.xlu0 %497
    %499 = vrot.lane.b32.xlu0 %v205, 64
    %v500 = vpop.permute.xlu0 %499
    %501 = vrot.lane.b32.xlu0 %v206, 64
    %v502 = vpop.permute.xlu0 %501
    %503 = vrot.lane.b32.xlu0 %v207, 64
    %v504 = vpop.permute.xlu0 %503
    %505 = vrot.lane.b32.xlu0 %v208, 64
    %v506 = vpop.permute.xlu0 %505
    %507 = vrot.lane.b32.xlu0 %v209, 64
    %v508 = vpop.permute.xlu0 %507
    %509 = vrot.lane.b32.xlu0 %v201, 64
    %v510 = vpop.permute.xlu0 %509
    %511 = vrot.lane.b32.xlu0 %v211, 64
    %v512 = vpop.permute.xlu0 %511
    %513 = vrot.lane.b32.xlu0 %v212, 64
    %v514 = vpop.permute.xlu0 %513
    %515 = vrot.lane.b32.xlu0 %v213, 64
    %v516 = vpop.permute.xlu0 %515
    %517 = vrot.lane.b32.xlu0 %v214, 64
    %v518 = vpop.permute.xlu0 %517
    %519 = vrot.lane.b32.xlu0 %v215, 64
    %v520 = vpop.permute.xlu0 %519
    %521 = vrot.lane.b32.xlu0 %v216, 64
    %v522 = vpop.permute.xlu0 %521
    %523 = vrot.lane.b32.xlu0 %v217, 64
    %v524 = vpop.permute.xlu0 %523
    %525 = vrot.lane.b32.xlu0 %v238, 96
    %v526 = vpop.permute.xlu0 %525
    %527 = vrot.lane.b32.xlu0 %v245, 96
    %v528 = vpop.permute.xlu0 %527
    %529 = vrot.lane.b32.xlu0 %v252, 96
    %v530 = vpop.permute.xlu0 %529
    %531 = vrot.lane.b32.xlu0 %v259, 96
    %v532 = vpop.permute.xlu0 %531
    %533 = vrot.lane.b32.xlu0 %v266, 96
    %v534 = vpop.permute.xlu0 %533
    %535 = vrot.lane.b32.xlu0 %v273, 96
    %v536 = vpop.permute.xlu0 %535
    %537 = vrot.lane.b32.xlu0 %v453, 96
    %v538 = vpop.permute.xlu0 %537
    %539 = vrot.lane.b32.xlu0 %v224, 96
    %v540 = vpop.permute.xlu0 %539
    %541 = vrot.lane.b32.xlu0 %v287, 96
    %v542 = vpop.permute.xlu0 %541
    %543 = vrot.lane.b32.xlu0 %v294, 96
    %v544 = vpop.permute.xlu0 %543
    %545 = vrot.lane.b32.xlu0 %v301, 96
    %v546 = vpop.permute.xlu0 %545
    %547 = vrot.lane.b32.xlu0 %v308, 96
    %v548 = vpop.permute.xlu0 %547
    %549 = vrot.lane.b32.xlu0 %v315, 96
    %v550 = vpop.permute.xlu0 %549
    %551 = vrot.lane.b32.xlu0 %v322, 96
    %v552 = vpop.permute.xlu0 %551
    %553 = vrot.lane.b32.xlu0 %v460, 96
    %v554 = vpop.permute.xlu0 %553
    %vm555 = vcmask 261120
    %v557 = vsel %vm555, %v201, %v324
    %v559 = vsel %vm555, %v202, %v326
    %v561 = vsel %vm555, %v203, %v328
    %v563 = vsel %vm555, %v204, %v330
    %v565 = vsel %vm555, %v205, %v332
    %v567 = vsel %vm555, %v206, %v334
    %v569 = vsel %vm555, %v207, %v336
    %v571 = vsel %vm555, %v208, %v338
    %v573 = vsel %vm555, %v210, %v340
    %v575 = vsel %vm555, %v211, %v342
    %v577 = vsel %vm555, %v212, %v344
    %v579 = vsel %vm555, %v213, %v346
    %v581 = vsel %vm555, %v214, %v348
    %v583 = vsel %vm555, %v215, %v350
    %v585 = vsel %vm555, %v216, %v352
    %vm586 = vcmask 523264
    %v588 = vsel %vm586, %v557, %v384
    %v590 = vsel %vm586, %v559, %v386
    %v592 = vsel %vm586, %v561, %v388
    %v594 = vsel %vm586, %v563, %v390
    %v596 = vsel %vm586, %v565, %v392
    %v598 = vsel %vm586, %v567, %v394
    %v600 = vsel %vm586, %v569, %v396
    %v602 = vsel %vm586, %v571, %v398
    %v604 = vsel %vm586, %v573, %v400
    %v606 = vsel %vm586, %v575, %v402
    %v608 = vsel %vm586, %v577, %v404
    %v610 = vsel %vm586, %v579, %v406
    %v612 = vsel %vm586, %v581, %v408
    %v614 = vsel %vm586, %v583, %v410
    %v616 = vsel %vm586, %v585, %v412
    %vm617 = vcmask 785408
    %v619 = vsel %vm617, %v588, %v416
    %v621 = vsel %vm617, %v590, %v418
    %v623 = vsel %vm617, %v592, %v420
    %v625 = vsel %vm617, %v594, %v422
    %v627 = vsel %vm617, %v596, %v424
    %v629 = vsel %vm617, %v598, %v426
    %v631 = vsel %vm617, %v600, %v428
    %v633 = vsel %vm617, %v602, %v430
    %v635 = vsel %vm617, %v588, %v432
    %v637 = vsel %vm617, %v604, %v434
    %v639 = vsel %vm617, %v606, %v436
    %v641 = vsel %vm617, %v608, %v438
    %v643 = vsel %vm617, %v610, %v440
    %v645 = vsel %vm617, %v612, %v442
    %v647 = vsel %vm617, %v614, %v444
    %v649 = vsel %vm617, %v616, %v446
    %v652 = vsel %vm555, %v231, %v464
    %v655 = vsel %vm555, %v238, %v466
    %v658 = vsel %vm555, %v245, %v468
    %v661 = vsel %vm555, %v252, %v470
    %v664 = vsel %vm555, %v259, %v472
    %v667 = vsel %vm555, %v266, %v474
    %v670 = vsel %vm555, %v273, %v476
    %v673 = vsel %vm555, %v453, %v478
    %v676 = vsel %vm555, %v280, %v480
    %v679 = vsel %vm555, %v287, %v482
    %v682 = vsel %vm555, %v294, %v484
    %v685 = vsel %vm555, %v301, %v486
    %v688 = vsel %vm555, %v308, %v488
    %v691 = vsel %vm555, %v315, %v490
    %v694 = vsel %vm555, %v322, %v492
    %v697 = vsel %vm555, %v460, %v494
    %v699 = vsel %vm586, %v652, %v496
    %v701 = vsel %vm586, %v655, %v498
    %v703 = vsel %vm586, %v658, %v500
    %v705 = vsel %vm586, %v661, %v502
    %v707 = vsel %vm586, %v664, %v504
    %v709 = vsel %vm586, %v667, %v506
    %v711 = vsel %vm586, %v670, %v508
    %v713 = vsel %vm586, %v673, %v510
    %v715 = vsel %vm586, %v676, %v512
    %v717 = vsel %vm586, %v679, %v514
    %v719 = vsel %vm586, %v682, %v516
    %v721 = vsel %vm586, %v685, %v518
    %v723 = vsel %vm586, %v688, %v520
    %v725 = vsel %vm586, %v691, %v522
    %v727 = vsel %vm586, %v694, %v524
    %v728 = vsel %vm586, %v697, %v510
    %v730 = vsel %vm617, %v699, %v526
    %v732 = vsel %vm617, %v701, %v528
    %v734 = vsel %vm617, %v703, %v530
    %v736 = vsel %vm617, %v705, %v532
    %v738 = vsel %vm617, %v707, %v534
    %v740 = vsel %vm617, %v709, %v536
    %v742 = vsel %vm617, %v711, %v538
    %v744 = vsel %vm617, %v713, %v540
    %v746 = vsel %vm617, %v715, %v542
    %v748 = vsel %vm617, %v717, %v544
    %v750 = vsel %vm617, %v719, %v546
    %v752 = vsel %vm617, %v721, %v548
    %v754 = vsel %vm617, %v723, %v550
    %v756 = vsel %vm617, %v725, %v552
    %v758 = vsel %vm617, %v727, %v554
    %v759 = vsel %vm617, %v728, %v540
    %v792 = vunpack.c.l.b16 %v619
    %v793 = vunpack.c.l.b16 %v730
    %v794 = vunpack.c.l.b16 %v370
    %v795 = vunpack.c.l.b16 %v621
    %v796 = vunpack.c.l.b16 %v732
    %v797 = vunpack.c.l.b16 %v371
    %v798 = vunpack.c.l.b16 %v623
    %v799 = vunpack.c.l.b16 %v734
    %v800 = vunpack.c.l.b16 %v372
    %v801 = vunpack.c.l.b16 %v625
    %v802 = vunpack.c.l.b16 %v736
    %v803 = vunpack.c.l.b16 %v373
    %v804 = vunpack.c.l.b16 %v627
    %v805 = vunpack.c.l.b16 %v738
    %v806 = vunpack.c.l.b16 %v374
    %v807 = vunpack.c.l.b16 %v629
    %v808 = vunpack.c.l.b16 %v740
    %v809 = vunpack.c.l.b16 %v375
    %v810 = vunpack.c.l.b16 %v631
    %v811 = vunpack.c.l.b16 %v742
    %v812 = vunpack.c.l.b16 %v461
    %v813 = vunpack.c.l.b16 %v633
    %v814 = vunpack.c.l.b16 %v744
    %v815 = vunpack.c.l.b16 %v368
    %v816 = vunpack.c.l.b16 %v635
    %v817 = vunpack.c.l.b16 %v746
    %v818 = vunpack.c.l.b16 %v377
    %v819 = vunpack.c.l.b16 %v637
    %v820 = vunpack.c.l.b16 %v748
    %v821 = vunpack.c.l.b16 %v378
    %v822 = vunpack.c.l.b16 %v639
    %v823 = vunpack.c.l.b16 %v750
    %v824 = vunpack.c.l.b16 %v379
    %v825 = vunpack.c.l.b16 %v641
    %v826 = vunpack.c.l.b16 %v752
    %v827 = vunpack.c.l.b16 %v380
    %v828 = vunpack.c.l.b16 %v643
    %v829 = vunpack.c.l.b16 %v754
    %v830 = vunpack.c.l.b16 %v381
    %v831 = vunpack.c.l.b16 %v645
    %v832 = vunpack.c.l.b16 %v756
    %v833 = vunpack.c.l.b16 %v382
    %v834 = vunpack.c.l.b16 %v647
    %v835 = vunpack.c.l.b16 %v758
    %v836 = vunpack.c.l.b16 %v462
    %v837 = vunpack.c.l.b16 %v649
    %v838 = vunpack.c.l.b16 %v759
    %v839 = vld [vmem:[%s2] sm:$0xf]
    %v840 = vld [vmem:[%s2 + $0x4] sm:$0xf]
    %v841 = vld [vmem:[%s2 + $0x8] sm:$0xf]
    %v842 = vld [vmem:[%s2 + $0xc] sm:$0xf]
    %v843 = vld [vmem:[%s2 + $0x10] sm:$0xf]
    %v844 = vld [vmem:[%s2 + $0x14] sm:$0xf]
    %v845 = vld [vmem:[%s2 + $0x18] sm:$0xf]
    %v846 = vld [vmem:[%s2 + $0x1c] sm:$0xf]
    %v847 = vld [vmem:[%s2 + $0x20] sm:$0xf]
    %v848 = vld [vmem:[%s2 + $0x24] sm:$0xf]
    %v849 = vld [vmem:[%s2 + $0x28] sm:$0xf]
    %v850 = vld [vmem:[%s2 + $0x2c] sm:$0xf]
    %v851 = vld [vmem:[%s2 + $0x30] sm:$0xf]
    %v852 = vld [vmem:[%s2 + $0x34] sm:$0xf]
    %v853 = vld [vmem:[%s2 + $0x38] sm:$0xf]
    %v854 = vld [vmem:[%s2 + $0x3c] sm:$0xf]
    %v855 = vld [vmem:[%s2 + $0x40] sm:$0xf]
    %v856 = vld [vmem:[%s2 + $0x44] sm:$0xf]
    %v857 = vld [vmem:[%s2 + $0x48] sm:$0xf]
    %v858 = vld [vmem:[%s2 + $0x4c] sm:$0xf]
    %v859 = vld [vmem:[%s2 + $0x50] sm:$0xf]
    %v860 = vld [vmem:[%s2 + $0x54] sm:$0xf]
    %v861 = vld [vmem:[%s2 + $0x58] sm:$0xf]
    %v862 = vld [vmem:[%s2 + $0x5c] sm:$0xf]
    %v863 = vld [vmem:[%s2 + $0x60] sm:$0xf]
    %v864 = vld [vmem:[%s2 + $0x64] sm:$0xf]
    %v865 = vld [vmem:[%s2 + $0x68] sm:$0xf]
    %v866 = vld [vmem:[%s2 + $0x6c] sm:$0xf]
    %v867 = vld [vmem:[%s2 + $0x70] sm:$0xf]
    %v868 = vld [vmem:[%s2 + $0x74] sm:$0xf]
    %v869 = vld [vmem:[%s2 + $0x78] sm:$0xf]
    %v870 = vld [vmem:[%s2 + $0x7c] sm:$0xf]
    %v871 = vld [vmem:[%s2 + $0x80] sm:$0xf]
    %v872 = vld [vmem:[%s2 + $0x84] sm:$0xf]
    %v873 = vld [vmem:[%s2 + $0x88] sm:$0xf]
    %v874 = vld [vmem:[%s2 + $0x8c] sm:$0xf]
    %v875 = vpack.c.b16 %v795, %v792
    %v876 = vpack.c.b16 %v796, %v793
    %v877 = vpack.c.b16 %v797, %v794
    %v878 = vpack.c.b16 %v801, %v798
    %v879 = vpack.c.b16 %v802, %v799
    %v880 = vpack.c.b16 %v803, %v800
    %v881 = vpack.c.b16 %v807, %v804
    %v882 = vpack.c.b16 %v808, %v805
    %v883 = vpack.c.b16 %v809, %v806
    %v884 = vpack.c.b16 %v813, %v810
    %v885 = vpack.c.b16 %v814, %v811
    %v886 = vpack.c.b16 %v815, %v812
    %v887 = vpack.c.b16 %v819, %v816
    %v888 = vpack.c.b16 %v820, %v817
    %v889 = vpack.c.b16 %v821, %v818
    %v890 = vpack.c.b16 %v825, %v822
    %v891 = vpack.c.b16 %v826, %v823
    %v892 = vpack.c.b16 %v827, %v824
    %v893 = vpack.c.b16 %v831, %v828
    %v894 = vpack.c.b16 %v832, %v829
    %v895 = vpack.c.b16 %v833, %v830
    %v896 = vpack.c.b16 %v837, %v834
    %v897 = vpack.c.b16 %v838, %v835
    %v898 = vpack.c.b16 %v815, %v836
    %v951 = vunpack.c.l.b16 %v839
    %v952 = vunpack.c.l.b16 %v840
    %v953 = vunpack.c.l.b16 %v841
    %v954 = vunpack.c.l.b16 %v842
    %v955 = vunpack.c.l.b16 %v843
    %v956 = vunpack.c.l.b16 %v844
    %v957 = vunpack.c.l.b16 %v845
    %v958 = vunpack.c.l.b16 %v846
    %v959 = vunpack.c.l.b16 %v847
    %v960 = vunpack.c.l.b16 %v848
    %v961 = vunpack.c.l.b16 %v849
    %v962 = vunpack.c.l.b16 %v850
    %v963 = vunpack.c.l.b16 %v851
    %v964 = vunpack.c.l.b16 %v852
    %v965 = vunpack.c.l.b16 %v853
    %v966 = vunpack.c.l.b16 %v854
    %v967 = vunpack.c.l.b16 %v855
    %v968 = vunpack.c.l.b16 %v856
    %v969 = vunpack.c.l.b16 %v857
    %v970 = vunpack.c.l.b16 %v858
    %v971 = vunpack.c.l.b16 %v859
    %v972 = vunpack.c.l.b16 %v860
    %v973 = vunpack.c.l.b16 %v861
    %v974 = vunpack.c.l.b16 %v862
    %v975 = vunpack.c.l.b16 %v863
    %v976 = vunpack.c.l.b16 %v864
    %v977 = vunpack.c.l.b16 %v865
    %v978 = vunpack.c.l.b16 %v866
    %v979 = vunpack.c.l.b16 %v867
    %v980 = vunpack.c.l.b16 %v868
    %v981 = vunpack.c.l.b16 %v869
    %v982 = vunpack.c.l.b16 %v870
    %v983 = vunpack.c.l.b16 %v871
    %v984 = vunpack.c.l.b16 %v872
    %v985 = vunpack.c.l.b16 %v873
    %v986 = vunpack.c.l.b16 %v874
    %v987 = vpack.c.b16 %v952, %v951
    %v988 = vpack.c.b16 %v954, %v953
    %v989 = vpack.c.b16 %v956, %v955
    %v990 = vpack.c.b16 %v958, %v957
    %v991 = vpack.c.b16 %v960, %v959
    %v992 = vpack.c.b16 %v962, %v961
    %v993 = vpack.c.b16 %v964, %v963
    %v994 = vpack.c.b16 %v966, %v965
    %v995 = vpack.c.b16 %v968, %v967
    %v996 = vpack.c.b16 %v970, %v969
    %v997 = vpack.c.b16 %v972, %v971
    %v998 = vpack.c.b16 %v974, %v973
    %v999 = vpack.c.b16 %v976, %v975
    %v1000 = vpack.c.b16 %v978, %v977
    %v1001 = vpack.c.b16 %v980, %v979
    %v1002 = vpack.c.b16 %v982, %v981
    %v1003 = vpack.c.b16 %v984, %v983
    %v1004 = vpack.c.b16 %v986, %v985
    %v1024 = vsel %vm555, %v877, 0
    %v1027 = vsel %vm555, %v880, 0
    %v1030 = vsel %vm555, %v883, 0
    %v1033 = vsel %vm555, %v886, 0
    %v1036 = vsel %vm555, %v889, 0
    %v1039 = vsel %vm555, %v892, 0
    %v1042 = vsel %vm555, %v895, 0
    %v1045 = vsel %vm555, %v898, 0
    %1047 = vmatpush.bf16.msra.mxu0 %v994
    %1048 = vmatpush.bf16.msra.mxu0 %v993
    %1049 = vmatpush.bf16.msra.mxu0 %v992
    %1050 = vmatpush.bf16.msra.mxu0 %v991
    %1051 = vmatpush.bf16.msra.mxu0 %v990
    %1052 = vmatpush.bf16.msra.mxu0 %v989
    %1053 = vmatpush.bf16.msra.mxu0 %v988
    %1054 = vmatpush.bf16.msra.mxu0 %v987
    %1055 = vmatmul.bf16.gmra.mxu0 %v875
    %v1056 = vpop.f32.mrf.mxu0
    %v1057 = vadd.f32 0.0, %v1056
    %v1058 = vpop.f32.mrf.mxu0
    %v1059 = vadd.f32 0.0, %v1058
    %1060 = vmatmul.bf16.gmra.mxu0 %v878
    %v1061 = vpop.f32.mrf.mxu0
    %v1062 = vadd.f32 0.0, %v1061
    %v1063 = vpop.f32.mrf.mxu0
    %v1064 = vadd.f32 0.0, %v1063
    %1065 = vmatmul.bf16.gmra.mxu0 %v881
    %v1066 = vpop.f32.mrf.mxu0
    %v1067 = vadd.f32 0.0, %v1066
    %v1068 = vpop.f32.mrf.mxu0
    %v1069 = vadd.f32 0.0, %v1068
    %1070 = vmatmul.bf16.gmra.mxu0 %v884
    %v1071 = vpop.f32.mrf.mxu0
    %v1072 = vadd.f32 0.0, %v1071
    %v1073 = vpop.f32.mrf.mxu0
    %v1074 = vadd.f32 0.0, %v1073
    %1075 = vmatmul.bf16.gmra.mxu0 %v887
    %v1076 = vpop.f32.mrf.mxu0
    %v1077 = vadd.f32 0.0, %v1076
    %v1078 = vpop.f32.mrf.mxu0
    %v1079 = vadd.f32 0.0, %v1078
    %1080 = vmatmul.bf16.gmra.mxu0 %v890
    %v1081 = vpop.f32.mrf.mxu0
    %v1082 = vadd.f32 0.0, %v1081
    %v1083 = vpop.f32.mrf.mxu0
    %v1084 = vadd.f32 0.0, %v1083
    %1085 = vmatmul.bf16.gmra.mxu0 %v893
    %v1086 = vpop.f32.mrf.mxu0
    %v1087 = vadd.f32 0.0, %v1086
    %v1088 = vpop.f32.mrf.mxu0
    %v1089 = vadd.f32 0.0, %v1088
    %1090 = vmatmul.bf16.gmra.mxu0 %v896
    %v1091 = vpop.f32.mrf.mxu0
    %v1092 = vadd.f32 0.0, %v1091
    %v1093 = vpop.f32.mrf.mxu0
    %v1094 = vadd.f32 0.0, %v1093
    %1095 = vdwg.mxu0
    %1096 = vmatpush.bf16.msra.mxu0 %v1002
    %1097 = vmatpush.bf16.msra.mxu0 %v1001
    %1098 = vmatpush.bf16.msra.mxu0 %v1000
    %1099 = vmatpush.bf16.msra.mxu0 %v999
    %1100 = vmatpush.bf16.msra.mxu0 %v998
    %1101 = vmatpush.bf16.msra.mxu0 %v997
    %1102 = vmatpush.bf16.msra.mxu0 %v996
    %1103 = vmatpush.bf16.msra.mxu0 %v995
    %1104 = vmatmul.bf16.gmra.mxu0 %v876
    %v1105 = vpop.f32.mrf.mxu0
    %v1106 = vadd.f32 %v1057, %v1105
    %v1107 = vpop.f32.mrf.mxu0
    %v1108 = vadd.f32 %v1059, %v1107
    %1109 = vmatmul.bf16.gmra.mxu0 %v879
    %v1110 = vpop.f32.mrf.mxu0
    %v1111 = vadd.f32 %v1062, %v1110
    %v1112 = vpop.f32.mrf.mxu0
    %v1113 = vadd.f32 %v1064, %v1112
    %1114 = vmatmul.bf16.gmra.mxu0 %v882
    %v1115 = vpop.f32.mrf.mxu0
    %v1116 = vadd.f32 %v1067, %v1115
    %v1117 = vpop.f32.mrf.mxu0
    %v1118 = vadd.f32 %v1069, %v1117
    %1119 = vmatmul.bf16.gmra.mxu0 %v885
    %v1120 = vpop.f32.mrf.mxu0
    %v1121 = vadd.f32 %v1072, %v1120
    %v1122 = vpop.f32.mrf.mxu0
    %v1123 = vadd.f32 %v1074, %v1122
    %1124 = vmatmul.bf16.gmra.mxu0 %v888
    %v1125 = vpop.f32.mrf.mxu0
    %v1126 = vadd.f32 %v1077, %v1125
    %v1127 = vpop.f32.mrf.mxu0
    %v1128 = vadd.f32 %v1079, %v1127
    %1129 = vmatmul.bf16.gmra.mxu0 %v891
    %v1130 = vpop.f32.mrf.mxu0
    %v1131 = vadd.f32 %v1082, %v1130
    %v1132 = vpop.f32.mrf.mxu0
    %v1133 = vadd.f32 %v1084, %v1132
    %1134 = vmatmul.bf16.gmra.mxu0 %v894
    %v1135 = vpop.f32.mrf.mxu0
    %v1136 = vadd.f32 %v1087, %v1135
    %v1137 = vpop.f32.mrf.mxu0
    %v1138 = vadd.f32 %v1089, %v1137
    %1139 = vmatmul.bf16.gmra.mxu0 %v897
    %v1140 = vpop.f32.mrf.mxu0
    %v1141 = vadd.f32 %v1092, %v1140
    %v1142 = vpop.f32.mrf.mxu0
    %v1143 = vadd.f32 %v1094, %v1142
    %1144 = vdwg.mxu0
    %1145 = vmatpush.bf16.msra.mxu0 0
    %1146 = vmatpush.bf16.msra.mxu0 0
    %1147 = vmatpush.bf16.msra.mxu0 0
    %1148 = vmatpush.bf16.msra.mxu0 0
    %1149 = vmatpush.bf16.msra.mxu0 0
    %1150 = vmatpush.bf16.msra.mxu0 0
    %1151 = vmatpush.bf16.msra.mxu0 %v1004
    %1152 = vmatpush.bf16.msra.mxu0 %v1003
    %1153 = vmatmul.bf16.gmra.mxu0 %v1024
    %v1154 = vpop.f32.mrf.mxu0
    %v1155 = vadd.f32 %v1106, %v1154
    %v1156 = vpop.f32.mrf.mxu0
    %v1157 = vadd.f32 %v1108, %v1156
    %1158 = vmatmul.bf16.gmra.mxu0 %v1027
    %v1159 = vpop.f32.mrf.mxu0
    %v1160 = vadd.f32 %v1111, %v1159
    %v1161 = vpop.f32.mrf.mxu0
    %v1162 = vadd.f32 %v1113, %v1161
    %1163 = vmatmul.bf16.gmra.mxu0 %v1030
    %v1164 = vpop.f32.mrf.mxu0
    %v1165 = vadd.f32 %v1116, %v1164
    %v1166 = vpop.f32.mrf.mxu0
    %v1167 = vadd.f32 %v1118, %v1166
    %1168 = vmatmul.bf16.gmra.mxu0 %v1033
    %v1169 = vpop.f32.mrf.mxu0
    %v1170 = vadd.f32 %v1121, %v1169
    %v1171 = vpop.f32.mrf.mxu0
    %v1172 = vadd.f32 %v1123, %v1171
    %1173 = vmatmul.bf16.gmra.mxu0 %v1036
    %v1174 = vpop.f32.mrf.mxu0
    %v1175 = vadd.f32 %v1126, %v1174
    %v1176 = vpop.f32.mrf.mxu0
    %v1177 = vadd.f32 %v1128, %v1176
    %1178 = vmatmul.bf16.gmra.mxu0 %v1039
    %v1179 = vpop.f32.mrf.mxu0
    %v1180 = vadd.f32 %v1131, %v1179
    %v1181 = vpop.f32.mrf.mxu0
    %v1182 = vadd.f32 %v1133, %v1181
    %1183 = vmatmul.bf16.gmra.mxu0 %v1042
    %v1184 = vpop.f32.mrf.mxu0
    %v1185 = vadd.f32 %v1136, %v1184
    %v1186 = vpop.f32.mrf.mxu0
    %v1187 = vadd.f32 %v1138, %v1186
    %1188 = vmatmul.bf16.gmra.mxu0 %v1045
    %v1189 = vpop.f32.mrf.mxu0
    %v1190 = vadd.f32 %v1141, %v1189
    %v1191 = vpop.f32.mrf.mxu0
    %v1192 = vadd.f32 %v1143, %v1191
    %1193 = vdwg.mxu0
    %v1194 = vperm.slane %v25, 0
    %v1195 = vmul.f32 %v1155, %v1194
    %v1196 = vmul.f32 %v1157, %v1194
    %v1197 = vmul.f32 %v1160, %v1194
    %v1198 = vmul.f32 %v1162, %v1194
    %v1199 = vmul.f32 %v1165, %v1194
    %v1200 = vmul.f32 %v1167, %v1194
    %v1201 = vmul.f32 %v1170, %v1194
    %v1202 = vmul.f32 %v1172, %v1194
    %v1203 = vmul.f32 %v1175, %v1194
    %v1204 = vmul.f32 %v1177, %v1194
    %v1205 = vmul.f32 %v1180, %v1194
    %v1206 = vmul.f32 %v1182, %v1194
    %v1207 = vmul.f32 %v1185, %v1194
    %v1208 = vmul.f32 %v1187, %v1194
    %v1209 = vmul.f32 %v1190, %v1194
    %v1210 = vmul.f32 %v1192, %v1194
    %v1211 = vperm.slane %v25, 1
    %v1212 = vadd.f32 %v1195, %v1211
    %v1213 = vadd.f32 %v1196, %v1211
    %v1214 = vadd.f32 %v1197, %v1211
    %v1215 = vadd.f32 %v1198, %v1211
    %v1216 = vadd.f32 %v1199, %v1211
    %v1217 = vadd.f32 %v1200, %v1211
    %v1218 = vadd.f32 %v1201, %v1211
    %v1219 = vadd.f32 %v1202, %v1211
    %v1220 = vadd.f32 %v1203, %v1211
    %v1221 = vadd.f32 %v1204, %v1211
    %v1222 = vadd.f32 %v1205, %v1211
    %v1223 = vadd.f32 %v1206, %v1211
    %v1224 = vadd.f32 %v1207, %v1211
    %v1225 = vadd.f32 %v1208, %v1211
    %v1226 = vadd.f32 %v1209, %v1211
    %v1227 = vadd.f32 %v1210, %v1211
    %v1228 = vlaneseq
    %v1229 = vand.u32 %v1228, 127
    %vm1230 = vcmp.lt.s32.totalorder %v1229, 16
    %v1231 = vmax.f32 %v1212, 0.0
    %v1232 = vmax.f32 %v1213, 0.0
    %v1233 = vmax.f32 %v1214, 0.0
    %v1234 = vmax.f32 %v1215, 0.0
    %v1235 = vmax.f32 %v1216, 0.0
    %v1236 = vmax.f32 %v1217, 0.0
    %v1237 = vmax.f32 %v1218, 0.0
    %v1238 = vmax.f32 %v1219, 0.0
    %v1239 = vmax.f32 %v1220, 0.0
    %v1240 = vmax.f32 %v1221, 0.0
    %v1241 = vmax.f32 %v1222, 0.0
    %v1242 = vmax.f32 %v1223, 0.0
    %v1243 = vmax.f32 %v1224, 0.0
    %v1244 = vmax.f32 %v1225, 0.0
    %v1245 = vmax.f32 %v1226, 0.0
    %v1246 = vmax.f32 %v1227, 0.0
    %v1247 = vsel %vm1230, %v1231, %v1212
    %v1248 = vsel %vm1230, %v1232, %v1213
    %v1249 = vsel %vm1230, %v1233, %v1214
    %v1250 = vsel %vm1230, %v1234, %v1215
    %v1251 = vsel %vm1230, %v1235, %v1216
    %v1252 = vsel %vm1230, %v1236, %v1217
    %v1253 = vsel %vm1230, %v1237, %v1218
    %v1254 = vsel %vm1230, %v1238, %v1219
    %v1255 = vsel %vm1230, %v1239, %v1220
    %v1256 = vsel %vm1230, %v1240, %v1221
    %v1257 = vsel %vm1230, %v1241, %v1222
    %v1258 = vsel %vm1230, %v1242, %v1223
    %v1259 = vsel %vm1230, %v1243, %v1224
    %v1260 = vsel %vm1230, %v1244, %v1225
    %v1261 = vsel %vm1230, %v1245, %v1226
    %v1262 = vsel %vm1230, %v1246, %v1227
    %v1263 = vld [vmem:[%s1] sm:$0xf]
    %v1264 = vld [vmem:[%s1 + $0x4] sm:$0xf]
    %v1265 = vld [vmem:[%s1 + $0x8] sm:$0xf]
    %v1266 = vld [vmem:[%s1 + $0xc] sm:$0xf]
    %v1267 = vld [vmem:[%s1 + $0x10] sm:$0xf]
    %v1268 = vld [vmem:[%s1 + $0x14] sm:$0xf]
    %v1269 = vld [vmem:[%s1 + $0x18] sm:$0xf]
    %v1270 = vld [vmem:[%s1 + $0x1c] sm:$0xf]
    %v1271 = vld [vmem:[%s1 + $0x20] sm:$0xf]
    %v1272 = vld [vmem:[%s1 + $0x24] sm:$0xf]
    %v1273 = vld [vmem:[%s1 + $0x28] sm:$0xf]
    %v1274 = vld [vmem:[%s1 + $0x2c] sm:$0xf]
    %v1275 = vld [vmem:[%s1 + $0x30] sm:$0xf]
    %v1276 = vld [vmem:[%s1 + $0x34] sm:$0xf]
    %v1277 = vld [vmem:[%s1 + $0x38] sm:$0xf]
    %v1278 = vld [vmem:[%s1 + $0x3c] sm:$0xf]
    %v1279 = vld [vmem:[%s1 + $0x40] sm:$0xf]
    %v1280 = vld [vmem:[%s1 + $0x44] sm:$0xf]
    %v1281 = vld [vmem:[%s1 + $0x48] sm:$0xf]
    %v1282 = vld [vmem:[%s1 + $0x4c] sm:$0xf]
    %v1283 = vld [vmem:[%s1 + $0x50] sm:$0xf]
    %v1284 = vld [vmem:[%s1 + $0x54] sm:$0xf]
    %v1285 = vld [vmem:[%s1 + $0x58] sm:$0xf]
    %v1286 = vld [vmem:[%s1 + $0x5c] sm:$0xf]
    %v1287 = vld [vmem:[%s1 + $0x60] sm:$0xf]
    %v1288 = vld [vmem:[%s1 + $0x64] sm:$0xf]
    %v1289 = vld [vmem:[%s1 + $0x68] sm:$0xf]
    %v1290 = vld [vmem:[%s1 + $0x6c] sm:$0xf]
    %v1291 = vld [vmem:[%s1 + $0x70] sm:$0xf]
    %v1292 = vld [vmem:[%s1 + $0x74] sm:$0xf]
    %v1293 = vld [vmem:[%s1 + $0x78] sm:$0xf]
    %v1294 = vld [vmem:[%s1 + $0x7c] sm:$0xf]
    %v1295 = vld [vmem:[%s1 + $0x80] sm:$0xf]
    %v1296 = vld [vmem:[%s1 + $0x84] sm:$0xf]
    %v1297 = vld [vmem:[%s1 + $0x88] sm:$0xf]
    %v1298 = vld [vmem:[%s1 + $0x8c] sm:$0xf]
    %v1299 = vld [vmem:[%s1 + $0x90] sm:$0xf]
    %v1300 = vld [vmem:[%s1 + $0x94] sm:$0xf]
    %v1301 = vld [vmem:[%s1 + $0x98] sm:$0xf]
    %v1302 = vld [vmem:[%s1 + $0x9c] sm:$0xf]
    %v1303 = vld [vmem:[%s1 + $0xa0] sm:$0xf]
    %v1304 = vld [vmem:[%s1 + $0xa4] sm:$0xf]
    %v1305 = vld [vmem:[%s1 + $0xa8] sm:$0xf]
    %v1306 = vld [vmem:[%s1 + $0xac] sm:$0xf]
    %v1307 = vld [vmem:[%s1 + $0xb0] sm:$0xf]
    %v1308 = vld [vmem:[%s1 + $0xb4] sm:$0xf]
    %v1309 = vld [vmem:[%s1 + $0xb8] sm:$0xf]
    %v1310 = vld [vmem:[%s1 + $0xbc] sm:$0xf]
    %v1311 = vld [vmem:[%s1 + $0xc0] sm:$0xf]
    %v1312 = vld [vmem:[%s1 + $0xc4] sm:$0xf]
    %v1313 = vld [vmem:[%s1 + $0xc8] sm:$0xf]
    %v1314 = vld [vmem:[%s1 + $0xcc] sm:$0xf]
    %v1315 = vld [vmem:[%s1 + $0xd0] sm:$0xf]
    %v1316 = vld [vmem:[%s1 + $0xd4] sm:$0xf]
    %v1317 = vld [vmem:[%s1 + $0xd8] sm:$0xf]
    %v1318 = vld [vmem:[%s1 + $0xdc] sm:$0xf]
    %v1319 = vld [vmem:[%s1 + $0xe0] sm:$0xf]
    %v1320 = vld [vmem:[%s1 + $0xe4] sm:$0xf]
    %v1321 = vld [vmem:[%s1 + $0xe8] sm:$0xf]
    %v1322 = vld [vmem:[%s1 + $0xec] sm:$0xf]
    %v1323 = vld [vmem:[%s1 + $0xf0] sm:$0xf]
    %v1324 = vld [vmem:[%s1 + $0xf4] sm:$0xf]
    %v1325 = vld [vmem:[%s1 + $0xf8] sm:$0xf]
    %v1326 = vld [vmem:[%s1 + $0xfc] sm:$0xf]
    %v1327 = vpack.c.bf16 %v1248, %v1247
    %v1328 = vpack.c.bf16 %v1250, %v1249
    %v1329 = vpack.c.bf16 %v1252, %v1251
    %v1330 = vpack.c.bf16 %v1254, %v1253
    %v1331 = vpack.c.bf16 %v1256, %v1255
    %v1332 = vpack.c.bf16 %v1258, %v1257
    %v1333 = vpack.c.bf16 %v1260, %v1259
    %v1334 = vpack.c.bf16 %v1262, %v1261
    %v1399 = vunpack.c.l.b16 %v1263
    %v1400 = vunpack.c.l.b16 %v1264
    %v1401 = vunpack.c.l.b16 %v1265
    %v1402 = vunpack.c.l.b16 %v1266
    %v1403 = vunpack.c.l.b16 %v1267
    %v1404 = vunpack.c.l.b16 %v1268
    %v1405 = vunpack.c.l.b16 %v1269
    %v1406 = vunpack.c.l.b16 %v1270
    %v1407 = vunpack.c.l.b16 %v1271
    %v1408 = vunpack.c.l.b16 %v1272
    %v1409 = vunpack.c.l.b16 %v1273
    %v1410 = vunpack.c.l.b16 %v1274
    %v1411 = vunpack.c.l.b16 %v1275
    %v1412 = vunpack.c.l.b16 %v1276
    %v1413 = vunpack.c.l.b16 %v1277
    %v1414 = vunpack.c.l.b16 %v1278
    %v1415 = vunpack.c.l.b16 %v1279
    %v1416 = vunpack.c.l.b16 %v1280
    %v1417 = vunpack.c.l.b16 %v1281
    %v1418 = vunpack.c.l.b16 %v1282
    %v1419 = vunpack.c.l.b16 %v1283
    %v1420 = vunpack.c.l.b16 %v1284
    %v1421 = vunpack.c.l.b16 %v1285
    %v1422 = vunpack.c.l.b16 %v1286
    %v1423 = vunpack.c.l.b16 %v1287
    %v1424 = vunpack.c.l.b16 %v1288
    %v1425 = vunpack.c.l.b16 %v1289
    %v1426 = vunpack.c.l.b16 %v1290
    %v1427 = vunpack.c.l.b16 %v1291
    %v1428 = vunpack.c.l.b16 %v1292
    %v1429 = vunpack.c.l.b16 %v1293
    %v1430 = vunpack.c.l.b16 %v1294
    %v1431 = vunpack.c.l.b16 %v1295
    %v1432 = vunpack.c.l.b16 %v1296
    %v1433 = vunpack.c.l.b16 %v1297
    %v1434 = vunpack.c.l.b16 %v1298
    %v1435 = vunpack.c.l.b16 %v1299
    %v1436 = vunpack.c.l.b16 %v1300
    %v1437 = vunpack.c.l.b16 %v1301
    %v1438 = vunpack.c.l.b16 %v1302
    %v1439 = vunpack.c.l.b16 %v1303
    %v1440 = vunpack.c.l.b16 %v1304
    %v1441 = vunpack.c.l.b16 %v1305
    %v1442 = vunpack.c.l.b16 %v1306
    %v1443 = vunpack.c.l.b16 %v1307
    %v1444 = vunpack.c.l.b16 %v1308
    %v1445 = vunpack.c.l.b16 %v1309
    %v1446 = vunpack.c.l.b16 %v1310
    %v1447 = vunpack.c.l.b16 %v1311
    %v1448 = vunpack.c.l.b16 %v1312
    %v1449 = vunpack.c.l.b16 %v1313
    %v1450 = vunpack.c.l.b16 %v1314
    %v1451 = vunpack.c.l.b16 %v1315
    %v1452 = vunpack.c.l.b16 %v1316
    %v1453 = vunpack.c.l.b16 %v1317
    %v1454 = vunpack.c.l.b16 %v1318
    %v1455 = vunpack.c.l.b16 %v1319
    %v1456 = vunpack.c.l.b16 %v1320
    %v1457 = vunpack.c.l.b16 %v1321
    %v1458 = vunpack.c.l.b16 %v1322
    %v1459 = vunpack.c.l.b16 %v1323
    %v1460 = vunpack.c.l.b16 %v1324
    %v1461 = vunpack.c.l.b16 %v1325
    %v1462 = vunpack.c.l.b16 %v1326
    %v1463 = vpack.c.b16 %v1400, %v1399
    %v1464 = vpack.c.b16 %v1402, %v1401
    %v1465 = vpack.c.b16 %v1404, %v1403
    %v1466 = vpack.c.b16 %v1406, %v1405
    %v1467 = vpack.c.b16 %v1408, %v1407
    %v1468 = vpack.c.b16 %v1410, %v1409
    %v1469 = vpack.c.b16 %v1412, %v1411
    %v1470 = vpack.c.b16 %v1414, %v1413
    %v1471 = vpack.c.b16 %v1416, %v1415
    %v1472 = vpack.c.b16 %v1418, %v1417
    %v1473 = vpack.c.b16 %v1420, %v1419
    %v1474 = vpack.c.b16 %v1422, %v1421
    %v1475 = vpack.c.b16 %v1424, %v1423
    %v1476 = vpack.c.b16 %v1426, %v1425
    %v1477 = vpack.c.b16 %v1428, %v1427
    %v1478 = vpack.c.b16 %v1430, %v1429
    %v1479 = vpack.c.b16 %v1432, %v1431
    %v1480 = vpack.c.b16 %v1434, %v1433
    %v1481 = vpack.c.b16 %v1436, %v1435
    %v1482 = vpack.c.b16 %v1438, %v1437
    %v1483 = vpack.c.b16 %v1440, %v1439
    %v1484 = vpack.c.b16 %v1442, %v1441
    %v1485 = vpack.c.b16 %v1444, %v1443
    %v1486 = vpack.c.b16 %v1446, %v1445
    %v1487 = vpack.c.b16 %v1448, %v1447
    %v1488 = vpack.c.b16 %v1450, %v1449
    %v1489 = vpack.c.b16 %v1452, %v1451
    %v1490 = vpack.c.b16 %v1454, %v1453
    %v1491 = vpack.c.b16 %v1456, %v1455
    %v1492 = vpack.c.b16 %v1458, %v1457
    %v1493 = vpack.c.b16 %v1460, %v1459
    %v1494 = vpack.c.b16 %v1462, %v1461
    %1527 = vmatpush.bf16.msra.mxu0 %v1334
    %1528 = vmatpush.bf16.msra.mxu0 %v1333
    %1529 = vmatpush.bf16.msra.mxu0 %v1332
    %1530 = vmatpush.bf16.msra.mxu0 %v1331
    %1531 = vmatpush.bf16.msra.mxu0 %v1330
    %1532 = vmatpush.bf16.msra.mxu0 %v1329
    %1533 = vmatpush.bf16.msra.mxu0 %v1328
    %1534 = vmatpush.bf16.msra.mxu0 %v1327
    %1535 = vmatmul.bf16.gmra.mxu0 %v1463
    %v1536 = vpop.f32.mrf.mxu0
    %v1537 = vadd.f32 0.0, %v1536
    %v1538 = vpop.f32.mrf.mxu0
    %v1539 = vadd.f32 0.0, %v1538
    %1540 = vmatmul.bf16.gmra.mxu0 %v1464
    %v1541 = vpop.f32.mrf.mxu0
    %v1542 = vadd.f32 0.0, %v1541
    %v1543 = vpop.f32.mrf.mxu0
    %v1544 = vadd.f32 0.0, %v1543
    %1545 = vmatmul.bf16.gmra.mxu0 %v1465
    %v1546 = vpop.f32.mrf.mxu0
    %v1547 = vadd.f32 0.0, %v1546
    %v1548 = vpop.f32.mrf.mxu0
    %v1549 = vadd.f32 0.0, %v1548
    %1550 = vmatmul.bf16.gmra.mxu0 %v1466
    %v1551 = vpop.f32.mrf.mxu0
    %v1552 = vadd.f32 0.0, %v1551
    %v1553 = vpop.f32.mrf.mxu0
    %v1554 = vadd.f32 0.0, %v1553
    %1555 = vmatmul.bf16.gmra.mxu0 %v1467
    %v1556 = vpop.f32.mrf.mxu0
    %v1557 = vadd.f32 0.0, %v1556
    %v1558 = vpop.f32.mrf.mxu0
    %v1559 = vadd.f32 0.0, %v1558
    %1560 = vmatmul.bf16.gmra.mxu0 %v1468
    %v1561 = vpop.f32.mrf.mxu0
    %v1562 = vadd.f32 0.0, %v1561
    %v1563 = vpop.f32.mrf.mxu0
    %v1564 = vadd.f32 0.0, %v1563
    %1565 = vmatmul.bf16.gmra.mxu0 %v1469
    %v1566 = vpop.f32.mrf.mxu0
    %v1567 = vadd.f32 0.0, %v1566
    %v1568 = vpop.f32.mrf.mxu0
    %v1569 = vadd.f32 0.0, %v1568
    %1570 = vmatmul.bf16.gmra.mxu0 %v1470
    %v1571 = vpop.f32.mrf.mxu0
    %v1572 = vadd.f32 0.0, %v1571
    %v1573 = vpop.f32.mrf.mxu0
    %v1574 = vadd.f32 0.0, %v1573
    %1575 = vmatmul.bf16.gmra.mxu0 %v1471
    %v1576 = vpop.f32.mrf.mxu0
    %v1577 = vadd.f32 0.0, %v1576
    %v1578 = vpop.f32.mrf.mxu0
    %v1579 = vadd.f32 0.0, %v1578
    %1580 = vmatmul.bf16.gmra.mxu0 %v1472
    %v1581 = vpop.f32.mrf.mxu0
    %v1582 = vadd.f32 0.0, %v1581
    %v1583 = vpop.f32.mrf.mxu0
    %v1584 = vadd.f32 0.0, %v1583
    %1585 = vmatmul.bf16.gmra.mxu0 %v1473
    %v1586 = vpop.f32.mrf.mxu0
    %v1587 = vadd.f32 0.0, %v1586
    %v1588 = vpop.f32.mrf.mxu0
    %v1589 = vadd.f32 0.0, %v1588
    %1590 = vmatmul.bf16.gmra.mxu0 %v1474
    %v1591 = vpop.f32.mrf.mxu0
    %v1592 = vadd.f32 0.0, %v1591
    %v1593 = vpop.f32.mrf.mxu0
    %v1594 = vadd.f32 0.0, %v1593
    %1595 = vmatmul.bf16.gmra.mxu0 %v1475
    %v1596 = vpop.f32.mrf.mxu0
    %v1597 = vadd.f32 0.0, %v1596
    %v1598 = vpop.f32.mrf.mxu0
    %v1599 = vadd.f32 0.0, %v1598
    %1600 = vmatmul.bf16.gmra.mxu0 %v1476
    %v1601 = vpop.f32.mrf.mxu0
    %v1602 = vadd.f32 0.0, %v1601
    %v1603 = vpop.f32.mrf.mxu0
    %v1604 = vadd.f32 0.0, %v1603
    %1605 = vmatmul.bf16.gmra.mxu0 %v1477
    %v1606 = vpop.f32.mrf.mxu0
    %v1607 = vadd.f32 0.0, %v1606
    %v1608 = vpop.f32.mrf.mxu0
    %v1609 = vadd.f32 0.0, %v1608
    %1610 = vmatmul.bf16.gmra.mxu0 %v1478
    %v1611 = vpop.f32.mrf.mxu0
    %v1612 = vadd.f32 0.0, %v1611
    %v1613 = vpop.f32.mrf.mxu0
    %v1614 = vadd.f32 0.0, %v1613
    %1615 = vmatmul.bf16.gmra.mxu0 %v1479
    %v1616 = vpop.f32.mrf.mxu0
    %v1617 = vadd.f32 0.0, %v1616
    %v1618 = vpop.f32.mrf.mxu0
    %v1619 = vadd.f32 0.0, %v1618
    %1620 = vmatmul.bf16.gmra.mxu0 %v1480
    %v1621 = vpop.f32.mrf.mxu0
    %v1622 = vadd.f32 0.0, %v1621
    %v1623 = vpop.f32.mrf.mxu0
    %v1624 = vadd.f32 0.0, %v1623
    %1625 = vmatmul.bf16.gmra.mxu0 %v1481
    %v1626 = vpop.f32.mrf.mxu0
    %v1627 = vadd.f32 0.0, %v1626
    %v1628 = vpop.f32.mrf.mxu0
    %v1629 = vadd.f32 0.0, %v1628
    %1630 = vmatmul.bf16.gmra.mxu0 %v1482
    %v1631 = vpop.f32.mrf.mxu0
    %v1632 = vadd.f32 0.0, %v1631
    %v1633 = vpop.f32.mrf.mxu0
    %v1634 = vadd.f32 0.0, %v1633
    %1635 = vmatmul.bf16.gmra.mxu0 %v1483
    %v1636 = vpop.f32.mrf.mxu0
    %v1637 = vadd.f32 0.0, %v1636
    %v1638 = vpop.f32.mrf.mxu0
    %v1639 = vadd.f32 0.0, %v1638
    %1640 = vmatmul.bf16.gmra.mxu0 %v1484
    %v1641 = vpop.f32.mrf.mxu0
    %v1642 = vadd.f32 0.0, %v1641
    %v1643 = vpop.f32.mrf.mxu0
    %v1644 = vadd.f32 0.0, %v1643
    %1645 = vmatmul.bf16.gmra.mxu0 %v1485
    %v1646 = vpop.f32.mrf.mxu0
    %v1647 = vadd.f32 0.0, %v1646
    %v1648 = vpop.f32.mrf.mxu0
    %v1649 = vadd.f32 0.0, %v1648
    %1650 = vmatmul.bf16.gmra.mxu0 %v1486
    %v1651 = vpop.f32.mrf.mxu0
    %v1652 = vadd.f32 0.0, %v1651
    %v1653 = vpop.f32.mrf.mxu0
    %v1654 = vadd.f32 0.0, %v1653
    %1655 = vmatmul.bf16.gmra.mxu0 %v1487
    %v1656 = vpop.f32.mrf.mxu0
    %v1657 = vadd.f32 0.0, %v1656
    %v1658 = vpop.f32.mrf.mxu0
    %v1659 = vadd.f32 0.0, %v1658
    %1660 = vmatmul.bf16.gmra.mxu0 %v1488
    %v1661 = vpop.f32.mrf.mxu0
    %v1662 = vadd.f32 0.0, %v1661
    %v1663 = vpop.f32.mrf.mxu0
    %v1664 = vadd.f32 0.0, %v1663
    %1665 = vmatmul.bf16.gmra.mxu0 %v1489
    %v1666 = vpop.f32.mrf.mxu0
    %v1667 = vadd.f32 0.0, %v1666
    %v1668 = vpop.f32.mrf.mxu0
    %v1669 = vadd.f32 0.0, %v1668
    %1670 = vmatmul.bf16.gmra.mxu0 %v1490
    %v1671 = vpop.f32.mrf.mxu0
    %v1672 = vadd.f32 0.0, %v1671
    %v1673 = vpop.f32.mrf.mxu0
    %v1674 = vadd.f32 0.0, %v1673
    %1675 = vmatmul.bf16.gmra.mxu0 %v1491
    %v1676 = vpop.f32.mrf.mxu0
    %v1677 = vadd.f32 0.0, %v1676
    %v1678 = vpop.f32.mrf.mxu0
    %v1679 = vadd.f32 0.0, %v1678
    %1680 = vmatmul.bf16.gmra.mxu0 %v1492
    %v1681 = vpop.f32.mrf.mxu0
    %v1682 = vadd.f32 0.0, %v1681
    %v1683 = vpop.f32.mrf.mxu0
    %v1684 = vadd.f32 0.0, %v1683
    %1685 = vmatmul.bf16.gmra.mxu0 %v1493
    %v1686 = vpop.f32.mrf.mxu0
    %v1687 = vadd.f32 0.0, %v1686
    %v1688 = vpop.f32.mrf.mxu0
    %v1689 = vadd.f32 0.0, %v1688
    %1690 = vmatmul.bf16.gmra.mxu0 %v1494
    %v1691 = vpop.f32.mrf.mxu0
    %v1692 = vadd.f32 0.0, %v1691
    %v1693 = vpop.f32.mrf.mxu0
    %v1694 = vadd.f32 0.0, %v1693
    %1695 = vdwg.mxu0
    %v1696 = vpack.c.bf16 %v1537, %v1537
    %v1697 = vpack.c.bf16 %v1539, %v1539
    %v1698 = vpack.c.bf16 %v1542, %v1542
    %v1699 = vpack.c.bf16 %v1544, %v1544
    %v1700 = vpack.c.bf16 %v1547, %v1547
    %v1701 = vpack.c.bf16 %v1549, %v1549
    %v1702 = vpack.c.bf16 %v1552, %v1552
    %v1703 = vpack.c.bf16 %v1554, %v1554
    %v1704 = vpack.c.bf16 %v1557, %v1557
    %v1705 = vpack.c.bf16 %v1559, %v1559
    %v1706 = vpack.c.bf16 %v1562, %v1562
    %v1707 = vpack.c.bf16 %v1564, %v1564
    %v1708 = vpack.c.bf16 %v1567, %v1567
    %v1709 = vpack.c.bf16 %v1569, %v1569
    %v1710 = vpack.c.bf16 %v1572, %v1572
    %v1711 = vpack.c.bf16 %v1574, %v1574
    %v1712 = vpack.c.bf16 %v1577, %v1577
    %v1713 = vpack.c.bf16 %v1579, %v1579
    %v1714 = vpack.c.bf16 %v1582, %v1582
    %v1715 = vpack.c.bf16 %v1584, %v1584
    %v1716 = vpack.c.bf16 %v1587, %v1587
    %v1717 = vpack.c.bf16 %v1589, %v1589
    %v1718 = vpack.c.bf16 %v1592, %v1592
    %v1719 = vpack.c.bf16 %v1594, %v1594
    %v1720 = vpack.c.bf16 %v1597, %v1597
    %v1721 = vpack.c.bf16 %v1599, %v1599
    %v1722 = vpack.c.bf16 %v1602, %v1602
    %v1723 = vpack.c.bf16 %v1604, %v1604
    %v1724 = vpack.c.bf16 %v1607, %v1607
    %v1725 = vpack.c.bf16 %v1609, %v1609
    %v1726 = vpack.c.bf16 %v1612, %v1612
    %v1727 = vpack.c.bf16 %v1614, %v1614
    %v1728 = vpack.c.bf16 %v1617, %v1617
    %v1729 = vpack.c.bf16 %v1619, %v1619
    %v1730 = vpack.c.bf16 %v1622, %v1622
    %v1731 = vpack.c.bf16 %v1624, %v1624
    %v1732 = vpack.c.bf16 %v1627, %v1627
    %v1733 = vpack.c.bf16 %v1629, %v1629
    %v1734 = vpack.c.bf16 %v1632, %v1632
    %v1735 = vpack.c.bf16 %v1634, %v1634
    %v1736 = vpack.c.bf16 %v1637, %v1637
    %v1737 = vpack.c.bf16 %v1639, %v1639
    %v1738 = vpack.c.bf16 %v1642, %v1642
    %v1739 = vpack.c.bf16 %v1644, %v1644
    %v1740 = vpack.c.bf16 %v1647, %v1647
    %v1741 = vpack.c.bf16 %v1649, %v1649
    %v1742 = vpack.c.bf16 %v1652, %v1652
    %v1743 = vpack.c.bf16 %v1654, %v1654
    %v1744 = vpack.c.bf16 %v1657, %v1657
    %v1745 = vpack.c.bf16 %v1659, %v1659
    %v1746 = vpack.c.bf16 %v1662, %v1662
    %v1747 = vpack.c.bf16 %v1664, %v1664
    %v1748 = vpack.c.bf16 %v1667, %v1667
    %v1749 = vpack.c.bf16 %v1669, %v1669
    %v1750 = vpack.c.bf16 %v1672, %v1672
    %v1751 = vpack.c.bf16 %v1674, %v1674
    %v1752 = vpack.c.bf16 %v1677, %v1677
    %v1753 = vpack.c.bf16 %v1679, %v1679
    %v1754 = vpack.c.bf16 %v1682, %v1682
    %v1755 = vpack.c.bf16 %v1684, %v1684
    %v1756 = vpack.c.bf16 %v1687, %v1687
    %v1757 = vpack.c.bf16 %v1689, %v1689
    %v1758 = vpack.c.bf16 %v1692, %v1692
    %v1759 = vpack.c.bf16 %v1694, %v1694
    %v1824 = vunpack.c.l.b16 %v1696
    %v1825 = vunpack.c.l.b16 %v1697
    %v1826 = vunpack.c.l.b16 %v1698
    %v1827 = vunpack.c.l.b16 %v1699
    %v1828 = vunpack.c.l.b16 %v1700
    %v1829 = vunpack.c.l.b16 %v1701
    %v1830 = vunpack.c.l.b16 %v1702
    %v1831 = vunpack.c.l.b16 %v1703
    %v1832 = vunpack.c.l.b16 %v1704
    %v1833 = vunpack.c.l.b16 %v1705
    %v1834 = vunpack.c.l.b16 %v1706
    %v1835 = vunpack.c.l.b16 %v1707
    %v1836 = vunpack.c.l.b16 %v1708
    %v1837 = vunpack.c.l.b16 %v1709
    %v1838 = vunpack.c.l.b16 %v1710
    %v1839 = vunpack.c.l.b16 %v1711
    %v1840 = vunpack.c.l.b16 %v1712
    %v1841 = vunpack.c.l.b16 %v1713
    %v1842 = vunpack.c.l.b16 %v1714
    %v1843 = vunpack.c.l.b16 %v1715
    %v1844 = vunpack.c.l.b16 %v1716
    %v1845 = vunpack.c.l.b16 %v1717
    %v1846 = vunpack.c.l.b16 %v1718
    %v1847 = vunpack.c.l.b16 %v1719
    %v1848 = vunpack.c.l.b16 %v1720
    %v1849 = vunpack.c.l.b16 %v1721
    %v1850 = vunpack.c.l.b16 %v1722
    %v1851 = vunpack.c.l.b16 %v1723
    %v1852 = vunpack.c.l.b16 %v1724
    %v1853 = vunpack.c.l.b16 %v1725
    %v1854 = vunpack.c.l.b16 %v1726
    %v1855 = vunpack.c.l.b16 %v1727
    %v1856 = vunpack.c.l.b16 %v1728
    %v1857 = vunpack.c.l.b16 %v1729
    %v1858 = vunpack.c.l.b16 %v1730
    %v1859 = vunpack.c.l.b16 %v1731
    %v1860 = vunpack.c.l.b16 %v1732
    %v1861 = vunpack.c.l.b16 %v1733
    %v1862 = vunpack.c.l.b16 %v1734
    %v1863 = vunpack.c.l.b16 %v1735
    %v1864 = vunpack.c.l.b16 %v1736
    %v1865 = vunpack.c.l.b16 %v1737
    %v1866 = vunpack.c.l.b16 %v1738
    %v1867 = vunpack.c.l.b16 %v1739
    %v1868 = vunpack.c.l.b16 %v1740
    %v1869 = vunpack.c.l.b16 %v1741
    %v1870 = vunpack.c.l.b16 %v1742
    %v1871 = vunpack.c.l.b16 %v1743
    %v1872 = vunpack.c.l.b16 %v1744
    %v1873 = vunpack.c.l.b16 %v1745
    %v1874 = vunpack.c.l.b16 %v1746
    %v1875 = vunpack.c.l.b16 %v1747
    %v1876 = vunpack.c.l.b16 %v1748
    %v1877 = vunpack.c.l.b16 %v1749
    %v1878 = vunpack.c.l.b16 %v1750
    %v1879 = vunpack.c.l.b16 %v1751
    %v1880 = vunpack.c.l.b16 %v1752
    %v1881 = vunpack.c.l.b16 %v1753
    %v1882 = vunpack.c.l.b16 %v1754
    %v1883 = vunpack.c.l.b16 %v1755
    %v1884 = vunpack.c.l.b16 %v1756
    %v1885 = vunpack.c.l.b16 %v1757
    %v1886 = vunpack.c.l.b16 %v1758
    %v1887 = vunpack.c.l.b16 %v1759
    %v1888 = vpack.c.b16 %v1825, %v1824
    %v1889 = vpack.c.b16 %v1827, %v1826
    %v1890 = vpack.c.b16 %v1829, %v1828
    %v1891 = vpack.c.b16 %v1831, %v1830
    %v1892 = vpack.c.b16 %v1833, %v1832
    %v1893 = vpack.c.b16 %v1835, %v1834
    %v1894 = vpack.c.b16 %v1837, %v1836
    %v1895 = vpack.c.b16 %v1839, %v1838
    %v1896 = vpack.c.b16 %v1841, %v1840
    %v1897 = vpack.c.b16 %v1843, %v1842
    %v1898 = vpack.c.b16 %v1845, %v1844
    %v1899 = vpack.c.b16 %v1847, %v1846
    %v1900 = vpack.c.b16 %v1849, %v1848
    %v1901 = vpack.c.b16 %v1851, %v1850
    %v1902 = vpack.c.b16 %v1853, %v1852
    %v1903 = vpack.c.b16 %v1855, %v1854
    %v1904 = vpack.c.b16 %v1857, %v1856
    %v1905 = vpack.c.b16 %v1859, %v1858
    %v1906 = vpack.c.b16 %v1861, %v1860
    %v1907 = vpack.c.b16 %v1863, %v1862
    %v1908 = vpack.c.b16 %v1865, %v1864
    %v1909 = vpack.c.b16 %v1867, %v1866
    %v1910 = vpack.c.b16 %v1869, %v1868
    %v1911 = vpack.c.b16 %v1871, %v1870
    %v1912 = vpack.c.b16 %v1873, %v1872
    %v1913 = vpack.c.b16 %v1875, %v1874
    %v1914 = vpack.c.b16 %v1877, %v1876
    %v1915 = vpack.c.b16 %v1879, %v1878
    %v1916 = vpack.c.b16 %v1881, %v1880
    %v1917 = vpack.c.b16 %v1883, %v1882
    %v1918 = vpack.c.b16 %v1885, %v1884
    %v1919 = vpack.c.b16 %v1887, %v1886
    %v1921 = vshrl.u32 %v1888, 16
    %v1923 = vrot.slane %v1921, 7
    %v1924 = vshll.u32 %v1888, 16
    %v1926 = vor.u32 %v1923, %v1924
    %v1928 = vshrl.u32 %v1889, 16
    %v1930 = vrot.slane %v1928, 7
    %v1931 = vshll.u32 %v1889, 16
    %v1933 = vor.u32 %v1930, %v1931
    %v1935 = vshrl.u32 %v1890, 16
    %v1937 = vrot.slane %v1935, 7
    %v1938 = vshll.u32 %v1890, 16
    %v1940 = vor.u32 %v1937, %v1938
    %v1942 = vshrl.u32 %v1891, 16
    %v1944 = vrot.slane %v1942, 7
    %v1945 = vshll.u32 %v1891, 16
    %v1947 = vor.u32 %v1944, %v1945
    %v1949 = vshrl.u32 %v1892, 16
    %v1951 = vrot.slane %v1949, 7
    %v1952 = vshll.u32 %v1892, 16
    %v1954 = vor.u32 %v1951, %v1952
    %v1956 = vshrl.u32 %v1893, 16
    %v1958 = vrot.slane %v1956, 7
    %v1959 = vshll.u32 %v1893, 16
    %v1961 = vor.u32 %v1958, %v1959
    %v1963 = vshrl.u32 %v1894, 16
    %v1965 = vrot.slane %v1963, 7
    %v1966 = vshll.u32 %v1894, 16
    %v1968 = vor.u32 %v1965, %v1966
    %v1970 = vshrl.u32 %v1895, 16
    %v1972 = vrot.slane %v1970, 7
    %v1973 = vshll.u32 %v1895, 16
    %v1975 = vor.u32 %v1972, %v1973
    %v1977 = vshrl.u32 %v1896, 16
    %v1979 = vrot.slane %v1977, 7
    %v1980 = vshll.u32 %v1896, 16
    %v1982 = vor.u32 %v1979, %v1980
    %v1984 = vshrl.u32 %v1897, 16
    %v1986 = vrot.slane %v1984, 7
    %v1987 = vshll.u32 %v1897, 16
    %v1989 = vor.u32 %v1986, %v1987
    %v1991 = vshrl.u32 %v1898, 16
    %v1993 = vrot.slane %v1991, 7
    %v1994 = vshll.u32 %v1898, 16
    %v1996 = vor.u32 %v1993, %v1994
    %v1998 = vshrl.u32 %v1899, 16
    %v2000 = vrot.slane %v1998, 7
    %v2001 = vshll.u32 %v1899, 16
    %v2003 = vor.u32 %v2000, %v2001
    %v2005 = vshrl.u32 %v1900, 16
    %v2007 = vrot.slane %v2005, 7
    %v2008 = vshll.u32 %v1900, 16
    %v2010 = vor.u32 %v2007, %v2008
    %v2012 = vshrl.u32 %v1901, 16
    %v2014 = vrot.slane %v2012, 7
    %v2015 = vshll.u32 %v1901, 16
    %v2017 = vor.u32 %v2014, %v2015
    %v2019 = vshrl.u32 %v1902, 16
    %v2021 = vrot.slane %v2019, 7
    %v2022 = vshll.u32 %v1902, 16
    %v2024 = vor.u32 %v2021, %v2022
    %v2026 = vshrl.u32 %v1903, 16
    %v2028 = vrot.slane %v2026, 7
    %v2029 = vshll.u32 %v1903, 16
    %v2031 = vor.u32 %v2028, %v2029
    %v2033 = vshrl.u32 %v1904, 16
    %v2035 = vrot.slane %v2033, 7
    %v2036 = vshll.u32 %v1904, 16
    %v2038 = vor.u32 %v2035, %v2036
    %v2040 = vshrl.u32 %v1905, 16
    %v2042 = vrot.slane %v2040, 7
    %v2043 = vshll.u32 %v1905, 16
    %v2045 = vor.u32 %v2042, %v2043
    %v2047 = vshrl.u32 %v1906, 16
    %v2049 = vrot.slane %v2047, 7
    %v2050 = vshll.u32 %v1906, 16
    %v2052 = vor.u32 %v2049, %v2050
    %v2054 = vshrl.u32 %v1907, 16
    %v2056 = vrot.slane %v2054, 7
    %v2057 = vshll.u32 %v1907, 16
    %v2059 = vor.u32 %v2056, %v2057
    %v2061 = vshrl.u32 %v1908, 16
    %v2063 = vrot.slane %v2061, 7
    %v2064 = vshll.u32 %v1908, 16
    %v2066 = vor.u32 %v2063, %v2064
    %v2068 = vshrl.u32 %v1909, 16
    %v2070 = vrot.slane %v2068, 7
    %v2071 = vshll.u32 %v1909, 16
    %v2073 = vor.u32 %v2070, %v2071
    %v2075 = vshrl.u32 %v1910, 16
    %v2077 = vrot.slane %v2075, 7
    %v2078 = vshll.u32 %v1910, 16
    %v2080 = vor.u32 %v2077, %v2078
    %v2082 = vshrl.u32 %v1911, 16
    %v2084 = vrot.slane %v2082, 7
    %v2085 = vshll.u32 %v1911, 16
    %v2087 = vor.u32 %v2084, %v2085
    %v2089 = vshrl.u32 %v1912, 16
    %v2091 = vrot.slane %v2089, 7
    %v2092 = vshll.u32 %v1912, 16
    %v2094 = vor.u32 %v2091, %v2092
    %v2096 = vshrl.u32 %v1913, 16
    %v2098 = vrot.slane %v2096, 7
    %v2099 = vshll.u32 %v1913, 16
    %v2101 = vor.u32 %v2098, %v2099
    %v2103 = vshrl.u32 %v1914, 16
    %v2105 = vrot.slane %v2103, 7
    %v2106 = vshll.u32 %v1914, 16
    %v2108 = vor.u32 %v2105, %v2106
    %v2110 = vshrl.u32 %v1915, 16
    %v2112 = vrot.slane %v2110, 7
    %v2113 = vshll.u32 %v1915, 16
    %v2115 = vor.u32 %v2112, %v2113
    %v2117 = vshrl.u32 %v1916, 16
    %v2119 = vrot.slane %v2117, 7
    %v2120 = vshll.u32 %v1916, 16
    %v2122 = vor.u32 %v2119, %v2120
    %v2124 = vshrl.u32 %v1917, 16
    %v2126 = vrot.slane %v2124, 7
    %v2127 = vshll.u32 %v1917, 16
    %v2129 = vor.u32 %v2126, %v2127
    %v2131 = vshrl.u32 %v1918, 16
    %v2133 = vrot.slane %v2131, 7
    %v2134 = vshll.u32 %v1918, 16
    %v2136 = vor.u32 %v2133, %v2134
    %v2138 = vshrl.u32 %v1919, 16
    %v2140 = vrot.slane %v2138, 7
    %v2141 = vshll.u32 %v1919, 16
    %v2143 = vor.u32 %v2140, %v2141
    %v2209 = vsel %vm180, 0, %v1926
    %v2210 = vsel %vm180, 0, %v1933
    %v2211 = vsel %vm180, 0, %v1940
    %v2212 = vsel %vm180, 0, %v1947
    %v2213 = vsel %vm180, 0, %v1954
    %v2214 = vsel %vm180, 0, %v1961
    %v2215 = vsel %vm180, 0, %v1968
    %v2216 = vsel %vm180, 0, %v1975
    %v2217 = vsel %vm180, 0, %v1982
    %v2218 = vsel %vm180, 0, %v1989
    %v2219 = vsel %vm180, 0, %v1996
    %v2220 = vsel %vm180, 0, %v2003
    %v2221 = vsel %vm180, 0, %v2010
    %v2222 = vsel %vm180, 0, %v2017
    %v2223 = vsel %vm180, 0, %v2024
    %v2224 = vsel %vm180, 0, %v2031
    %v2225 = vsel %vm180, 0, %v2038
    %v2226 = vsel %vm180, 0, %v2045
    %v2227 = vsel %vm180, 0, %v2052
    %v2228 = vsel %vm180, 0, %v2059
    %v2229 = vsel %vm180, 0, %v2066
    %v2230 = vsel %vm180, 0, %v2073
    %v2231 = vsel %vm180, 0, %v2080
    %v2232 = vsel %vm180, 0, %v2087
    %v2233 = vsel %vm180, 0, %v2094
    %v2234 = vsel %vm180, 0, %v2101
    %v2235 = vsel %vm180, 0, %v2108
    %v2236 = vsel %vm180, 0, %v2115
    %v2237 = vsel %vm180, 0, %v2122
    %v2238 = vsel %vm180, 0, %v2129
    %v2239 = vsel %vm180, 0, %v2136
    %v2240 = vsel %vm180, 0, %v2143
    %v2241 = vsel %vm180, %v45, 0
    %v2242 = vsel %vm180, %v1923, 0
    %v2243 = vsel %vm180, %v1930, 0
    %v2244 = vsel %vm180, %v1937, 0
    %v2245 = vsel %vm180, %v1944, 0
    %v2246 = vsel %vm180, %v1951, 0
    %v2247 = vsel %vm180, %v1958, 0
    %v2248 = vsel %vm180, %v1965, 0
    %v2249 = vsel %vm180, %v1972, 0
    %v2250 = vsel %vm180, %v1979, 0
    %v2251 = vsel %vm180, %v1986, 0
    %v2252 = vsel %vm180, %v1993, 0
    %v2253 = vsel %vm180, %v2000, 0
    %v2254 = vsel %vm180, %v2007, 0
    %v2255 = vsel %vm180, %v2014, 0
    %v2256 = vsel %vm180, %v2021, 0
    %v2257 = vsel %vm180, %v2028, 0
    %v2258 = vsel %vm180, %v2035, 0
    %v2259 = vsel %vm180, %v2042, 0
    %v2260 = vsel %vm180, %v2049, 0
    %v2261 = vsel %vm180, %v2056, 0
    %v2262 = vsel %vm180, %v2063, 0
    %v2263 = vsel %vm180, %v2070, 0
    %v2264 = vsel %vm180, %v2077, 0
    %v2265 = vsel %vm180, %v2084, 0
    %v2266 = vsel %vm180, %v2091, 0
    %v2267 = vsel %vm180, %v2098, 0
    %v2268 = vsel %vm180, %v2105, 0
    %v2269 = vsel %vm180, %v2112, 0
    %v2270 = vsel %vm180, %v2119, 0
    %v2271 = vsel %vm180, %v2126, 0
    %v2272 = vsel %vm180, %v2133, 0
    %v2273 = vsel %vm180, %v2140, 0
    %vm2274 = vsmask.f32 7424
    %v2276 = vshrl.u32 %v181, 16
    %v2278 = vshll.u32 %v181, 16
    %v2280 = vrot.slane %v2278, 1
    %v2281 = vor.u32 %v2276, %v2280
    %v2283 = vshll.u32 %v2241, 16
    %v2285 = vrot.slane %v2283, 1
    %v2286 = vsel %vm2274, %v2281, %v2285
    %v2288 = vshrl.u32 %v2209, 16
    %v2290 = vshll.u32 %v2209, 16
    %v2292 = vrot.slane %v2290, 1
    %v2293 = vor.u32 %v2288, %v2292
    %v2295 = vshll.u32 %v2242, 16
    %v2297 = vrot.slane %v2295, 1
    %v2298 = vsel %vm2274, %v2293, %v2297
    %v2300 = vshrl.u32 %v2210, 16
    %v2302 = vshll.u32 %v2210, 16
    %v2304 = vrot.slane %v2302, 1
    %v2305 = vor.u32 %v2300, %v2304
    %v2307 = vshll.u32 %v2243, 16
    %v2309 = vrot.slane %v2307, 1
    %v2310 = vsel %vm2274, %v2305, %v2309
    %v2312 = vshrl.u32 %v2211, 16
    %v2314 = vshll.u32 %v2211, 16
    %v2316 = vrot.slane %v2314, 1
    %v2317 = vor.u32 %v2312, %v2316
    %v2319 = vshll.u32 %v2244, 16
    %v2321 = vrot.slane %v2319, 1
    %v2322 = vsel %vm2274, %v2317, %v2321
    %v2324 = vshrl.u32 %v2212, 16
    %v2326 = vshll.u32 %v2212, 16
    %v2328 = vrot.slane %v2326, 1
    %v2329 = vor.u32 %v2324, %v2328
    %v2331 = vshll.u32 %v2245, 16
    %v2333 = vrot.slane %v2331, 1
    %v2334 = vsel %vm2274, %v2329, %v2333
    %v2336 = vshrl.u32 %v2213, 16
    %v2338 = vshll.u32 %v2213, 16
    %v2340 = vrot.slane %v2338, 1
    %v2341 = vor.u32 %v2336, %v2340
    %v2343 = vshll.u32 %v2246, 16
    %v2345 = vrot.slane %v2343, 1
    %v2346 = vsel %vm2274, %v2341, %v2345
    %v2348 = vshrl.u32 %v2214, 16
    %v2350 = vshll.u32 %v2214, 16
    %v2352 = vrot.slane %v2350, 1
    %v2353 = vor.u32 %v2348, %v2352
    %v2355 = vshll.u32 %v2247, 16
    %v2357 = vrot.slane %v2355, 1
    %v2358 = vsel %vm2274, %v2353, %v2357
    %v2360 = vshrl.u32 %v2215, 16
    %v2362 = vshll.u32 %v2215, 16
    %v2364 = vrot.slane %v2362, 1
    %v2365 = vor.u32 %v2360, %v2364
    %v2367 = vshll.u32 %v2248, 16
    %v2369 = vrot.slane %v2367, 1
    %v2370 = vsel %vm2274, %v2365, %v2369
    %v2372 = vshrl.u32 %v2216, 16
    %v2374 = vshll.u32 %v2216, 16
    %v2376 = vrot.slane %v2374, 1
    %v2377 = vor.u32 %v2372, %v2376
    %v2379 = vshll.u32 %v2249, 16
    %v2381 = vrot.slane %v2379, 1
    %v2382 = vsel %vm2274, %v2377, %v2381
    %v2384 = vshrl.u32 %v2217, 16
    %v2386 = vshll.u32 %v2217, 16
    %v2388 = vrot.slane %v2386, 1
    %v2389 = vor.u32 %v2384, %v2388
    %v2391 = vshll.u32 %v2250, 16
    %v2393 = vrot.slane %v2391, 1
    %v2394 = vsel %vm2274, %v2389, %v2393
    %v2396 = vshrl.u32 %v2218, 16
    %v2398 = vshll.u32 %v2218, 16
    %v2400 = vrot.slane %v2398, 1
    %v2401 = vor.u32 %v2396, %v2400
    %v2403 = vshll.u32 %v2251, 16
    %v2405 = vrot.slane %v2403, 1
    %v2406 = vsel %vm2274, %v2401, %v2405
    %v2408 = vshrl.u32 %v2219, 16
    %v2410 = vshll.u32 %v2219, 16
    %v2412 = vrot.slane %v2410, 1
    %v2413 = vor.u32 %v2408, %v2412
    %v2415 = vshll.u32 %v2252, 16
    %v2417 = vrot.slane %v2415, 1
    %v2418 = vsel %vm2274, %v2413, %v2417
    %v2420 = vshrl.u32 %v2220, 16
    %v2422 = vshll.u32 %v2220, 16
    %v2424 = vrot.slane %v2422, 1
    %v2425 = vor.u32 %v2420, %v2424
    %v2427 = vshll.u32 %v2253, 16
    %v2429 = vrot.slane %v2427, 1
    %v2430 = vsel %vm2274, %v2425, %v2429
    %v2432 = vshrl.u32 %v2221, 16
    %v2434 = vshll.u32 %v2221, 16
    %v2436 = vrot.slane %v2434, 1
    %v2437 = vor.u32 %v2432, %v2436
    %v2439 = vshll.u32 %v2254, 16
    %v2441 = vrot.slane %v2439, 1
    %v2442 = vsel %vm2274, %v2437, %v2441
    %v2444 = vshrl.u32 %v2222, 16
    %v2446 = vshll.u32 %v2222, 16
    %v2448 = vrot.slane %v2446, 1
    %v2449 = vor.u32 %v2444, %v2448
    %v2451 = vshll.u32 %v2255, 16
    %v2453 = vrot.slane %v2451, 1
    %v2454 = vsel %vm2274, %v2449, %v2453
    %v2456 = vshrl.u32 %v2223, 16
    %v2458 = vshll.u32 %v2223, 16
    %v2460 = vrot.slane %v2458, 1
    %v2461 = vor.u32 %v2456, %v2460
    %v2463 = vshll.u32 %v2256, 16
    %v2465 = vrot.slane %v2463, 1
    %v2466 = vsel %vm2274, %v2461, %v2465
    %v2468 = vshrl.u32 %v2225, 16
    %v2470 = vshll.u32 %v2225, 16
    %v2472 = vrot.slane %v2470, 1
    %v2473 = vor.u32 %v2468, %v2472
    %v2475 = vshll.u32 %v2258, 16
    %v2477 = vrot.slane %v2475, 1
    %v2478 = vsel %vm2274, %v2473, %v2477
    %v2480 = vshrl.u32 %v2226, 16
    %v2482 = vshll.u32 %v2226, 16
    %v2484 = vrot.slane %v2482, 1
    %v2485 = vor.u32 %v2480, %v2484
    %v2487 = vshll.u32 %v2259, 16
    %v2489 = vrot.slane %v2487, 1
    %v2490 = vsel %vm2274, %v2485, %v2489
    %v2492 = vshrl.u32 %v2227, 16
    %v2494 = vshll.u32 %v2227, 16
    %v2496 = vrot.slane %v2494, 1
    %v2497 = vor.u32 %v2492, %v2496
    %v2499 = vshll.u32 %v2260, 16
    %v2501 = vrot.slane %v2499, 1
    %v2502 = vsel %vm2274, %v2497, %v2501
    %v2504 = vshrl.u32 %v2228, 16
    %v2506 = vshll.u32 %v2228, 16
    %v2508 = vrot.slane %v2506, 1
    %v2509 = vor.u32 %v2504, %v2508
    %v2511 = vshll.u32 %v2261, 16
    %v2513 = vrot.slane %v2511, 1
    %v2514 = vsel %vm2274, %v2509, %v2513
    %v2516 = vshrl.u32 %v2229, 16
    %v2518 = vshll.u32 %v2229, 16
    %v2520 = vrot.slane %v2518, 1
    %v2521 = vor.u32 %v2516, %v2520
    %v2523 = vshll.u32 %v2262, 16
    %v2525 = vrot.slane %v2523, 1
    %v2526 = vsel %vm2274, %v2521, %v2525
    %v2528 = vshrl.u32 %v2230, 16
    %v2530 = vshll.u32 %v2230, 16
    %v2532 = vrot.slane %v2530, 1
    %v2533 = vor.u32 %v2528, %v2532
    %v2535 = vshll.u32 %v2263, 16
    %v2537 = vrot.slane %v2535, 1
    %v2538 = vsel %vm2274, %v2533, %v2537
    %v2540 = vshrl.u32 %v2231, 16
    %v2542 = vshll.u32 %v2231, 16
    %v2544 = vrot.slane %v2542, 1
    %v2545 = vor.u32 %v2540, %v2544
    %v2547 = vshll.u32 %v2264, 16
    %v2549 = vrot.slane %v2547, 1
    %v2550 = vsel %vm2274, %v2545, %v2549
    %v2552 = vshrl.u32 %v2232, 16
    %v2554 = vshll.u32 %v2232, 16
    %v2556 = vrot.slane %v2554, 1
    %v2557 = vor.u32 %v2552, %v2556
    %v2559 = vshll.u32 %v2265, 16
    %v2561 = vrot.slane %v2559, 1
    %v2562 = vsel %vm2274, %v2557, %v2561
    %v2564 = vshrl.u32 %v2233, 16
    %v2566 = vshll.u32 %v2233, 16
    %v2568 = vrot.slane %v2566, 1
    %v2569 = vor.u32 %v2564, %v2568
    %v2571 = vshll.u32 %v2266, 16
    %v2573 = vrot.slane %v2571, 1
    %v2574 = vsel %vm2274, %v2569, %v2573
    %v2576 = vshrl.u32 %v2234, 16
    %v2578 = vshll.u32 %v2234, 16
    %v2580 = vrot.slane %v2578, 1
    %v2581 = vor.u32 %v2576, %v2580
    %v2583 = vshll.u32 %v2267, 16
    %v2585 = vrot.slane %v2583, 1
    %v2586 = vsel %vm2274, %v2581, %v2585
    %v2588 = vshrl.u32 %v2235, 16
    %v2590 = vshll.u32 %v2235, 16
    %v2592 = vrot.slane %v2590, 1
    %v2593 = vor.u32 %v2588, %v2592
    %v2595 = vshll.u32 %v2268, 16
    %v2597 = vrot.slane %v2595, 1
    %v2598 = vsel %vm2274, %v2593, %v2597
    %v2600 = vshrl.u32 %v2236, 16
    %v2602 = vshll.u32 %v2236, 16
    %v2604 = vrot.slane %v2602, 1
    %v2605 = vor.u32 %v2600, %v2604
    %v2607 = vshll.u32 %v2269, 16
    %v2609 = vrot.slane %v2607, 1
    %v2610 = vsel %vm2274, %v2605, %v2609
    %v2612 = vshrl.u32 %v2237, 16
    %v2614 = vshll.u32 %v2237, 16
    %v2616 = vrot.slane %v2614, 1
    %v2617 = vor.u32 %v2612, %v2616
    %v2619 = vshll.u32 %v2270, 16
    %v2621 = vrot.slane %v2619, 1
    %v2622 = vsel %vm2274, %v2617, %v2621
    %v2624 = vshrl.u32 %v2238, 16
    %v2626 = vshll.u32 %v2238, 16
    %v2628 = vrot.slane %v2626, 1
    %v2629 = vor.u32 %v2624, %v2628
    %v2631 = vshll.u32 %v2271, 16
    %v2633 = vrot.slane %v2631, 1
    %v2634 = vsel %vm2274, %v2629, %v2633
    %v2636 = vshrl.u32 %v2239, 16
    %v2638 = vshll.u32 %v2239, 16
    %v2640 = vrot.slane %v2638, 1
    %v2641 = vor.u32 %v2636, %v2640
    %v2643 = vshll.u32 %v2272, 16
    %v2645 = vrot.slane %v2643, 1
    %v2646 = vsel %vm2274, %v2641, %v2645
    %2647 = vrot.lane.b32.xlu0 %v2286, 16
    %v2648 = vpop.permute.xlu0 %2647
    %2649 = vrot.lane.b32.xlu0 %v2298, 16
    %v2650 = vpop.permute.xlu0 %2649
    %2651 = vrot.lane.b32.xlu0 %v2310, 16
    %v2652 = vpop.permute.xlu0 %2651
    %2653 = vrot.lane.b32.xlu0 %v2322, 16
    %v2654 = vpop.permute.xlu0 %2653
    %2655 = vrot.lane.b32.xlu0 %v2334, 16
    %v2656 = vpop.permute.xlu0 %2655
    %2657 = vrot.lane.b32.xlu0 %v2346, 16
    %v2658 = vpop.permute.xlu0 %2657
    %2659 = vrot.lane.b32.xlu0 %v2358, 16
    %v2660 = vpop.permute.xlu0 %2659
    %2661 = vrot.lane.b32.xlu0 %v2370, 16
    %v2662 = vpop.permute.xlu0 %2661
    %2663 = vrot.lane.b32.xlu0 %v2382, 16
    %v2664 = vpop.permute.xlu0 %2663
    %2665 = vrot.lane.b32.xlu0 %v2394, 16
    %v2666 = vpop.permute.xlu0 %2665
    %2667 = vrot.lane.b32.xlu0 %v2406, 16
    %v2668 = vpop.permute.xlu0 %2667
    %2669 = vrot.lane.b32.xlu0 %v2418, 16
    %v2670 = vpop.permute.xlu0 %2669
    %2671 = vrot.lane.b32.xlu0 %v2430, 16
    %v2672 = vpop.permute.xlu0 %2671
    %2673 = vrot.lane.b32.xlu0 %v2442, 16
    %v2674 = vpop.permute.xlu0 %2673
    %2675 = vrot.lane.b32.xlu0 %v2454, 16
    %v2676 = vpop.permute.xlu0 %2675
    %2677 = vrot.lane.b32.xlu0 %v2466, 16
    %v2678 = vpop.permute.xlu0 %2677
    %2679 = vrot.lane.b32.xlu0 %v2478, 16
    %v2680 = vpop.permute.xlu0 %2679
    %2681 = vrot.lane.b32.xlu0 %v2490, 16
    %v2682 = vpop.permute.xlu0 %2681
    %2683 = vrot.lane.b32.xlu0 %v2502, 16
    %v2684 = vpop.permute.xlu0 %2683
    %2685 = vrot.lane.b32.xlu0 %v2514, 16
    %v2686 = vpop.permute.xlu0 %2685
    %2687 = vrot.lane.b32.xlu0 %v2526, 16
    %v2688 = vpop.permute.xlu0 %2687
    %2689 = vrot.lane.b32.xlu0 %v2538, 16
    %v2690 = vpop.permute.xlu0 %2689
    %2691 = vrot.lane.b32.xlu0 %v2550, 16
    %v2692 = vpop.permute.xlu0 %2691
    %2693 = vrot.lane.b32.xlu0 %v2562, 16
    %v2694 = vpop.permute.xlu0 %2693
    %2695 = vrot.lane.b32.xlu0 %v2574, 16
    %v2696 = vpop.permute.xlu0 %2695
    %2697 = vrot.lane.b32.xlu0 %v2586, 16
    %v2698 = vpop.permute.xlu0 %2697
    %2699 = vrot.lane.b32.xlu0 %v2598, 16
    %v2700 = vpop.permute.xlu0 %2699
    %2701 = vrot.lane.b32.xlu0 %v2610, 16
    %v2702 = vpop.permute.xlu0 %2701
    %2703 = vrot.lane.b32.xlu0 %v2622, 16
    %v2704 = vpop.permute.xlu0 %2703
    %2705 = vrot.lane.b32.xlu0 %v2634, 16
    %v2706 = vpop.permute.xlu0 %2705
    %2707 = vrot.lane.b32.xlu0 %v2646, 16
    %v2708 = vpop.permute.xlu0 %2707
    %vm2771 = vcmask 1046528
    %v2772 = vrot.slane %v181, 1
    %v2773 = vrot.slane %v2241, 1
    %v2774 = vsel %vm2771, %v2772, %v2773
    %v2775 = vrot.slane %v2209, 1
    %v2776 = vrot.slane %v2242, 1
    %v2777 = vsel %vm2771, %v2775, %v2776
    %v2778 = vrot.slane %v2210, 1
    %v2779 = vrot.slane %v2243, 1
    %v2780 = vsel %vm2771, %v2778, %v2779
    %v2781 = vrot.slane %v2211, 1
    %v2782 = vrot.slane %v2244, 1
    %v2783 = vsel %vm2771, %v2781, %v2782
    %v2784 = vrot.slane %v2212, 1
    %v2785 = vrot.slane %v2245, 1
    %v2786 = vsel %vm2771, %v2784, %v2785
    %v2787 = vrot.slane %v2213, 1
    %v2788 = vrot.slane %v2246, 1
    %v2789 = vsel %vm2771, %v2787, %v2788
    %v2790 = vrot.slane %v2214, 1
    %v2791 = vrot.slane %v2247, 1
    %v2792 = vsel %vm2771, %v2790, %v2791
    %v2793 = vrot.slane %v2215, 1
    %v2794 = vrot.slane %v2248, 1
    %v2795 = vsel %vm2771, %v2793, %v2794
    %v2796 = vrot.slane %v2216, 1
    %v2797 = vrot.slane %v2249, 1
    %v2798 = vsel %vm2771, %v2796, %v2797
    %v2799 = vrot.slane %v2217, 1
    %v2800 = vrot.slane %v2250, 1
    %v2801 = vsel %vm2771, %v2799, %v2800
    %v2802 = vrot.slane %v2218, 1
    %v2803 = vrot.slane %v2251, 1
    %v2804 = vsel %vm2771, %v2802, %v2803
    %v2805 = vrot.slane %v2219, 1
    %v2806 = vrot.slane %v2252, 1
    %v2807 = vsel %vm2771, %v2805, %v2806
    %v2808 = vrot.slane %v2220, 1
    %v2809 = vrot.slane %v2253, 1
    %v2810 = vsel %vm2771, %v2808, %v2809
    %v2811 = vrot.slane %v2221, 1
    %v2812 = vrot.slane %v2254, 1
    %v2813 = vsel %vm2771, %v2811, %v2812
    %v2814 = vrot.slane %v2222, 1
    %v2815 = vrot.slane %v2255, 1
    %v2816 = vsel %vm2771, %v2814, %v2815
    %v2817 = vrot.slane %v2223, 1
    %v2818 = vrot.slane %v2256, 1
    %v2819 = vsel %vm2771, %v2817, %v2818
    %v2820 = vrot.slane %v2225, 1
    %v2821 = vrot.slane %v2258, 1
    %v2822 = vsel %vm2771, %v2820, %v2821
    %v2823 = vrot.slane %v2226, 1
    %v2824 = vrot.slane %v2259, 1
    %v2825 = vsel %vm2771, %v2823, %v2824
    %v2826 = vrot.slane %v2227, 1
    %v2827 = vrot.slane %v2260, 1
    %v2828 = vsel %vm2771, %v2826, %v2827
    %v2829 = vrot.slane %v2228, 1
    %v2830 = vrot.slane %v2261, 1
    %v2831 = vsel %vm2771, %v2829, %v2830
    %v2832 = vrot.slane %v2229, 1
    %v2833 = vrot.slane %v2262, 1
    %v2834 = vsel %vm2771, %v2832, %v2833
    %v2835 = vrot.slane %v2230, 1
    %v2836 = vrot.slane %v2263, 1
    %v2837 = vsel %vm2771, %v2835, %v2836
    %v2838 = vrot.slane %v2231, 1
    %v2839 = vrot.slane %v2264, 1
    %v2840 = vsel %vm2771, %v2838, %v2839
    %v2841 = vrot.slane %v2232, 1
    %v2842 = vrot.slane %v2265, 1
    %v2843 = vsel %vm2771, %v2841, %v2842
    %v2844 = vrot.slane %v2233, 1
    %v2845 = vrot.slane %v2266, 1
    %v2846 = vsel %vm2771, %v2844, %v2845
    %v2847 = vrot.slane %v2234, 1
    %v2848 = vrot.slane %v2267, 1
    %v2849 = vsel %vm2771, %v2847, %v2848
    %v2850 = vrot.slane %v2235, 1
    %v2851 = vrot.slane %v2268, 1
    %v2852 = vsel %vm2771, %v2850, %v2851
    %v2853 = vrot.slane %v2236, 1
    %v2854 = vrot.slane %v2269, 1
    %v2855 = vsel %vm2771, %v2853, %v2854
    %v2856 = vrot.slane %v2237, 1
    %v2857 = vrot.slane %v2270, 1
    %v2858 = vsel %vm2771, %v2856, %v2857
    %v2859 = vrot.slane %v2238, 1
    %v2860 = vrot.slane %v2271, 1
    %v2861 = vsel %vm2771, %v2859, %v2860
    %v2862 = vrot.slane %v2239, 1
    %v2863 = vrot.slane %v2272, 1
    %v2864 = vsel %vm2771, %v2862, %v2863
    %2865 = vrot.lane.b32.xlu0 %v2774, 32
    %v2866 = vpop.permute.xlu0 %2865
    %2867 = vrot.lane.b32.xlu0 %v2777, 32
    %v2868 = vpop.permute.xlu0 %2867
    %2869 = vrot.lane.b32.xlu0 %v2780, 32
    %v2870 = vpop.permute.xlu0 %2869
    %2871 = vrot.lane.b32.xlu0 %v2783, 32
    %v2872 = vpop.permute.xlu0 %2871
    %2873 = vrot.lane.b32.xlu0 %v2786, 32
    %v2874 = vpop.permute.xlu0 %2873
    %2875 = vrot.lane.b32.xlu0 %v2789, 32
    %v2876 = vpop.permute.xlu0 %2875
    %2877 = vrot.lane.b32.xlu0 %v2792, 32
    %v2878 = vpop.permute.xlu0 %2877
    %2879 = vrot.lane.b32.xlu0 %v2795, 32
    %v2880 = vpop.permute.xlu0 %2879
    %2881 = vrot.lane.b32.xlu0 %v2798, 32
    %v2882 = vpop.permute.xlu0 %2881
    %2883 = vrot.lane.b32.xlu0 %v2801, 32
    %v2884 = vpop.permute.xlu0 %2883
    %2885 = vrot.lane.b32.xlu0 %v2804, 32
    %v2886 = vpop.permute.xlu0 %2885
    %2887 = vrot.lane.b32.xlu0 %v2807, 32
    %v2888 = vpop.permute.xlu0 %2887
    %2889 = vrot.lane.b32.xlu0 %v2810, 32
    %v2890 = vpop.permute.xlu0 %2889
    %2891 = vrot.lane.b32.xlu0 %v2813, 32
    %v2892 = vpop.permute.xlu0 %2891
    %2893 = vrot.lane.b32.xlu0 %v2816, 32
    %v2894 = vpop.permute.xlu0 %2893
    %2895 = vrot.lane.b32.xlu0 %v2819, 32
    %v2896 = vpop.permute.xlu0 %2895
    %2897 = vrot.lane.b32.xlu0 %v2822, 32
    %v2898 = vpop.permute.xlu0 %2897
    %2899 = vrot.lane.b32.xlu0 %v2825, 32
    %v2900 = vpop.permute.xlu0 %2899
    %2901 = vrot.lane.b32.xlu0 %v2828, 32
    %v2902 = vpop.permute.xlu0 %2901
    %2903 = vrot.lane.b32.xlu0 %v2831, 32
    %v2904 = vpop.permute.xlu0 %2903
    %2905 = vrot.lane.b32.xlu0 %v2834, 32
    %v2906 = vpop.permute.xlu0 %2905
    %2907 = vrot.lane.b32.xlu0 %v2837, 32
    %v2908 = vpop.permute.xlu0 %2907
    %2909 = vrot.lane.b32.xlu0 %v2840, 32
    %v2910 = vpop.permute.xlu0 %2909
    %2911 = vrot.lane.b32.xlu0 %v2843, 32
    %v2912 = vpop.permute.xlu0 %2911
    %2913 = vrot.lane.b32.xlu0 %v2846, 32
    %v2914 = vpop.permute.xlu0 %2913
    %2915 = vrot.lane.b32.xlu0 %v2849, 32
    %v2916 = vpop.permute.xlu0 %2915
    %2917 = vrot.lane.b32.xlu0 %v2852, 32
    %v2918 = vpop.permute.xlu0 %2917
    %2919 = vrot.lane.b32.xlu0 %v2855, 32
    %v2920 = vpop.permute.xlu0 %2919
    %2921 = vrot.lane.b32.xlu0 %v2858, 32
    %v2922 = vpop.permute.xlu0 %2921
    %2923 = vrot.lane.b32.xlu0 %v2861, 32
    %v2924 = vpop.permute.xlu0 %2923
    %2925 = vrot.lane.b32.xlu0 %v2864, 32
    %v2926 = vpop.permute.xlu0 %2925
    %2929 = vrot.lane.b32.xlu0 %v2209, 48
    %v2930 = vpop.permute.xlu0 %2929
    %2931 = vrot.lane.b32.xlu0 %v2210, 48
    %v2932 = vpop.permute.xlu0 %2931
    %2933 = vrot.lane.b32.xlu0 %v2211, 48
    %v2934 = vpop.permute.xlu0 %2933
    %2935 = vrot.lane.b32.xlu0 %v2212, 48
    %v2936 = vpop.permute.xlu0 %2935
    %2937 = vrot.lane.b32.xlu0 %v2213, 48
    %v2938 = vpop.permute.xlu0 %2937
    %2939 = vrot.lane.b32.xlu0 %v2214, 48
    %v2940 = vpop.permute.xlu0 %2939
    %2941 = vrot.lane.b32.xlu0 %v2215, 48
    %v2942 = vpop.permute.xlu0 %2941
    %2943 = vrot.lane.b32.xlu0 %v2216, 48
    %v2944 = vpop.permute.xlu0 %2943
    %2945 = vrot.lane.b32.xlu0 %v2217, 48
    %v2946 = vpop.permute.xlu0 %2945
    %2947 = vrot.lane.b32.xlu0 %v2218, 48
    %v2948 = vpop.permute.xlu0 %2947
    %2949 = vrot.lane.b32.xlu0 %v2219, 48
    %v2950 = vpop.permute.xlu0 %2949
    %2951 = vrot.lane.b32.xlu0 %v2220, 48
    %v2952 = vpop.permute.xlu0 %2951
    %2953 = vrot.lane.b32.xlu0 %v2221, 48
    %v2954 = vpop.permute.xlu0 %2953
    %2955 = vrot.lane.b32.xlu0 %v2222, 48
    %v2956 = vpop.permute.xlu0 %2955
    %2957 = vrot.lane.b32.xlu0 %v2223, 48
    %v2958 = vpop.permute.xlu0 %2957
    %2959 = vrot.lane.b32.xlu0 %v2224, 48
    %v2960 = vpop.permute.xlu0 %2959
    %2961 = vrot.lane.b32.xlu0 %v2225, 48
    %v2962 = vpop.permute.xlu0 %2961
    %2963 = vrot.lane.b32.xlu0 %v2226, 48
    %v2964 = vpop.permute.xlu0 %2963
    %2965 = vrot.lane.b32.xlu0 %v2227, 48
    %v2966 = vpop.permute.xlu0 %2965
    %2967 = vrot.lane.b32.xlu0 %v2228, 48
    %v2968 = vpop.permute.xlu0 %2967
    %2969 = vrot.lane.b32.xlu0 %v2229, 48
    %v2970 = vpop.permute.xlu0 %2969
    %2971 = vrot.lane.b32.xlu0 %v2230, 48
    %v2972 = vpop.permute.xlu0 %2971
    %2973 = vrot.lane.b32.xlu0 %v2231, 48
    %v2974 = vpop.permute.xlu0 %2973
    %2975 = vrot.lane.b32.xlu0 %v2232, 48
    %v2976 = vpop.permute.xlu0 %2975
    %2977 = vrot.lane.b32.xlu0 %v2233, 48
    %v2978 = vpop.permute.xlu0 %2977
    %2979 = vrot.lane.b32.xlu0 %v2234, 48
    %v2980 = vpop.permute.xlu0 %2979
    %2981 = vrot.lane.b32.xlu0 %v2235, 48
    %v2982 = vpop.permute.xlu0 %2981
    %2983 = vrot.lane.b32.xlu0 %v2236, 48
    %v2984 = vpop.permute.xlu0 %2983
    %2985 = vrot.lane.b32.xlu0 %v2237, 48
    %v2986 = vpop.permute.xlu0 %2985
    %2987 = vrot.lane.b32.xlu0 %v2238, 48
    %v2988 = vpop.permute.xlu0 %2987
    %2989 = vrot.lane.b32.xlu0 %v2239, 48
    %v2990 = vpop.permute.xlu0 %2989
    %2991 = vrot.lane.b32.xlu0 %v2240, 48
    %v2992 = vpop.permute.xlu0 %2991
    %v2994 = vshrl.u32 %v2224, 16
    %v2996 = vshll.u32 %v2224, 16
    %v2998 = vrot.slane %v2996, 1
    %v2999 = vor.u32 %v2994, %v2998
    %v3001 = vshll.u32 %v2257, 16
    %v3003 = vrot.slane %v3001, 1
    %v3004 = vsel %vm2274, %v2999, %v3003
    %v3006 = vshrl.u32 %v2240, 16
    %v3008 = vshll.u32 %v2240, 16
    %v3010 = vrot.slane %v3008, 1
    %v3011 = vor.u32 %v3006, %v3010
    %v3013 = vshll.u32 %v2273, 16
    %v3015 = vrot.slane %v3013, 1
    %v3016 = vsel %vm2274, %v3011, %v3015
    %3017 = vrot.lane.b32.xlu0 %v2298, 64
    %v3018 = vpop.permute.xlu0 %3017
    %3019 = vrot.lane.b32.xlu0 %v2310, 64
    %v3020 = vpop.permute.xlu0 %3019
    %3021 = vrot.lane.b32.xlu0 %v2322, 64
    %v3022 = vpop.permute.xlu0 %3021
    %3023 = vrot.lane.b32.xlu0 %v2334, 64
    %v3024 = vpop.permute.xlu0 %3023
    %3025 = vrot.lane.b32.xlu0 %v2346, 64
    %v3026 = vpop.permute.xlu0 %3025
    %3027 = vrot.lane.b32.xlu0 %v2358, 64
    %v3028 = vpop.permute.xlu0 %3027
    %3029 = vrot.lane.b32.xlu0 %v2370, 64
    %v3030 = vpop.permute.xlu0 %3029
    %3031 = vrot.lane.b32.xlu0 %v2382, 64
    %v3032 = vpop.permute.xlu0 %3031
    %3033 = vrot.lane.b32.xlu0 %v2394, 64
    %v3034 = vpop.permute.xlu0 %3033
    %3035 = vrot.lane.b32.xlu0 %v2406, 64
    %v3036 = vpop.permute.xlu0 %3035
    %3037 = vrot.lane.b32.xlu0 %v2418, 64
    %v3038 = vpop.permute.xlu0 %3037
    %3039 = vrot.lane.b32.xlu0 %v2430, 64
    %v3040 = vpop.permute.xlu0 %3039
    %3041 = vrot.lane.b32.xlu0 %v2442, 64
    %v3042 = vpop.permute.xlu0 %3041
    %3043 = vrot.lane.b32.xlu0 %v2454, 64
    %v3044 = vpop.permute.xlu0 %3043
    %3045 = vrot.lane.b32.xlu0 %v2466, 64
    %v3046 = vpop.permute.xlu0 %3045
    %3047 = vrot.lane.b32.xlu0 %v3004, 64
    %v3048 = vpop.permute.xlu0 %3047
    %3049 = vrot.lane.b32.xlu0 %v2478, 64
    %v3050 = vpop.permute.xlu0 %3049
    %3051 = vrot.lane.b32.xlu0 %v2490, 64
    %v3052 = vpop.permute.xlu0 %3051
    %3053 = vrot.lane.b32.xlu0 %v2502, 64
    %v3054 = vpop.permute.xlu0 %3053
    %3055 = vrot.lane.b32.xlu0 %v2514, 64
    %v3056 = vpop.permute.xlu0 %3055
    %3057 = vrot.lane.b32.xlu0 %v2526, 64
    %v3058 = vpop.permute.xlu0 %3057
    %3059 = vrot.lane.b32.xlu0 %v2538, 64
    %v3060 = vpop.permute.xlu0 %3059
    %3061 = vrot.lane.b32.xlu0 %v2550, 64
    %v3062 = vpop.permute.xlu0 %3061
    %3063 = vrot.lane.b32.xlu0 %v2562, 64
    %v3064 = vpop.permute.xlu0 %3063
    %3065 = vrot.lane.b32.xlu0 %v2574, 64
    %v3066 = vpop.permute.xlu0 %3065
    %3067 = vrot.lane.b32.xlu0 %v2586, 64
    %v3068 = vpop.permute.xlu0 %3067
    %3069 = vrot.lane.b32.xlu0 %v2598, 64
    %v3070 = vpop.permute.xlu0 %3069
    %3071 = vrot.lane.b32.xlu0 %v2610, 64
    %v3072 = vpop.permute.xlu0 %3071
    %3073 = vrot.lane.b32.xlu0 %v2622, 64
    %v3074 = vpop.permute.xlu0 %3073
    %3075 = vrot.lane.b32.xlu0 %v2634, 64
    %v3076 = vpop.permute.xlu0 %3075
    %3077 = vrot.lane.b32.xlu0 %v2646, 64
    %v3078 = vpop.permute.xlu0 %3077
    %3079 = vrot.lane.b32.xlu0 %v3016, 64
    %v3080 = vpop.permute.xlu0 %3079
    %v3083 = vrot.slane %v2224, 1
    %v3084 = vrot.slane %v2257, 1
    %v3085 = vsel %vm2771, %v3083, %v3084
    %v3086 = vrot.slane %v2240, 1
    %v3087 = vrot.slane %v2273, 1
    %v3088 = vsel %vm2771, %v3086, %v3087
    %3089 = vrot.lane.b32.xlu0 %v2777, 80
    %v3090 = vpop.permute.xlu0 %3089
    %3091 = vrot.lane.b32.xlu0 %v2780, 80
    %v3092 = vpop.permute.xlu0 %3091
    %3093 = vrot.lane.b32.xlu0 %v2783, 80
    %v3094 = vpop.permute.xlu0 %3093
    %3095 = vrot.lane.b32.xlu0 %v2786, 80
    %v3096 = vpop.permute.xlu0 %3095
    %3097 = vrot.lane.b32.xlu0 %v2789, 80
    %v3098 = vpop.permute.xlu0 %3097
    %3099 = vrot.lane.b32.xlu0 %v2792, 80
    %v3100 = vpop.permute.xlu0 %3099
    %3101 = vrot.lane.b32.xlu0 %v2795, 80
    %v3102 = vpop.permute.xlu0 %3101
    %3103 = vrot.lane.b32.xlu0 %v2798, 80
    %v3104 = vpop.permute.xlu0 %3103
    %3105 = vrot.lane.b32.xlu0 %v2801, 80
    %v3106 = vpop.permute.xlu0 %3105
    %3107 = vrot.lane.b32.xlu0 %v2804, 80
    %v3108 = vpop.permute.xlu0 %3107
    %3109 = vrot.lane.b32.xlu0 %v2807, 80
    %v3110 = vpop.permute.xlu0 %3109
    %3111 = vrot.lane.b32.xlu0 %v2810, 80
    %v3112 = vpop.permute.xlu0 %3111
    %3113 = vrot.lane.b32.xlu0 %v2813, 80
    %v3114 = vpop.permute.xlu0 %3113
    %3115 = vrot.lane.b32.xlu0 %v2816, 80
    %v3116 = vpop.permute.xlu0 %3115
    %3117 = vrot.lane.b32.xlu0 %v2819, 80
    %v3118 = vpop.permute.xlu0 %3117
    %3119 = vrot.lane.b32.xlu0 %v3085, 80
    %v3120 = vpop.permute.xlu0 %3119
    %3121 = vrot.lane.b32.xlu0 %v2822, 80
    %v3122 = vpop.permute.xlu0 %3121
    %3123 = vrot.lane.b32.xlu0 %v2825, 80
    %v3124 = vpop.permute.xlu0 %3123
    %3125 = vrot.lane.b32.xlu0 %v2828, 80
    %v3126 = vpop.permute.xlu0 %3125
    %3127 = vrot.lane.b32.xlu0 %v2831, 80
    %v3128 = vpop.permute.xlu0 %3127
    %3129 = vrot.lane.b32.xlu0 %v2834, 80
    %v3130 = vpop.permute.xlu0 %3129
    %3131 = vrot.lane.b32.xlu0 %v2837, 80
    %v3132 = vpop.permute.xlu0 %3131
    %3133 = vrot.lane.b32.xlu0 %v2840, 80
    %v3134 = vpop.permute.xlu0 %3133
    %3135 = vrot.lane.b32.xlu0 %v2843, 80
    %v3136 = vpop.permute.xlu0 %3135
    %3137 = vrot.lane.b32.xlu0 %v2846, 80
    %v3138 = vpop.permute.xlu0 %3137
    %3139 = vrot.lane.b32.xlu0 %v2849, 80
    %v3140 = vpop.permute.xlu0 %3139
    %3141 = vrot.lane.b32.xlu0 %v2852, 80
    %v3142 = vpop.permute.xlu0 %3141
    %3143 = vrot.lane.b32.xlu0 %v2855, 80
    %v3144 = vpop.permute.xlu0 %3143
    %3145 = vrot.lane.b32.xlu0 %v2858, 80
    %v3146 = vpop.permute.xlu0 %3145
    %3147 = vrot.lane.b32.xlu0 %v2861, 80
    %v3148 = vpop.permute.xlu0 %3147
    %3149 = vrot.lane.b32.xlu0 %v2864, 80
    %v3150 = vpop.permute.xlu0 %3149
    %3151 = vrot.lane.b32.xlu0 %v3088, 80
    %v3152 = vpop.permute.xlu0 %3151
    %3153 = vrot.lane.b32.xlu0 %v2210, 96
    %v3154 = vpop.permute.xlu0 %3153
    %3155 = vrot.lane.b32.xlu0 %v2211, 96
    %v3156 = vpop.permute.xlu0 %3155
    %3157 = vrot.lane.b32.xlu0 %v2212, 96
    %v3158 = vpop.permute.xlu0 %3157
    %3159 = vrot.lane.b32.xlu0 %v2213, 96
    %v3160 = vpop.permute.xlu0 %3159
    %3161 = vrot.lane.b32.xlu0 %v2214, 96
    %v3162 = vpop.permute.xlu0 %3161
    %3163 = vrot.lane.b32.xlu0 %v2215, 96
    %v3164 = vpop.permute.xlu0 %3163
    %3165 = vrot.lane.b32.xlu0 %v2216, 96
    %v3166 = vpop.permute.xlu0 %3165
    %3167 = vrot.lane.b32.xlu0 %v2217, 96
    %v3168 = vpop.permute.xlu0 %3167
    %3169 = vrot.lane.b32.xlu0 %v2218, 96
    %v3170 = vpop.permute.xlu0 %3169
    %3171 = vrot.lane.b32.xlu0 %v2219, 96
    %v3172 = vpop.permute.xlu0 %3171
    %3173 = vrot.lane.b32.xlu0 %v2220, 96
    %v3174 = vpop.permute.xlu0 %3173
    %3175 = vrot.lane.b32.xlu0 %v2221, 96
    %v3176 = vpop.permute.xlu0 %3175
    %3177 = vrot.lane.b32.xlu0 %v2222, 96
    %v3178 = vpop.permute.xlu0 %3177
    %3179 = vrot.lane.b32.xlu0 %v2223, 96
    %v3180 = vpop.permute.xlu0 %3179
    %3181 = vrot.lane.b32.xlu0 %v2224, 96
    %v3182 = vpop.permute.xlu0 %3181
    %3183 = vrot.lane.b32.xlu0 %v181, 96
    %v3184 = vpop.permute.xlu0 %3183
    %3185 = vrot.lane.b32.xlu0 %v2226, 96
    %v3186 = vpop.permute.xlu0 %3185
    %3187 = vrot.lane.b32.xlu0 %v2227, 96
    %v3188 = vpop.permute.xlu0 %3187
    %3189 = vrot.lane.b32.xlu0 %v2228, 96
    %v3190 = vpop.permute.xlu0 %3189
    %3191 = vrot.lane.b32.xlu0 %v2229, 96
    %v3192 = vpop.permute.xlu0 %3191
    %3193 = vrot.lane.b32.xlu0 %v2230, 96
    %v3194 = vpop.permute.xlu0 %3193
    %3195 = vrot.lane.b32.xlu0 %v2231, 96
    %v3196 = vpop.permute.xlu0 %3195
    %3197 = vrot.lane.b32.xlu0 %v2232, 96
    %v3198 = vpop.permute.xlu0 %3197
    %3199 = vrot.lane.b32.xlu0 %v2233, 96
    %v3200 = vpop.permute.xlu0 %3199
    %3201 = vrot.lane.b32.xlu0 %v2234, 96
    %v3202 = vpop.permute.xlu0 %3201
    %3203 = vrot.lane.b32.xlu0 %v2235, 96
    %v3204 = vpop.permute.xlu0 %3203
    %3205 = vrot.lane.b32.xlu0 %v2236, 96
    %v3206 = vpop.permute.xlu0 %3205
    %3207 = vrot.lane.b32.xlu0 %v2237, 96
    %v3208 = vpop.permute.xlu0 %3207
    %3209 = vrot.lane.b32.xlu0 %v2238, 96
    %v3210 = vpop.permute.xlu0 %3209
    %3211 = vrot.lane.b32.xlu0 %v2239, 96
    %v3212 = vpop.permute.xlu0 %3211
    %3213 = vrot.lane.b32.xlu0 %v2240, 96
    %v3214 = vpop.permute.xlu0 %3213
    %3215 = vrot.lane.b32.xlu0 %v2310, 112
    %v3216 = vpop.permute.xlu0 %3215
    %3217 = vrot.lane.b32.xlu0 %v2322, 112
    %v3218 = vpop.permute.xlu0 %3217
    %3219 = vrot.lane.b32.xlu0 %v2334, 112
    %v3220 = vpop.permute.xlu0 %3219
    %3221 = vrot.lane.b32.xlu0 %v2346, 112
    %v3222 = vpop.permute.xlu0 %3221
    %3223 = vrot.lane.b32.xlu0 %v2358, 112
    %v3224 = vpop.permute.xlu0 %3223
    %3225 = vrot.lane.b32.xlu0 %v2370, 112
    %v3226 = vpop.permute.xlu0 %3225
    %3227 = vrot.lane.b32.xlu0 %v2382, 112
    %v3228 = vpop.permute.xlu0 %3227
    %3229 = vrot.lane.b32.xlu0 %v2394, 112
    %v3230 = vpop.permute.xlu0 %3229
    %3231 = vrot.lane.b32.xlu0 %v2406, 112
    %v3232 = vpop.permute.xlu0 %3231
    %3233 = vrot.lane.b32.xlu0 %v2418, 112
    %v3234 = vpop.permute.xlu0 %3233
    %3235 = vrot.lane.b32.xlu0 %v2430, 112
    %v3236 = vpop.permute.xlu0 %3235
    %3237 = vrot.lane.b32.xlu0 %v2442, 112
    %v3238 = vpop.permute.xlu0 %3237
    %3239 = vrot.lane.b32.xlu0 %v2454, 112
    %v3240 = vpop.permute.xlu0 %3239
    %3241 = vrot.lane.b32.xlu0 %v2466, 112
    %v3242 = vpop.permute.xlu0 %3241
    %3243 = vrot.lane.b32.xlu0 %v3004, 112
    %v3244 = vpop.permute.xlu0 %3243
    %3245 = vrot.lane.b32.xlu0 %v2286, 112
    %v3246 = vpop.permute.xlu0 %3245
    %3247 = vrot.lane.b32.xlu0 %v2490, 112
    %v3248 = vpop.permute.xlu0 %3247
    %3249 = vrot.lane.b32.xlu0 %v2502, 112
    %v3250 = vpop.permute.xlu0 %3249
    %3251 = vrot.lane.b32.xlu0 %v2514, 112
    %v3252 = vpop.permute.xlu0 %3251
    %3253 = vrot.lane.b32.xlu0 %v2526, 112
    %v3254 = vpop.permute.xlu0 %3253
    %3255 = vrot.lane.b32.xlu0 %v2538, 112
    %v3256 = vpop.permute.xlu0 %3255
    %3257 = vrot.lane.b32.xlu0 %v2550, 112
    %v3258 = vpop.permute.xlu0 %3257
    %3259 = vrot.lane.b32.xlu0 %v2562, 112
    %v3260 = vpop.permute.xlu0 %3259
    %3261 = vrot.lane.b32.xlu0 %v2574, 112
    %v3262 = vpop.permute.xlu0 %3261
    %3263 = vrot.lane.b32.xlu0 %v2586, 112
    %v3264 = vpop.permute.xlu0 %3263
    %3265 = vrot.lane.b32.xlu0 %v2598, 112
    %v3266 = vpop.permute.xlu0 %3265
    %3267 = vrot.lane.b32.xlu0 %v2610, 112
    %v3268 = vpop.permute.xlu0 %3267
    %3269 = vrot.lane.b32.xlu0 %v2622, 112
    %v3270 = vpop.permute.xlu0 %3269
    %3271 = vrot.lane.b32.xlu0 %v2634, 112
    %v3272 = vpop.permute.xlu0 %3271
    %3273 = vrot.lane.b32.xlu0 %v2646, 112
    %v3274 = vpop.permute.xlu0 %3273
    %3275 = vrot.lane.b32.xlu0 %v3016, 112
    %v3276 = vpop.permute.xlu0 %3275
    %vm3277 = vcmask 130048
    %v3279 = vsel %vm3277, %v181, %v2648
    %v3281 = vsel %vm3277, %v2209, %v2650
    %v3283 = vsel %vm3277, %v2210, %v2652
    %v3285 = vsel %vm3277, %v2211, %v2654
    %v3287 = vsel %vm3277, %v2212, %v2656
    %v3289 = vsel %vm3277, %v2213, %v2658
    %v3291 = vsel %vm3277, %v2214, %v2660
    %v3293 = vsel %vm3277, %v2215, %v2662
    %v3295 = vsel %vm3277, %v2216, %v2664
    %v3297 = vsel %vm3277, %v2217, %v2666
    %v3299 = vsel %vm3277, %v2218, %v2668
    %v3301 = vsel %vm3277, %v2219, %v2670
    %v3303 = vsel %vm3277, %v2220, %v2672
    %v3305 = vsel %vm3277, %v2221, %v2674
    %v3307 = vsel %vm3277, %v2222, %v2676
    %v3309 = vsel %vm3277, %v2223, %v2678
    %v3311 = vsel %vm3277, %v2225, %v2680
    %v3313 = vsel %vm3277, %v2226, %v2682
    %v3315 = vsel %vm3277, %v2227, %v2684
    %v3317 = vsel %vm3277, %v2228, %v2686
    %v3319 = vsel %vm3277, %v2229, %v2688
    %v3321 = vsel %vm3277, %v2230, %v2690
    %v3323 = vsel %vm3277, %v2231, %v2692
    %v3325 = vsel %vm3277, %v2232, %v2694
    %v3327 = vsel %vm3277, %v2233, %v2696
    %v3329 = vsel %vm3277, %v2234, %v2698
    %v3331 = vsel %vm3277, %v2235, %v2700
    %v3333 = vsel %vm3277, %v2236, %v2702
    %v3335 = vsel %vm3277, %v2237, %v2704
    %v3337 = vsel %vm3277, %v2238, %v2706
    %v3339 = vsel %vm3277, %v2239, %v2708
    %v3341 = vsel %vm555, %v3279, %v2866
    %v3343 = vsel %vm555, %v3281, %v2868
    %v3345 = vsel %vm555, %v3283, %v2870
    %v3347 = vsel %vm555, %v3285, %v2872
    %v3349 = vsel %vm555, %v3287, %v2874
    %v3351 = vsel %vm555, %v3289, %v2876
    %v3353 = vsel %vm555, %v3291, %v2878
    %v3355 = vsel %vm555, %v3293, %v2880
    %v3357 = vsel %vm555, %v3295, %v2882
    %v3359 = vsel %vm555, %v3297, %v2884
    %v3361 = vsel %vm555, %v3299, %v2886
    %v3363 = vsel %vm555, %v3301, %v2888
    %v3365 = vsel %vm555, %v3303, %v2890
    %v3367 = vsel %vm555, %v3305, %v2892
    %v3369 = vsel %vm555, %v3307, %v2894
    %v3371 = vsel %vm555, %v3309, %v2896
    %v3373 = vsel %vm555, %v3311, %v2898
    %v3375 = vsel %vm555, %v3313, %v2900
    %v3377 = vsel %vm555, %v3315, %v2902
    %v3379 = vsel %vm555, %v3317, %v2904
    %v3381 = vsel %vm555, %v3319, %v2906
    %v3383 = vsel %vm555, %v3321, %v2908
    %v3385 = vsel %vm555, %v3323, %v2910
    %v3387 = vsel %vm555, %v3325, %v2912
    %v3389 = vsel %vm555, %v3327, %v2914
    %v3391 = vsel %vm555, %v3329, %v2916
    %v3393 = vsel %vm555, %v3331, %v2918
    %v3395 = vsel %vm555, %v3333, %v2920
    %v3397 = vsel %vm555, %v3335, %v2922
    %v3399 = vsel %vm555, %v3337, %v2924
    %v3401 = vsel %vm555, %v3339, %v2926
    %vm3402 = vcmask 392192
    %v3404 = vsel %vm3402, %v3341, %v2930
    %v3406 = vsel %vm3402, %v3343, %v2932
    %v3408 = vsel %vm3402, %v3345, %v2934
    %v3410 = vsel %vm3402, %v3347, %v2936
    %v3412 = vsel %vm3402, %v3349, %v2938
    %v3414 = vsel %vm3402, %v3351, %v2940
    %v3416 = vsel %vm3402, %v3353, %v2942
    %v3418 = vsel %vm3402, %v3355, %v2944
    %v3420 = vsel %vm3402, %v3357, %v2946
    %v3422 = vsel %vm3402, %v3359, %v2948
    %v3424 = vsel %vm3402, %v3361, %v2950
    %v3426 = vsel %vm3402, %v3363, %v2952
    %v3428 = vsel %vm3402, %v3365, %v2954
    %v3430 = vsel %vm3402, %v3367, %v2956
    %v3432 = vsel %vm3402, %v3369, %v2958
    %v3434 = vsel %vm3402, %v3371, %v2960
    %v3436 = vsel %vm3402, %v3341, %v2962
    %v3438 = vsel %vm3402, %v3373, %v2964
    %v3440 = vsel %vm3402, %v3375, %v2966
    %v3442 = vsel %vm3402, %v3377, %v2968
    %v3444 = vsel %vm3402, %v3379, %v2970
    %v3446 = vsel %vm3402, %v3381, %v2972
    %v3448 = vsel %vm3402, %v3383, %v2974
    %v3450 = vsel %vm3402, %v3385, %v2976
    %v3452 = vsel %vm3402, %v3387, %v2978
    %v3454 = vsel %vm3402, %v3389, %v2980
    %v3456 = vsel %vm3402, %v3391, %v2982
    %v3458 = vsel %vm3402, %v3393, %v2984
    %v3460 = vsel %vm3402, %v3395, %v2986
    %v3462 = vsel %vm3402, %v3397, %v2988
    %v3464 = vsel %vm3402, %v3399, %v2990
    %v3466 = vsel %vm3402, %v3401, %v2992
    %v3468 = vsel %vm586, %v3404, %v3018
    %v3470 = vsel %vm586, %v3406, %v3020
    %v3472 = vsel %vm586, %v3408, %v3022
    %v3474 = vsel %vm586, %v3410, %v3024
    %v3476 = vsel %vm586, %v3412, %v3026
    %v3478 = vsel %vm586, %v3414, %v3028
    %v3480 = vsel %vm586, %v3416, %v3030
    %v3482 = vsel %vm586, %v3418, %v3032
    %v3484 = vsel %vm586, %v3420, %v3034
    %v3486 = vsel %vm586, %v3422, %v3036
    %v3488 = vsel %vm586, %v3424, %v3038
    %v3490 = vsel %vm586, %v3426, %v3040
    %v3492 = vsel %vm586, %v3428, %v3042
    %v3494 = vsel %vm586, %v3430, %v3044
    %v3496 = vsel %vm586, %v3432, %v3046
    %v3498 = vsel %vm586, %v3434, %v3048
    %v3500 = vsel %vm586, %v3436, %v3050
    %v3502 = vsel %vm586, %v3438, %v3052
    %v3504 = vsel %vm586, %v3440, %v3054
    %v3506 = vsel %vm586, %v3442, %v3056
    %v3508 = vsel %vm586, %v3444, %v3058
    %v3510 = vsel %vm586, %v3446, %v3060
    %v3512 = vsel %vm586, %v3448, %v3062
    %v3514 = vsel %vm586, %v3450, %v3064
    %v3516 = vsel %vm586, %v3452, %v3066
    %v3518 = vsel %vm586, %v3454, %v3068
    %v3520 = vsel %vm586, %v3456, %v3070
    %v3522 = vsel %vm586, %v3458, %v3072
    %v3524 = vsel %vm586, %v3460, %v3074
    %v3526 = vsel %vm586, %v3462, %v3076
    %v3528 = vsel %vm586, %v3464, %v3078
    %v3530 = vsel %vm586, %v3466, %v3080
    %vm3531 = vcmask 654336
    %v3533 = vsel %vm3531, %v3468, %v3090
    %v3535 = vsel %vm3531, %v3470, %v3092
    %v3537 = vsel %vm3531, %v3472, %v3094
    %v3539 = vsel %vm3531, %v3474, %v3096
    %v3541 = vsel %vm3531, %v3476, %v3098
    %v3543 = vsel %vm3531, %v3478, %v3100
    %v3545 = vsel %vm3531, %v3480, %v3102
    %v3547 = vsel %vm3531, %v3482, %v3104
    %v3549 = vsel %vm3531, %v3484, %v3106
    %v3551 = vsel %vm3531, %v3486, %v3108
    %v3553 = vsel %vm3531, %v3488, %v3110
    %v3555 = vsel %vm3531, %v3490, %v3112
    %v3557 = vsel %vm3531, %v3492, %v3114
    %v3559 = vsel %vm3531, %v3494, %v3116
    %v3561 = vsel %vm3531, %v3496, %v3118
    %v3563 = vsel %vm3531, %v3498, %v3120
    %v3565 = vsel %vm3531, %v3500, %v3122
    %v3567 = vsel %vm3531, %v3502, %v3124
    %v3569 = vsel %vm3531, %v3504, %v3126
    %v3571 = vsel %vm3531, %v3506, %v3128
    %v3573 = vsel %vm3531, %v3508, %v3130
    %v3575 = vsel %vm3531, %v3510, %v3132
    %v3577 = vsel %vm3531, %v3512, %v3134
    %v3579 = vsel %vm3531, %v3514, %v3136
    %v3581 = vsel %vm3531, %v3516, %v3138
    %v3583 = vsel %vm3531, %v3518, %v3140
    %v3585 = vsel %vm3531, %v3520, %v3142
    %v3587 = vsel %vm3531, %v3522, %v3144
    %v3589 = vsel %vm3531, %v3524, %v3146
    %v3591 = vsel %vm3531, %v3526, %v3148
    %v3593 = vsel %vm3531, %v3528, %v3150
    %v3595 = vsel %vm3531, %v3530, %v3152
    %v3597 = vsel %vm617, %v3533, %v3154
    %v3599 = vsel %vm617, %v3535, %v3156
    %v3601 = vsel %vm617, %v3537, %v3158
    %v3603 = vsel %vm617, %v3539, %v3160
    %v3605 = vsel %vm617, %v3541, %v3162
    %v3607 = vsel %vm617, %v3543, %v3164
    %v3609 = vsel %vm617, %v3545, %v3166
    %v3611 = vsel %vm617, %v3547, %v3168
    %v3613 = vsel %vm617, %v3549, %v3170
    %v3615 = vsel %vm617, %v3551, %v3172
    %v3617 = vsel %vm617, %v3553, %v3174
    %v3619 = vsel %vm617, %v3555, %v3176
    %v3621 = vsel %vm617, %v3557, %v3178
    %v3623 = vsel %vm617, %v3559, %v3180
    %v3625 = vsel %vm617, %v3561, %v3182
    %v3627 = vsel %vm617, %v3563, %v3184
    %v3629 = vsel %vm617, %v3565, %v3186
    %v3631 = vsel %vm617, %v3567, %v3188
    %v3633 = vsel %vm617, %v3569, %v3190
    %v3635 = vsel %vm617, %v3571, %v3192
    %v3637 = vsel %vm617, %v3573, %v3194
    %v3639 = vsel %vm617, %v3575, %v3196
    %v3641 = vsel %vm617, %v3577, %v3198
    %v3643 = vsel %vm617, %v3579, %v3200
    %v3645 = vsel %vm617, %v3581, %v3202
    %v3647 = vsel %vm617, %v3583, %v3204
    %v3649 = vsel %vm617, %v3585, %v3206
    %v3651 = vsel %vm617, %v3587, %v3208
    %v3653 = vsel %vm617, %v3589, %v3210
    %v3655 = vsel %vm617, %v3591, %v3212
    %v3657 = vsel %vm617, %v3593, %v3214
    %v3658 = vsel %vm617, %v3595, %v3184
    %vm3659 = vcmask 916480
    %v3661 = vsel %vm3659, %v3597, %v3216
    %v3664 = vsel %vm3659, %v3599, %v3218
    %v3667 = vsel %vm3659, %v3601, %v3220
    %v3670 = vsel %vm3659, %v3603, %v3222
    %v3673 = vsel %vm3659, %v3605, %v3224
    %v3676 = vsel %vm3659, %v3607, %v3226
    %v3679 = vsel %vm3659, %v3609, %v3228
    %v3682 = vsel %vm3659, %v3611, %v3230
    %v3685 = vsel %vm3659, %v3613, %v3232
    %v3688 = vsel %vm3659, %v3615, %v3234
    %v3691 = vsel %vm3659, %v3617, %v3236
    %v3694 = vsel %vm3659, %v3619, %v3238
    %v3697 = vsel %vm3659, %v3621, %v3240
    %v3700 = vsel %vm3659, %v3623, %v3242
    %v3703 = vsel %vm3659, %v3625, %v3244
    %v3706 = vsel %vm3659, %v3627, %v3246
    %v3709 = vsel %vm3659, %v3629, %v3248
    %v3712 = vsel %vm3659, %v3631, %v3250
    %v3715 = vsel %vm3659, %v3633, %v3252
    %v3718 = vsel %vm3659, %v3635, %v3254
    %v3721 = vsel %vm3659, %v3637, %v3256
    %v3724 = vsel %vm3659, %v3639, %v3258
    %v3727 = vsel %vm3659, %v3641, %v3260
    %v3730 = vsel %vm3659, %v3643, %v3262
    %v3733 = vsel %vm3659, %v3645, %v3264
    %v3736 = vsel %vm3659, %v3647, %v3266
    %v3739 = vsel %vm3659, %v3649, %v3268
    %v3742 = vsel %vm3659, %v3651, %v3270
    %v3745 = vsel %vm3659, %v3653, %v3272
    %v3748 = vsel %vm3659, %v3655, %v3274
    %v3751 = vsel %vm3659, %v3657, %v3276
    %v3753 = vsel %vm3659, %v3658, %v3246
    %v3755 = vld [vmem:[%s3] sm:$0xf]
    %v3756 = vld [vmem:[%s3 + $0x4] sm:$0xf]
    %v3757 = vld [vmem:[%s3 + $0x8] sm:$0xf]
    %v3758 = vld [vmem:[%s3 + $0xc] sm:$0xf]
    %v3759 = vld [vmem:[%s3 + $0x10] sm:$0xf]
    %v3760 = vld [vmem:[%s3 + $0x14] sm:$0xf]
    %v3761 = vld [vmem:[%s3 + $0x18] sm:$0xf]
    %v3762 = vld [vmem:[%s3 + $0x1c] sm:$0xf]
    %v3763 = vld [vmem:[%s3 + $0x20] sm:$0xf]
    %v3764 = vld [vmem:[%s3 + $0x24] sm:$0xf]
    %v3765 = vld [vmem:[%s3 + $0x28] sm:$0xf]
    %v3766 = vld [vmem:[%s3 + $0x2c] sm:$0xf]
    %v3767 = vld [vmem:[%s3 + $0x30] sm:$0xf]
    %v3768 = vld [vmem:[%s3 + $0x34] sm:$0xf]
    %v3769 = vld [vmem:[%s3 + $0x38] sm:$0xf]
    %v3770 = vld [vmem:[%s3 + $0x3c] sm:$0xf]
    %v3771 = vld [vmem:[%s3 + $0x40] sm:$0xf]
    %v3772 = vld [vmem:[%s3 + $0x44] sm:$0xf]
    %v3791 = vunpack.c.l.b16 %v3755
    %v3792 = vunpack.c.l.b16 %v3756
    %v3793 = vunpack.c.l.b16 %v3757
    %v3794 = vunpack.c.l.b16 %v3758
    %v3795 = vunpack.c.l.b16 %v3759
    %v3796 = vunpack.c.l.b16 %v3760
    %v3797 = vunpack.c.l.b16 %v3761
    %v3798 = vunpack.c.l.b16 %v3762
    %v3799 = vunpack.c.l.b16 %v3763
    %v3800 = vunpack.c.l.b16 %v3764
    %v3801 = vunpack.c.l.b16 %v3765
    %v3802 = vunpack.c.l.b16 %v3766
    %v3803 = vunpack.c.l.b16 %v3767
    %v3804 = vunpack.c.l.b16 %v3768
    %v3805 = vunpack.c.l.b16 %v3769
    %v3806 = vunpack.c.l.b16 %v3770
    %v3807 = vunpack.c.l.b16 %v3771
    %v3808 = vunpack.c.l.b16 %v3772
    %v3809 = vpack.c.b16 %v3792, %v3791
    %v3810 = vpack.c.b16 %v3794, %v3793
    %v3811 = vpack.c.b16 %v3796, %v3795
    %v3812 = vpack.c.b16 %v3798, %v3797
    %v3813 = vpack.c.b16 %v3800, %v3799
    %v3814 = vpack.c.b16 %v3802, %v3801
    %v3815 = vpack.c.b16 %v3804, %v3803
    %v3816 = vpack.c.b16 %v3806, %v3805
    %v3817 = vpack.c.b16 %v3808, %v3807
    %v3828 = vsel %vm3277, %v2780, 0
    %v3831 = vsel %vm3277, %v2783, 0
    %v3834 = vsel %vm3277, %v2786, 0
    %v3837 = vsel %vm3277, %v2789, 0
    %v3840 = vsel %vm3277, %v2792, 0
    %v3843 = vsel %vm3277, %v2795, 0
    %v3846 = vsel %vm3277, %v2798, 0
    %v3849 = vsel %vm3277, %v2801, 0
    %v3852 = vsel %vm3277, %v2804, 0
    %v3855 = vsel %vm3277, %v2807, 0
    %v3858 = vsel %vm3277, %v2810, 0
    %v3861 = vsel %vm3277, %v2813, 0
    %v3864 = vsel %vm3277, %v2816, 0
    %v3867 = vsel %vm3277, %v2819, 0
    %v3870 = vsel %vm3277, %v3085, 0
    %v3873 = vsel %vm3277, %v2774, 0
    %v3876 = vsel %vm3277, %v2825, 0
    %v3879 = vsel %vm3277, %v2828, 0
    %v3882 = vsel %vm3277, %v2831, 0
    %v3885 = vsel %vm3277, %v2834, 0
    %v3888 = vsel %vm3277, %v2837, 0
    %v3891 = vsel %vm3277, %v2840, 0
    %v3894 = vsel %vm3277, %v2843, 0
    %v3897 = vsel %vm3277, %v2846, 0
    %v3900 = vsel %vm3277, %v2849, 0
    %v3903 = vsel %vm3277, %v2852, 0
    %v3906 = vsel %vm3277, %v2855, 0
    %v3909 = vsel %vm3277, %v2858, 0
    %v3912 = vsel %vm3277, %v2861, 0
    %v3915 = vsel %vm3277, %v2864, 0
    %v3918 = vsel %vm3277, %v3088, 0
    %3920 = vmatpush.bf16.msra.mxu0 %v3816
    %3921 = vmatpush.bf16.msra.mxu0 %v3815
    %3922 = vmatpush.bf16.msra.mxu0 %v3814
    %3923 = vmatpush.bf16.msra.mxu0 %v3813
    %3924 = vmatpush.bf16.msra.mxu0 %v3812
    %3925 = vmatpush.bf16.msra.mxu0 %v3811
    %3926 = vmatpush.bf16.msra.mxu0 %v3810
    %3927 = vmatpush.bf16.msra.mxu0 %v3809
    %3928 = vmatmul.bf16.gmra.mxu0 %v3661
    %v3929 = vpop.f32.mrf.mxu0
    %v3930 = vadd.f32 0.0, %v3929
    %v3931 = vpop.f32.mrf.mxu0
    %v3932 = vadd.f32 0.0, %v3931
    %3933 = vmatmul.bf16.gmra.mxu0 %v3664
    %v3934 = vpop.f32.mrf.mxu0
    %v3935 = vadd.f32 0.0, %v3934
    %v3936 = vpop.f32.mrf.mxu0
    %v3937 = vadd.f32 0.0, %v3936
    %3938 = vmatmul.bf16.gmra.mxu0 %v3667
    %v3939 = vpop.f32.mrf.mxu0
    %v3940 = vadd.f32 0.0, %v3939
    %v3941 = vpop.f32.mrf.mxu0
    %v3942 = vadd.f32 0.0, %v3941
    %3943 = vmatmul.bf16.gmra.mxu0 %v3670
    %v3944 = vpop.f32.mrf.mxu0
    %v3945 = vadd.f32 0.0, %v3944
    %v3946 = vpop.f32.mrf.mxu0
    %v3947 = vadd.f32 0.0, %v3946
    %3948 = vmatmul.bf16.gmra.mxu0 %v3673
    %v3949 = vpop.f32.mrf.mxu0
    %v3950 = vadd.f32 0.0, %v3949
    %v3951 = vpop.f32.mrf.mxu0
    %v3952 = vadd.f32 0.0, %v3951
    %3953 = vmatmul.bf16.gmra.mxu0 %v3676
    %v3954 = vpop.f32.mrf.mxu0
    %v3955 = vadd.f32 0.0, %v3954
    %v3956 = vpop.f32.mrf.mxu0
    %v3957 = vadd.f32 0.0, %v3956
    %3958 = vmatmul.bf16.gmra.mxu0 %v3679
    %v3959 = vpop.f32.mrf.mxu0
    %v3960 = vadd.f32 0.0, %v3959
    %v3961 = vpop.f32.mrf.mxu0
    %v3962 = vadd.f32 0.0, %v3961
    %3963 = vmatmul.bf16.gmra.mxu0 %v3682
    %v3964 = vpop.f32.mrf.mxu0
    %v3965 = vadd.f32 0.0, %v3964
    %v3966 = vpop.f32.mrf.mxu0
    %v3967 = vadd.f32 0.0, %v3966
    %3968 = vmatmul.bf16.gmra.mxu0 %v3685
    %v3969 = vpop.f32.mrf.mxu0
    %v3970 = vadd.f32 0.0, %v3969
    %v3971 = vpop.f32.mrf.mxu0
    %v3972 = vadd.f32 0.0, %v3971
    %3973 = vmatmul.bf16.gmra.mxu0 %v3688
    %v3974 = vpop.f32.mrf.mxu0
    %v3975 = vadd.f32 0.0, %v3974
    %v3976 = vpop.f32.mrf.mxu0
    %v3977 = vadd.f32 0.0, %v3976
    %3978 = vmatmul.bf16.gmra.mxu0 %v3691
    %v3979 = vpop.f32.mrf.mxu0
    %v3980 = vadd.f32 0.0, %v3979
    %v3981 = vpop.f32.mrf.mxu0
    %v3982 = vadd.f32 0.0, %v3981
    %3983 = vmatmul.bf16.gmra.mxu0 %v3694
    %v3984 = vpop.f32.mrf.mxu0
    %v3985 = vadd.f32 0.0, %v3984
    %v3986 = vpop.f32.mrf.mxu0
    %v3987 = vadd.f32 0.0, %v3986
    %3988 = vmatmul.bf16.gmra.mxu0 %v3697
    %v3989 = vpop.f32.mrf.mxu0
    %v3990 = vadd.f32 0.0, %v3989
    %v3991 = vpop.f32.mrf.mxu0
    %v3992 = vadd.f32 0.0, %v3991
    %3993 = vmatmul.bf16.gmra.mxu0 %v3700
    %v3994 = vpop.f32.mrf.mxu0
    %v3995 = vadd.f32 0.0, %v3994
    %v3996 = vpop.f32.mrf.mxu0
    %v3997 = vadd.f32 0.0, %v3996
    %3998 = vmatmul.bf16.gmra.mxu0 %v3703
    %v3999 = vpop.f32.mrf.mxu0
    %v4000 = vadd.f32 0.0, %v3999
    %v4001 = vpop.f32.mrf.mxu0
    %v4002 = vadd.f32 0.0, %v4001
    %4003 = vmatmul.bf16.gmra.mxu0 %v3706
    %v4004 = vpop.f32.mrf.mxu0
    %v4005 = vadd.f32 0.0, %v4004
    %v4006 = vpop.f32.mrf.mxu0
    %v4007 = vadd.f32 0.0, %v4006
    %4008 = vmatmul.bf16.gmra.mxu0 %v3709
    %v4009 = vpop.f32.mrf.mxu0
    %v4010 = vadd.f32 0.0, %v4009
    %v4011 = vpop.f32.mrf.mxu0
    %v4012 = vadd.f32 0.0, %v4011
    %4013 = vmatmul.bf16.gmra.mxu0 %v3712
    %v4014 = vpop.f32.mrf.mxu0
    %v4015 = vadd.f32 0.0, %v4014
    %v4016 = vpop.f32.mrf.mxu0
    %v4017 = vadd.f32 0.0, %v4016
    %4018 = vmatmul.bf16.gmra.mxu0 %v3715
    %v4019 = vpop.f32.mrf.mxu0
    %v4020 = vadd.f32 0.0, %v4019
    %v4021 = vpop.f32.mrf.mxu0
    %v4022 = vadd.f32 0.0, %v4021
    %4023 = vmatmul.bf16.gmra.mxu0 %v3718
    %v4024 = vpop.f32.mrf.mxu0
    %v4025 = vadd.f32 0.0, %v4024
    %v4026 = vpop.f32.mrf.mxu0
    %v4027 = vadd.f32 0.0, %v4026
    %4028 = vmatmul.bf16.gmra.mxu0 %v3721
    %v4029 = vpop.f32.mrf.mxu0
    %v4030 = vadd.f32 0.0, %v4029
    %v4031 = vpop.f32.mrf.mxu0
    %v4032 = vadd.f32 0.0, %v4031
    %4033 = vmatmul.bf16.gmra.mxu0 %v3724
    %v4034 = vpop.f32.mrf.mxu0
    %v4035 = vadd.f32 0.0, %v4034
    %v4036 = vpop.f32.mrf.mxu0
    %v4037 = vadd.f32 0.0, %v4036
    %4038 = vmatmul.bf16.gmra.mxu0 %v3727
    %v4039 = vpop.f32.mrf.mxu0
    %v4040 = vadd.f32 0.0, %v4039
    %v4041 = vpop.f32.mrf.mxu0
    %v4042 = vadd.f32 0.0, %v4041
    %4043 = vmatmul.bf16.gmra.mxu0 %v3730
    %v4044 = vpop.f32.mrf.mxu0
    %v4045 = vadd.f32 0.0, %v4044
    %v4046 = vpop.f32.mrf.mxu0
    %v4047 = vadd.f32 0.0, %v4046
    %4048 = vmatmul.bf16.gmra.mxu0 %v3733
    %v4049 = vpop.f32.mrf.mxu0
    %v4050 = vadd.f32 0.0, %v4049
    %v4051 = vpop.f32.mrf.mxu0
    %v4052 = vadd.f32 0.0, %v4051
    %4053 = vmatmul.bf16.gmra.mxu0 %v3736
    %v4054 = vpop.f32.mrf.mxu0
    %v4055 = vadd.f32 0.0, %v4054
    %v4056 = vpop.f32.mrf.mxu0
    %v4057 = vadd.f32 0.0, %v4056
    %4058 = vmatmul.bf16.gmra.mxu0 %v3739
    %v4059 = vpop.f32.mrf.mxu0
    %v4060 = vadd.f32 0.0, %v4059
    %v4061 = vpop.f32.mrf.mxu0
    %v4062 = vadd.f32 0.0, %v4061
    %4063 = vmatmul.bf16.gmra.mxu0 %v3742
    %v4064 = vpop.f32.mrf.mxu0
    %v4065 = vadd.f32 0.0, %v4064
    %v4066 = vpop.f32.mrf.mxu0
    %v4067 = vadd.f32 0.0, %v4066
    %4068 = vmatmul.bf16.gmra.mxu0 %v3745
    %v4069 = vpop.f32.mrf.mxu0
    %v4070 = vadd.f32 0.0, %v4069
    %v4071 = vpop.f32.mrf.mxu0
    %v4072 = vadd.f32 0.0, %v4071
    %4073 = vmatmul.bf16.gmra.mxu0 %v3748
    %v4074 = vpop.f32.mrf.mxu0
    %v4075 = vadd.f32 0.0, %v4074
    %v4076 = vpop.f32.mrf.mxu0
    %v4077 = vadd.f32 0.0, %v4076
    %4078 = vmatmul.bf16.gmra.mxu0 %v3751
    %v4079 = vpop.f32.mrf.mxu0
    %v4080 = vadd.f32 0.0, %v4079
    %v4081 = vpop.f32.mrf.mxu0
    %v4082 = vadd.f32 0.0, %v4081
    %4083 = vmatmul.bf16.gmra.mxu0 %v3753
    %v4084 = vpop.f32.mrf.mxu0
    %v4085 = vadd.f32 0.0, %v4084
    %v4086 = vpop.f32.mrf.mxu0
    %v4087 = vadd.f32 0.0, %v4086
    %4088 = vdwg.mxu0
    %4089 = vmatpush.bf16.msra.mxu0 0
    %4090 = vmatpush.bf16.msra.mxu0 0
    %4091 = vmatpush.bf16.msra.mxu0 0
    %4092 = vmatpush.bf16.msra.mxu0 0
    %4093 = vmatpush.bf16.msra.mxu0 0
    %4094 = vmatpush.bf16.msra.mxu0 0
    %4095 = vmatpush.bf16.msra.mxu0 0
    %4096 = vmatpush.bf16.msra.mxu0 %v3817
    %4097 = vmatmul.bf16.gmra.mxu0 %v3828
    %v4098 = vpop.f32.mrf.mxu0
    %v4099 = vadd.f32 %v3930, %v4098
    %v4100 = vpop.f32.mrf.mxu0
    %v4101 = vadd.f32 %v3932, %v4100
    %4102 = vmatmul.bf16.gmra.mxu0 %v3831
    %v4103 = vpop.f32.mrf.mxu0
    %v4104 = vadd.f32 %v3935, %v4103
    %v4105 = vpop.f32.mrf.mxu0
    %v4106 = vadd.f32 %v3937, %v4105
    %4107 = vmatmul.bf16.gmra.mxu0 %v3834
    %v4108 = vpop.f32.mrf.mxu0
    %v4109 = vadd.f32 %v3940, %v4108
    %v4110 = vpop.f32.mrf.mxu0
    %v4111 = vadd.f32 %v3942, %v4110
    %4112 = vmatmul.bf16.gmra.mxu0 %v3837
    %v4113 = vpop.f32.mrf.mxu0
    %v4114 = vadd.f32 %v3945, %v4113
    %v4115 = vpop.f32.mrf.mxu0
    %v4116 = vadd.f32 %v3947, %v4115
    %4117 = vmatmul.bf16.gmra.mxu0 %v3840
    %v4118 = vpop.f32.mrf.mxu0
    %v4119 = vadd.f32 %v3950, %v4118
    %v4120 = vpop.f32.mrf.mxu0
    %v4121 = vadd.f32 %v3952, %v4120
    %4122 = vmatmul.bf16.gmra.mxu0 %v3843
    %v4123 = vpop.f32.mrf.mxu0
    %v4124 = vadd.f32 %v3955, %v4123
    %v4125 = vpop.f32.mrf.mxu0
    %v4126 = vadd.f32 %v3957, %v4125
    %4127 = vmatmul.bf16.gmra.mxu0 %v3846
    %v4128 = vpop.f32.mrf.mxu0
    %v4129 = vadd.f32 %v3960, %v4128
    %v4130 = vpop.f32.mrf.mxu0
    %v4131 = vadd.f32 %v3962, %v4130
    %4132 = vmatmul.bf16.gmra.mxu0 %v3849
    %v4133 = vpop.f32.mrf.mxu0
    %v4134 = vadd.f32 %v3965, %v4133
    %v4135 = vpop.f32.mrf.mxu0
    %v4136 = vadd.f32 %v3967, %v4135
    %4137 = vmatmul.bf16.gmra.mxu0 %v3852
    %v4138 = vpop.f32.mrf.mxu0
    %v4139 = vadd.f32 %v3970, %v4138
    %v4140 = vpop.f32.mrf.mxu0
    %v4141 = vadd.f32 %v3972, %v4140
    %4142 = vmatmul.bf16.gmra.mxu0 %v3855
    %v4143 = vpop.f32.mrf.mxu0
    %v4144 = vadd.f32 %v3975, %v4143
    %v4145 = vpop.f32.mrf.mxu0
    %v4146 = vadd.f32 %v3977, %v4145
    %4147 = vmatmul.bf16.gmra.mxu0 %v3858
    %v4148 = vpop.f32.mrf.mxu0
    %v4149 = vadd.f32 %v3980, %v4148
    %v4150 = vpop.f32.mrf.mxu0
    %v4151 = vadd.f32 %v3982, %v4150
    %4152 = vmatmul.bf16.gmra.mxu0 %v3861
    %v4153 = vpop.f32.mrf.mxu0
    %v4154 = vadd.f32 %v3985, %v4153
    %v4155 = vpop.f32.mrf.mxu0
    %v4156 = vadd.f32 %v3987, %v4155
    %4157 = vmatmul.bf16.gmra.mxu0 %v3864
    %v4158 = vpop.f32.mrf.mxu0
    %v4159 = vadd.f32 %v3990, %v4158
    %v4160 = vpop.f32.mrf.mxu0
    %v4161 = vadd.f32 %v3992, %v4160
    %4162 = vmatmul.bf16.gmra.mxu0 %v3867
    %v4163 = vpop.f32.mrf.mxu0
    %v4164 = vadd.f32 %v3995, %v4163
    %v4165 = vpop.f32.mrf.mxu0
    %v4166 = vadd.f32 %v3997, %v4165
    %4167 = vmatmul.bf16.gmra.mxu0 %v3870
    %v4168 = vpop.f32.mrf.mxu0
    %v4169 = vadd.f32 %v4000, %v4168
    %v4170 = vpop.f32.mrf.mxu0
    %v4171 = vadd.f32 %v4002, %v4170
    %4172 = vmatmul.bf16.gmra.mxu0 %v3873
    %v4173 = vpop.f32.mrf.mxu0
    %v4174 = vadd.f32 %v4005, %v4173
    %v4175 = vpop.f32.mrf.mxu0
    %v4176 = vadd.f32 %v4007, %v4175
    %4177 = vmatmul.bf16.gmra.mxu0 %v3876
    %v4178 = vpop.f32.mrf.mxu0
    %v4179 = vadd.f32 %v4010, %v4178
    %v4180 = vpop.f32.mrf.mxu0
    %v4181 = vadd.f32 %v4012, %v4180
    %4182 = vmatmul.bf16.gmra.mxu0 %v3879
    %v4183 = vpop.f32.mrf.mxu0
    %v4184 = vadd.f32 %v4015, %v4183
    %v4185 = vpop.f32.mrf.mxu0
    %v4186 = vadd.f32 %v4017, %v4185
    %4187 = vmatmul.bf16.gmra.mxu0 %v3882
    %v4188 = vpop.f32.mrf.mxu0
    %v4189 = vadd.f32 %v4020, %v4188
    %v4190 = vpop.f32.mrf.mxu0
    %v4191 = vadd.f32 %v4022, %v4190
    %4192 = vmatmul.bf16.gmra.mxu0 %v3885
    %v4193 = vpop.f32.mrf.mxu0
    %v4194 = vadd.f32 %v4025, %v4193
    %v4195 = vpop.f32.mrf.mxu0
    %v4196 = vadd.f32 %v4027, %v4195
    %4197 = vmatmul.bf16.gmra.mxu0 %v3888
    %v4198 = vpop.f32.mrf.mxu0
    %v4199 = vadd.f32 %v4030, %v4198
    %v4200 = vpop.f32.mrf.mxu0
    %v4201 = vadd.f32 %v4032, %v4200
    %4202 = vmatmul.bf16.gmra.mxu0 %v3891
    %v4203 = vpop.f32.mrf.mxu0
    %v4204 = vadd.f32 %v4035, %v4203
    %v4205 = vpop.f32.mrf.mxu0
    %v4206 = vadd.f32 %v4037, %v4205
    %4207 = vmatmul.bf16.gmra.mxu0 %v3894
    %v4208 = vpop.f32.mrf.mxu0
    %v4209 = vadd.f32 %v4040, %v4208
    %v4210 = vpop.f32.mrf.mxu0
    %v4211 = vadd.f32 %v4042, %v4210
    %4212 = vmatmul.bf16.gmra.mxu0 %v3897
    %v4213 = vpop.f32.mrf.mxu0
    %v4214 = vadd.f32 %v4045, %v4213
    %v4215 = vpop.f32.mrf.mxu0
    %v4216 = vadd.f32 %v4047, %v4215
    %4217 = vmatmul.bf16.gmra.mxu0 %v3900
    %v4218 = vpop.f32.mrf.mxu0
    %v4219 = vadd.f32 %v4050, %v4218
    %v4220 = vpop.f32.mrf.mxu0
    %v4221 = vadd.f32 %v4052, %v4220
    %4222 = vmatmul.bf16.gmra.mxu0 %v3903
    %v4223 = vpop.f32.mrf.mxu0
    %v4224 = vadd.f32 %v4055, %v4223
    %v4225 = vpop.f32.mrf.mxu0
    %v4226 = vadd.f32 %v4057, %v4225
    %4227 = vmatmul.bf16.gmra.mxu0 %v3906
    %v4228 = vpop.f32.mrf.mxu0
    %v4229 = vadd.f32 %v4060, %v4228
    %v4230 = vpop.f32.mrf.mxu0
    %v4231 = vadd.f32 %v4062, %v4230
    %4232 = vmatmul.bf16.gmra.mxu0 %v3909
    %v4233 = vpop.f32.mrf.mxu0
    %v4234 = vadd.f32 %v4065, %v4233
    %v4235 = vpop.f32.mrf.mxu0
    %v4236 = vadd.f32 %v4067, %v4235
    %4237 = vmatmul.bf16.gmra.mxu0 %v3912
    %v4238 = vpop.f32.mrf.mxu0
    %v4239 = vadd.f32 %v4070, %v4238
    %v4240 = vpop.f32.mrf.mxu0
    %v4241 = vadd.f32 %v4072, %v4240
    %4242 = vmatmul.bf16.gmra.mxu0 %v3915
    %v4243 = vpop.f32.mrf.mxu0
    %v4244 = vadd.f32 %v4075, %v4243
    %v4245 = vpop.f32.mrf.mxu0
    %v4246 = vadd.f32 %v4077, %v4245
    %4247 = vmatmul.bf16.gmra.mxu0 %v3918
    %v4248 = vpop.f32.mrf.mxu0
    %v4249 = vadd.f32 %v4080, %v4248
    %v4250 = vpop.f32.mrf.mxu0
    %v4251 = vadd.f32 %v4082, %v4250
    %4252 = vmatmul.bf16.gmra.mxu0 %v3873
    %v4253 = vpop.f32.mrf.mxu0
    %v4254 = vadd.f32 %v4085, %v4253
    %v4255 = vpop.f32.mrf.mxu0
    %v4256 = vadd.f32 %v4087, %v4255
    %4257 = vdwg.mxu0
    %v4258 = vperm.slane %v25, 2
    %v4259 = vmul.f32 %v4099, %v4258
    %v4260 = vmul.f32 %v4101, %v4258
    %v4261 = vmul.f32 %v4104, %v4258
    %v4262 = vmul.f32 %v4106, %v4258
    %v4263 = vmul.f32 %v4109, %v4258
    %v4264 = vmul.f32 %v4111, %v4258
    %v4265 = vmul.f32 %v4114, %v4258
    %v4266 = vmul.f32 %v4116, %v4258
    %v4267 = vmul.f32 %v4119, %v4258
    %v4268 = vmul.f32 %v4121, %v4258
    %v4269 = vmul.f32 %v4124, %v4258
    %v4270 = vmul.f32 %v4126, %v4258
    %v4271 = vmul.f32 %v4129, %v4258
    %v4272 = vmul.f32 %v4131, %v4258
    %v4273 = vmul.f32 %v4134, %v4258
    %v4274 = vmul.f32 %v4136, %v4258
    %v4275 = vmul.f32 %v4139, %v4258
    %v4276 = vmul.f32 %v4141, %v4258
    %v4277 = vmul.f32 %v4144, %v4258
    %v4278 = vmul.f32 %v4146, %v4258
    %v4279 = vmul.f32 %v4149, %v4258
    %v4280 = vmul.f32 %v4151, %v4258
    %v4281 = vmul.f32 %v4154, %v4258
    %v4282 = vmul.f32 %v4156, %v4258
    %v4283 = vmul.f32 %v4159, %v4258
    %v4284 = vmul.f32 %v4161, %v4258
    %v4285 = vmul.f32 %v4164, %v4258
    %v4286 = vmul.f32 %v4166, %v4258
    %v4287 = vmul.f32 %v4169, %v4258
    %v4288 = vmul.f32 %v4171, %v4258
    %v4289 = vmul.f32 %v4174, %v4258
    %v4290 = vmul.f32 %v4176, %v4258
    %v4291 = vmul.f32 %v4179, %v4258
    %v4292 = vmul.f32 %v4181, %v4258
    %v4293 = vmul.f32 %v4184, %v4258
    %v4294 = vmul.f32 %v4186, %v4258
    %v4295 = vmul.f32 %v4189, %v4258
    %v4296 = vmul.f32 %v4191, %v4258
    %v4297 = vmul.f32 %v4194, %v4258
    %v4298 = vmul.f32 %v4196, %v4258
    %v4299 = vmul.f32 %v4199, %v4258
    %v4300 = vmul.f32 %v4201, %v4258
    %v4301 = vmul.f32 %v4204, %v4258
    %v4302 = vmul.f32 %v4206, %v4258
    %v4303 = vmul.f32 %v4209, %v4258
    %v4304 = vmul.f32 %v4211, %v4258
    %v4305 = vmul.f32 %v4214, %v4258
    %v4306 = vmul.f32 %v4216, %v4258
    %v4307 = vmul.f32 %v4219, %v4258
    %v4308 = vmul.f32 %v4221, %v4258
    %v4309 = vmul.f32 %v4224, %v4258
    %v4310 = vmul.f32 %v4226, %v4258
    %v4311 = vmul.f32 %v4229, %v4258
    %v4312 = vmul.f32 %v4231, %v4258
    %v4313 = vmul.f32 %v4234, %v4258
    %v4314 = vmul.f32 %v4236, %v4258
    %v4315 = vmul.f32 %v4239, %v4258
    %v4316 = vmul.f32 %v4241, %v4258
    %v4317 = vmul.f32 %v4244, %v4258
    %v4318 = vmul.f32 %v4246, %v4258
    %v4319 = vmul.f32 %v4249, %v4258
    %v4320 = vmul.f32 %v4251, %v4258
    %v4321 = vmul.f32 %v4254, %v4258
    %v4322 = vmul.f32 %v4256, %v4258
    %v4323 = vperm.slane %v25, 3
    %v4324 = vadd.f32 %v4259, %v4323
    %v4325 = vadd.f32 %v4260, %v4323
    %v4326 = vadd.f32 %v4261, %v4323
    %v4327 = vadd.f32 %v4262, %v4323
    %v4328 = vadd.f32 %v4263, %v4323
    %v4329 = vadd.f32 %v4264, %v4323
    %v4330 = vadd.f32 %v4265, %v4323
    %v4331 = vadd.f32 %v4266, %v4323
    %v4332 = vadd.f32 %v4267, %v4323
    %v4333 = vadd.f32 %v4268, %v4323
    %v4334 = vadd.f32 %v4269, %v4323
    %v4335 = vadd.f32 %v4270, %v4323
    %v4336 = vadd.f32 %v4271, %v4323
    %v4337 = vadd.f32 %v4272, %v4323
    %v4338 = vadd.f32 %v4273, %v4323
    %v4339 = vadd.f32 %v4274, %v4323
    %v4340 = vadd.f32 %v4275, %v4323
    %v4341 = vadd.f32 %v4276, %v4323
    %v4342 = vadd.f32 %v4277, %v4323
    %v4343 = vadd.f32 %v4278, %v4323
    %v4344 = vadd.f32 %v4279, %v4323
    %v4345 = vadd.f32 %v4280, %v4323
    %v4346 = vadd.f32 %v4281, %v4323
    %v4347 = vadd.f32 %v4282, %v4323
    %v4348 = vadd.f32 %v4283, %v4323
    %v4349 = vadd.f32 %v4284, %v4323
    %v4350 = vadd.f32 %v4285, %v4323
    %v4351 = vadd.f32 %v4286, %v4323
    %v4352 = vadd.f32 %v4287, %v4323
    %v4353 = vadd.f32 %v4288, %v4323
    %v4354 = vadd.f32 %v4289, %v4323
    %v4355 = vadd.f32 %v4290, %v4323
    %v4356 = vadd.f32 %v4291, %v4323
    %v4357 = vadd.f32 %v4292, %v4323
    %v4358 = vadd.f32 %v4293, %v4323
    %v4359 = vadd.f32 %v4294, %v4323
    %v4360 = vadd.f32 %v4295, %v4323
    %v4361 = vadd.f32 %v4296, %v4323
    %v4362 = vadd.f32 %v4297, %v4323
    %v4363 = vadd.f32 %v4298, %v4323
    %v4364 = vadd.f32 %v4299, %v4323
    %v4365 = vadd.f32 %v4300, %v4323
    %v4366 = vadd.f32 %v4301, %v4323
    %v4367 = vadd.f32 %v4302, %v4323
    %v4368 = vadd.f32 %v4303, %v4323
    %v4369 = vadd.f32 %v4304, %v4323
    %v4370 = vadd.f32 %v4305, %v4323
    %v4371 = vadd.f32 %v4306, %v4323
    %v4372 = vadd.f32 %v4307, %v4323
    %v4373 = vadd.f32 %v4308, %v4323
    %v4374 = vadd.f32 %v4309, %v4323
    %v4375 = vadd.f32 %v4310, %v4323
    %v4376 = vadd.f32 %v4311, %v4323
    %v4377 = vadd.f32 %v4312, %v4323
    %v4378 = vadd.f32 %v4313, %v4323
    %v4379 = vadd.f32 %v4314, %v4323
    %v4380 = vadd.f32 %v4315, %v4323
    %v4381 = vadd.f32 %v4316, %v4323
    %v4382 = vadd.f32 %v4317, %v4323
    %v4383 = vadd.f32 %v4318, %v4323
    %v4384 = vadd.f32 %v4319, %v4323
    %v4385 = vadd.f32 %v4320, %v4323
    %v4386 = vadd.f32 %v4321, %v4323
    %v4387 = vadd.f32 %v4322, %v4323
    %4452 = vrot.lane.b32.xlu0 %v1537, 112
    %v4453 = vpop.permute.xlu0 %4452
    %4454 = vrot.lane.b32.xlu0 %v1539, 112
    %v4455 = vpop.permute.xlu0 %4454
    %4456 = vrot.lane.b32.xlu0 %v1542, 112
    %v4457 = vpop.permute.xlu0 %4456
    %4458 = vrot.lane.b32.xlu0 %v1544, 112
    %v4459 = vpop.permute.xlu0 %4458
    %4460 = vrot.lane.b32.xlu0 %v1547, 112
    %v4461 = vpop.permute.xlu0 %4460
    %4462 = vrot.lane.b32.xlu0 %v1549, 112
    %v4463 = vpop.permute.xlu0 %4462
    %4464 = vrot.lane.b32.xlu0 %v1552, 112
    %v4465 = vpop.permute.xlu0 %4464
    %4466 = vrot.lane.b32.xlu0 %v1554, 112
    %v4467 = vpop.permute.xlu0 %4466
    %4468 = vrot.lane.b32.xlu0 %v1557, 112
    %v4469 = vpop.permute.xlu0 %4468
    %4470 = vrot.lane.b32.xlu0 %v1559, 112
    %v4471 = vpop.permute.xlu0 %4470
    %4472 = vrot.lane.b32.xlu0 %v1562, 112
    %v4473 = vpop.permute.xlu0 %4472
    %4474 = vrot.lane.b32.xlu0 %v1564, 112
    %v4475 = vpop.permute.xlu0 %4474
    %4476 = vrot.lane.b32.xlu0 %v1567, 112
    %v4477 = vpop.permute.xlu0 %4476
    %4478 = vrot.lane.b32.xlu0 %v1569, 112
    %v4479 = vpop.permute.xlu0 %4478
    %4480 = vrot.lane.b32.xlu0 %v1572, 112
    %v4481 = vpop.permute.xlu0 %4480
    %4482 = vrot.lane.b32.xlu0 %v1574, 112
    %v4483 = vpop.permute.xlu0 %4482
    %4484 = vrot.lane.b32.xlu0 %v1577, 112
    %v4485 = vpop.permute.xlu0 %4484
    %4486 = vrot.lane.b32.xlu0 %v1579, 112
    %v4487 = vpop.permute.xlu0 %4486
    %4488 = vrot.lane.b32.xlu0 %v1582, 112
    %v4489 = vpop.permute.xlu0 %4488
    %4490 = vrot.lane.b32.xlu0 %v1584, 112
    %v4491 = vpop.permute.xlu0 %4490
    %4492 = vrot.lane.b32.xlu0 %v1587, 112
    %v4493 = vpop.permute.xlu0 %4492
    %4494 = vrot.lane.b32.xlu0 %v1589, 112
    %v4495 = vpop.permute.xlu0 %4494
    %4496 = vrot.lane.b32.xlu0 %v1592, 112
    %v4497 = vpop.permute.xlu0 %4496
    %4498 = vrot.lane.b32.xlu0 %v1594, 112
    %v4499 = vpop.permute.xlu0 %4498
    %4500 = vrot.lane.b32.xlu0 %v1597, 112
    %v4501 = vpop.permute.xlu0 %4500
    %4502 = vrot.lane.b32.xlu0 %v1599, 112
    %v4503 = vpop.permute.xlu0 %4502
    %4504 = vrot.lane.b32.xlu0 %v1602, 112
    %v4505 = vpop.permute.xlu0 %4504
    %4506 = vrot.lane.b32.xlu0 %v1604, 112
    %v4507 = vpop.permute.xlu0 %4506
    %4508 = vrot.lane.b32.xlu0 %v1607, 112
    %v4509 = vpop.permute.xlu0 %4508
    %4510 = vrot.lane.b32.xlu0 %v1609, 112
    %v4511 = vpop.permute.xlu0 %4510
    %4512 = vrot.lane.b32.xlu0 %v1612, 112
    %v4513 = vpop.permute.xlu0 %4512
    %4514 = vrot.lane.b32.xlu0 %v1614, 112
    %v4515 = vpop.permute.xlu0 %4514
    %4516 = vrot.lane.b32.xlu0 %v1617, 112
    %v4517 = vpop.permute.xlu0 %4516
    %4518 = vrot.lane.b32.xlu0 %v1619, 112
    %v4519 = vpop.permute.xlu0 %4518
    %4520 = vrot.lane.b32.xlu0 %v1622, 112
    %v4521 = vpop.permute.xlu0 %4520
    %4522 = vrot.lane.b32.xlu0 %v1624, 112
    %v4523 = vpop.permute.xlu0 %4522
    %4524 = vrot.lane.b32.xlu0 %v1627, 112
    %v4525 = vpop.permute.xlu0 %4524
    %4526 = vrot.lane.b32.xlu0 %v1629, 112
    %v4527 = vpop.permute.xlu0 %4526
    %4528 = vrot.lane.b32.xlu0 %v1632, 112
    %v4529 = vpop.permute.xlu0 %4528
    %4530 = vrot.lane.b32.xlu0 %v1634, 112
    %v4531 = vpop.permute.xlu0 %4530
    %4532 = vrot.lane.b32.xlu0 %v1637, 112
    %v4533 = vpop.permute.xlu0 %4532
    %4534 = vrot.lane.b32.xlu0 %v1639, 112
    %v4535 = vpop.permute.xlu0 %4534
    %4536 = vrot.lane.b32.xlu0 %v1642, 112
    %v4537 = vpop.permute.xlu0 %4536
    %4538 = vrot.lane.b32.xlu0 %v1644, 112
    %v4539 = vpop.permute.xlu0 %4538
    %4540 = vrot.lane.b32.xlu0 %v1647, 112
    %v4541 = vpop.permute.xlu0 %4540
    %4542 = vrot.lane.b32.xlu0 %v1649, 112
    %v4543 = vpop.permute.xlu0 %4542
    %4544 = vrot.lane.b32.xlu0 %v1652, 112
    %v4545 = vpop.permute.xlu0 %4544
    %4546 = vrot.lane.b32.xlu0 %v1654, 112
    %v4547 = vpop.permute.xlu0 %4546
    %4548 = vrot.lane.b32.xlu0 %v1657, 112
    %v4549 = vpop.permute.xlu0 %4548
    %4550 = vrot.lane.b32.xlu0 %v1659, 112
    %v4551 = vpop.permute.xlu0 %4550
    %4552 = vrot.lane.b32.xlu0 %v1662, 112
    %v4553 = vpop.permute.xlu0 %4552
    %4554 = vrot.lane.b32.xlu0 %v1664, 112
    %v4555 = vpop.permute.xlu0 %4554
    %4556 = vrot.lane.b32.xlu0 %v1667, 112
    %v4557 = vpop.permute.xlu0 %4556
    %4558 = vrot.lane.b32.xlu0 %v1669, 112
    %v4559 = vpop.permute.xlu0 %4558
    %4560 = vrot.lane.b32.xlu0 %v1672, 112
    %v4561 = vpop.permute.xlu0 %4560
    %4562 = vrot.lane.b32.xlu0 %v1674, 112
    %v4563 = vpop.permute.xlu0 %4562
    %4564 = vrot.lane.b32.xlu0 %v1677, 112
    %v4565 = vpop.permute.xlu0 %4564
    %4566 = vrot.lane.b32.xlu0 %v1679, 112
    %v4567 = vpop.permute.xlu0 %4566
    %4568 = vrot.lane.b32.xlu0 %v1682, 112
    %v4569 = vpop.permute.xlu0 %4568
    %4570 = vrot.lane.b32.xlu0 %v1684, 112
    %v4571 = vpop.permute.xlu0 %4570
    %4572 = vrot.lane.b32.xlu0 %v1687, 112
    %v4573 = vpop.permute.xlu0 %4572
    %4574 = vrot.lane.b32.xlu0 %v1689, 112
    %v4575 = vpop.permute.xlu0 %4574
    %4576 = vrot.lane.b32.xlu0 %v1692, 112
    %v4577 = vpop.permute.xlu0 %4576
    %4578 = vrot.lane.b32.xlu0 %v1694, 112
    %v4579 = vpop.permute.xlu0 %4578
    %v4644 = vadd.f32 %v4324, %v4453
    %v4645 = vadd.f32 %v4325, %v4455
    %v4646 = vadd.f32 %v4326, %v4457
    %v4647 = vadd.f32 %v4327, %v4459
    %v4648 = vadd.f32 %v4328, %v4461
    %v4649 = vadd.f32 %v4329, %v4463
    %v4650 = vadd.f32 %v4330, %v4465
    %v4651 = vadd.f32 %v4331, %v4467
    %v4652 = vadd.f32 %v4332, %v4469
    %v4653 = vadd.f32 %v4333, %v4471
    %v4654 = vadd.f32 %v4334, %v4473
    %v4655 = vadd.f32 %v4335, %v4475
    %v4656 = vadd.f32 %v4336, %v4477
    %v4657 = vadd.f32 %v4337, %v4479
    %v4658 = vadd.f32 %v4338, %v4481
    %v4659 = vadd.f32 %v4339, %v4483
    %v4660 = vadd.f32 %v4340, %v4485
    %v4661 = vadd.f32 %v4341, %v4487
    %v4662 = vadd.f32 %v4342, %v4489
    %v4663 = vadd.f32 %v4343, %v4491
    %v4664 = vadd.f32 %v4344, %v4493
    %v4665 = vadd.f32 %v4345, %v4495
    %v4666 = vadd.f32 %v4346, %v4497
    %v4667 = vadd.f32 %v4347, %v4499
    %v4668 = vadd.f32 %v4348, %v4501
    %v4669 = vadd.f32 %v4349, %v4503
    %v4670 = vadd.f32 %v4350, %v4505
    %v4671 = vadd.f32 %v4351, %v4507
    %v4672 = vadd.f32 %v4352, %v4509
    %v4673 = vadd.f32 %v4353, %v4511
    %v4674 = vadd.f32 %v4354, %v4513
    %v4675 = vadd.f32 %v4355, %v4515
    %v4676 = vadd.f32 %v4356, %v4517
    %v4677 = vadd.f32 %v4357, %v4519
    %v4678 = vadd.f32 %v4358, %v4521
    %v4679 = vadd.f32 %v4359, %v4523
    %v4680 = vadd.f32 %v4360, %v4525
    %v4681 = vadd.f32 %v4361, %v4527
    %v4682 = vadd.f32 %v4362, %v4529
    %v4683 = vadd.f32 %v4363, %v4531
    %v4684 = vadd.f32 %v4364, %v4533
    %v4685 = vadd.f32 %v4365, %v4535
    %v4686 = vadd.f32 %v4366, %v4537
    %v4687 = vadd.f32 %v4367, %v4539
    %v4688 = vadd.f32 %v4368, %v4541
    %v4689 = vadd.f32 %v4369, %v4543
    %v4690 = vadd.f32 %v4370, %v4545
    %v4691 = vadd.f32 %v4371, %v4547
    %v4692 = vadd.f32 %v4372, %v4549
    %v4693 = vadd.f32 %v4373, %v4551
    %v4694 = vadd.f32 %v4374, %v4553
    %v4695 = vadd.f32 %v4375, %v4555
    %v4696 = vadd.f32 %v4376, %v4557
    %v4697 = vadd.f32 %v4377, %v4559
    %v4698 = vadd.f32 %v4378, %v4561
    %v4699 = vadd.f32 %v4379, %v4563
    %v4700 = vadd.f32 %v4380, %v4565
    %v4701 = vadd.f32 %v4381, %v4567
    %v4702 = vadd.f32 %v4382, %v4569
    %v4703 = vadd.f32 %v4383, %v4571
    %v4704 = vadd.f32 %v4384, %v4573
    %v4705 = vadd.f32 %v4385, %v4575
    %v4706 = vadd.f32 %v4386, %v4577
    %v4707 = vadd.f32 %v4387, %v4579
    %v4708 = vmax.f32 %v4644, 0.0
    %v4709 = vmax.f32 %v4645, 0.0
    %v4710 = vmax.f32 %v4646, 0.0
    %v4711 = vmax.f32 %v4647, 0.0
    %v4712 = vmax.f32 %v4648, 0.0
    %v4713 = vmax.f32 %v4649, 0.0
    %v4714 = vmax.f32 %v4650, 0.0
    %v4715 = vmax.f32 %v4651, 0.0
    %v4716 = vmax.f32 %v4652, 0.0
    %v4717 = vmax.f32 %v4653, 0.0
    %v4718 = vmax.f32 %v4654, 0.0
    %v4719 = vmax.f32 %v4655, 0.0
    %v4720 = vmax.f32 %v4656, 0.0
    %v4721 = vmax.f32 %v4657, 0.0
    %v4722 = vmax.f32 %v4658, 0.0
    %v4723 = vmax.f32 %v4659, 0.0
    %v4724 = vmax.f32 %v4660, 0.0
    %v4725 = vmax.f32 %v4661, 0.0
    %v4726 = vmax.f32 %v4662, 0.0
    %v4727 = vmax.f32 %v4663, 0.0
    %v4728 = vmax.f32 %v4664, 0.0
    %v4729 = vmax.f32 %v4665, 0.0
    %v4730 = vmax.f32 %v4666, 0.0
    %v4731 = vmax.f32 %v4667, 0.0
    %v4732 = vmax.f32 %v4668, 0.0
    %v4733 = vmax.f32 %v4669, 0.0
    %v4734 = vmax.f32 %v4670, 0.0
    %v4735 = vmax.f32 %v4671, 0.0
    %v4736 = vmax.f32 %v4672, 0.0
    %v4737 = vmax.f32 %v4673, 0.0
    %v4738 = vmax.f32 %v4674, 0.0
    %v4739 = vmax.f32 %v4675, 0.0
    %v4740 = vmax.f32 %v4676, 0.0
    %v4741 = vmax.f32 %v4677, 0.0
    %v4742 = vmax.f32 %v4678, 0.0
    %v4743 = vmax.f32 %v4679, 0.0
    %v4744 = vmax.f32 %v4680, 0.0
    %v4745 = vmax.f32 %v4681, 0.0
    %v4746 = vmax.f32 %v4682, 0.0
    %v4747 = vmax.f32 %v4683, 0.0
    %v4748 = vmax.f32 %v4684, 0.0
    %v4749 = vmax.f32 %v4685, 0.0
    %v4750 = vmax.f32 %v4686, 0.0
    %v4751 = vmax.f32 %v4687, 0.0
    %v4752 = vmax.f32 %v4688, 0.0
    %v4753 = vmax.f32 %v4689, 0.0
    %v4754 = vmax.f32 %v4690, 0.0
    %v4755 = vmax.f32 %v4691, 0.0
    %v4756 = vmax.f32 %v4692, 0.0
    %v4757 = vmax.f32 %v4693, 0.0
    %v4758 = vmax.f32 %v4694, 0.0
    %v4759 = vmax.f32 %v4695, 0.0
    %v4760 = vmax.f32 %v4696, 0.0
    %v4761 = vmax.f32 %v4697, 0.0
    %v4762 = vmax.f32 %v4698, 0.0
    %v4763 = vmax.f32 %v4699, 0.0
    %v4764 = vmax.f32 %v4700, 0.0
    %v4765 = vmax.f32 %v4701, 0.0
    %v4766 = vmax.f32 %v4702, 0.0
    %v4767 = vmax.f32 %v4703, 0.0
    %v4768 = vmax.f32 %v4704, 0.0
    %v4769 = vmax.f32 %v4705, 0.0
    %v4770 = vmax.f32 %v4706, 0.0
    %v4771 = vmax.f32 %v4707, 0.0
    %v4772 = vpack.c.bf16 %v4708, %v4708
    %v4773 = vpack.c.bf16 %v4709, %v4709
    %v4774 = vpack.c.bf16 %v4710, %v4710
    %v4775 = vpack.c.bf16 %v4711, %v4711
    %v4776 = vpack.c.bf16 %v4712, %v4712
    %v4777 = vpack.c.bf16 %v4713, %v4713
    %v4778 = vpack.c.bf16 %v4714, %v4714
    %v4779 = vpack.c.bf16 %v4715, %v4715
    %v4780 = vpack.c.bf16 %v4716, %v4716
    %v4781 = vpack.c.bf16 %v4717, %v4717
    %v4782 = vpack.c.bf16 %v4718, %v4718
    %v4783 = vpack.c.bf16 %v4719, %v4719
    %v4784 = vpack.c.bf16 %v4720, %v4720
    %v4785 = vpack.c.bf16 %v4721, %v4721
    %v4786 = vpack.c.bf16 %v4722, %v4722
    %v4787 = vpack.c.bf16 %v4723, %v4723
    %v4788 = vpack.c.bf16 %v4724, %v4724
    %v4789 = vpack.c.bf16 %v4725, %v4725
    %v4790 = vpack.c.bf16 %v4726, %v4726
    %v4791 = vpack.c.bf16 %v4727, %v4727
    %v4792 = vpack.c.bf16 %v4728, %v4728
    %v4793 = vpack.c.bf16 %v4729, %v4729
    %v4794 = vpack.c.bf16 %v4730, %v4730
    %v4795 = vpack.c.bf16 %v4731, %v4731
    %v4796 = vpack.c.bf16 %v4732, %v4732
    %v4797 = vpack.c.bf16 %v4733, %v4733
    %v4798 = vpack.c.bf16 %v4734, %v4734
    %v4799 = vpack.c.bf16 %v4735, %v4735
    %v4800 = vpack.c.bf16 %v4736, %v4736
    %v4801 = vpack.c.bf16 %v4737, %v4737
    %v4802 = vpack.c.bf16 %v4738, %v4738
    %v4803 = vpack.c.bf16 %v4739, %v4739
    %v4804 = vpack.c.bf16 %v4740, %v4740
    %v4805 = vpack.c.bf16 %v4741, %v4741
    %v4806 = vpack.c.bf16 %v4742, %v4742
    %v4807 = vpack.c.bf16 %v4743, %v4743
    %v4808 = vpack.c.bf16 %v4744, %v4744
    %v4809 = vpack.c.bf16 %v4745, %v4745
    %v4810 = vpack.c.bf16 %v4746, %v4746
    %v4811 = vpack.c.bf16 %v4747, %v4747
    %v4812 = vpack.c.bf16 %v4748, %v4748
    %v4813 = vpack.c.bf16 %v4749, %v4749
    %v4814 = vpack.c.bf16 %v4750, %v4750
    %v4815 = vpack.c.bf16 %v4751, %v4751
    %v4816 = vpack.c.bf16 %v4752, %v4752
    %v4817 = vpack.c.bf16 %v4753, %v4753
    %v4818 = vpack.c.bf16 %v4754, %v4754
    %v4819 = vpack.c.bf16 %v4755, %v4755
    %v4820 = vpack.c.bf16 %v4756, %v4756
    %v4821 = vpack.c.bf16 %v4757, %v4757
    %v4822 = vpack.c.bf16 %v4758, %v4758
    %v4823 = vpack.c.bf16 %v4759, %v4759
    %v4824 = vpack.c.bf16 %v4760, %v4760
    %v4825 = vpack.c.bf16 %v4761, %v4761
    %v4826 = vpack.c.bf16 %v4762, %v4762
    %v4827 = vpack.c.bf16 %v4763, %v4763
    %v4828 = vpack.c.bf16 %v4764, %v4764
    %v4829 = vpack.c.bf16 %v4765, %v4765
    %v4830 = vpack.c.bf16 %v4766, %v4766
    %v4831 = vpack.c.bf16 %v4767, %v4767
    %v4832 = vpack.c.bf16 %v4768, %v4768
    %v4833 = vpack.c.bf16 %v4769, %v4769
    %v4834 = vpack.c.bf16 %v4770, %v4770
    %v4835 = vpack.c.bf16 %v4771, %v4771
    %v4900 = vunpack.c.l.b16 %v4772
    %v4901 = vunpack.c.l.b16 %v4773
    %v4902 = vunpack.c.l.b16 %v4774
    %v4903 = vunpack.c.l.b16 %v4775
    %v4904 = vunpack.c.l.b16 %v4776
    %v4905 = vunpack.c.l.b16 %v4777
    %v4906 = vunpack.c.l.b16 %v4778
    %v4907 = vunpack.c.l.b16 %v4779
    %v4908 = vunpack.c.l.b16 %v4780
    %v4909 = vunpack.c.l.b16 %v4781
    %v4910 = vunpack.c.l.b16 %v4782
    %v4911 = vunpack.c.l.b16 %v4783
    %v4912 = vunpack.c.l.b16 %v4784
    %v4913 = vunpack.c.l.b16 %v4785
    %v4914 = vunpack.c.l.b16 %v4786
    %v4915 = vunpack.c.l.b16 %v4787
    %v4916 = vunpack.c.l.b16 %v4788
    %v4917 = vunpack.c.l.b16 %v4789
    %v4918 = vunpack.c.l.b16 %v4790
    %v4919 = vunpack.c.l.b16 %v4791
    %v4920 = vunpack.c.l.b16 %v4792
    %v4921 = vunpack.c.l.b16 %v4793
    %v4922 = vunpack.c.l.b16 %v4794
    %v4923 = vunpack.c.l.b16 %v4795
    %v4924 = vunpack.c.l.b16 %v4796
    %v4925 = vunpack.c.l.b16 %v4797
    %v4926 = vunpack.c.l.b16 %v4798
    %v4927 = vunpack.c.l.b16 %v4799
    %v4928 = vunpack.c.l.b16 %v4800
    %v4929 = vunpack.c.l.b16 %v4801
    %v4930 = vunpack.c.l.b16 %v4802
    %v4931 = vunpack.c.l.b16 %v4803
    %v4932 = vunpack.c.l.b16 %v4804
    %v4933 = vunpack.c.l.b16 %v4805
    %v4934 = vunpack.c.l.b16 %v4806
    %v4935 = vunpack.c.l.b16 %v4807
    %v4936 = vunpack.c.l.b16 %v4808
    %v4937 = vunpack.c.l.b16 %v4809
    %v4938 = vunpack.c.l.b16 %v4810
    %v4939 = vunpack.c.l.b16 %v4811
    %v4940 = vunpack.c.l.b16 %v4812
    %v4941 = vunpack.c.l.b16 %v4813
    %v4942 = vunpack.c.l.b16 %v4814
    %v4943 = vunpack.c.l.b16 %v4815
    %v4944 = vunpack.c.l.b16 %v4816
    %v4945 = vunpack.c.l.b16 %v4817
    %v4946 = vunpack.c.l.b16 %v4818
    %v4947 = vunpack.c.l.b16 %v4819
    %v4948 = vunpack.c.l.b16 %v4820
    %v4949 = vunpack.c.l.b16 %v4821
    %v4950 = vunpack.c.l.b16 %v4822
    %v4951 = vunpack.c.l.b16 %v4823
    %v4952 = vunpack.c.l.b16 %v4824
    %v4953 = vunpack.c.l.b16 %v4825
    %v4954 = vunpack.c.l.b16 %v4826
    %v4955 = vunpack.c.l.b16 %v4827
    %v4956 = vunpack.c.l.b16 %v4828
    %v4957 = vunpack.c.l.b16 %v4829
    %v4958 = vunpack.c.l.b16 %v4830
    %v4959 = vunpack.c.l.b16 %v4831
    %v4960 = vunpack.c.l.b16 %v4832
    %v4961 = vunpack.c.l.b16 %v4833
    %v4962 = vunpack.c.l.b16 %v4834
    %v4963 = vunpack.c.l.b16 %v4835
    %v4964 = vpack.c.b16 %v4901, %v4900
    %v4965 = vpack.c.b16 %v4903, %v4902
    %v4966 = vpack.c.b16 %v4905, %v4904
    %v4967 = vpack.c.b16 %v4907, %v4906
    %v4968 = vpack.c.b16 %v4909, %v4908
    %v4969 = vpack.c.b16 %v4911, %v4910
    %v4970 = vpack.c.b16 %v4913, %v4912
    %v4971 = vpack.c.b16 %v4915, %v4914
    %v4972 = vpack.c.b16 %v4917, %v4916
    %v4973 = vpack.c.b16 %v4919, %v4918
    %v4974 = vpack.c.b16 %v4921, %v4920
    %v4975 = vpack.c.b16 %v4923, %v4922
    %v4976 = vpack.c.b16 %v4925, %v4924
    %v4977 = vpack.c.b16 %v4927, %v4926
    %v4978 = vpack.c.b16 %v4929, %v4928
    %v4979 = vpack.c.b16 %v4931, %v4930
    %v4980 = vpack.c.b16 %v4933, %v4932
    %v4981 = vpack.c.b16 %v4935, %v4934
    %v4982 = vpack.c.b16 %v4937, %v4936
    %v4983 = vpack.c.b16 %v4939, %v4938
    %v4984 = vpack.c.b16 %v4941, %v4940
    %v4985 = vpack.c.b16 %v4943, %v4942
    %v4986 = vpack.c.b16 %v4945, %v4944
    %v4987 = vpack.c.b16 %v4947, %v4946
    %v4988 = vpack.c.b16 %v4949, %v4948
    %v4989 = vpack.c.b16 %v4951, %v4950
    %v4990 = vpack.c.b16 %v4953, %v4952
    %v4991 = vpack.c.b16 %v4955, %v4954
    %v4992 = vpack.c.b16 %v4957, %v4956
    %v4993 = vpack.c.b16 %v4959, %v4958
    %v4994 = vpack.c.b16 %v4961, %v4960
    %v4995 = vpack.c.b16 %v4963, %v4962
    %v4997 = vshrl.u32 %v4964, 16
    %v4999 = vrot.slane %v4997, 7
    %v5000 = vshll.u32 %v4964, 16
    %v5002 = vor.u32 %v4999, %v5000
    %v5004 = vshrl.u32 %v4965, 16
    %v5006 = vrot.slane %v5004, 7
    %v5007 = vshll.u32 %v4965, 16
    %v5009 = vor.u32 %v5006, %v5007
    %v5011 = vshrl.u32 %v4966, 16
    %v5013 = vrot.slane %v5011, 7
    %v5014 = vshll.u32 %v4966, 16
    %v5016 = vor.u32 %v5013, %v5014
    %v5018 = vshrl.u32 %v4967, 16
    %v5020 = vrot.slane %v5018, 7
    %v5021 = vshll.u32 %v4967, 16
    %v5023 = vor.u32 %v5020, %v5021
    %v5025 = vshrl.u32 %v4968, 16
    %v5027 = vrot.slane %v5025, 7
    %v5028 = vshll.u32 %v4968, 16
    %v5030 = vor.u32 %v5027, %v5028
    %v5032 = vshrl.u32 %v4969, 16
    %v5034 = vrot.slane %v5032, 7
    %v5035 = vshll.u32 %v4969, 16
    %v5037 = vor.u32 %v5034, %v5035
    %v5039 = vshrl.u32 %v4970, 16
    %v5041 = vrot.slane %v5039, 7
    %v5042 = vshll.u32 %v4970, 16
    %v5044 = vor.u32 %v5041, %v5042
    %v5046 = vshrl.u32 %v4971, 16
    %v5048 = vrot.slane %v5046, 7
    %v5049 = vshll.u32 %v4971, 16
    %v5051 = vor.u32 %v5048, %v5049
    %v5053 = vshrl.u32 %v4972, 16
    %v5055 = vrot.slane %v5053, 7
    %v5056 = vshll.u32 %v4972, 16
    %v5058 = vor.u32 %v5055, %v5056
    %v5060 = vshrl.u32 %v4973, 16
    %v5062 = vrot.slane %v5060, 7
    %v5063 = vshll.u32 %v4973, 16
    %v5065 = vor.u32 %v5062, %v5063
    %v5067 = vshrl.u32 %v4974, 16
    %v5069 = vrot.slane %v5067, 7
    %v5070 = vshll.u32 %v4974, 16
    %v5072 = vor.u32 %v5069, %v5070
    %v5074 = vshrl.u32 %v4975, 16
    %v5076 = vrot.slane %v5074, 7
    %v5077 = vshll.u32 %v4975, 16
    %v5079 = vor.u32 %v5076, %v5077
    %v5081 = vshrl.u32 %v4976, 16
    %v5083 = vrot.slane %v5081, 7
    %v5084 = vshll.u32 %v4976, 16
    %v5086 = vor.u32 %v5083, %v5084
    %v5088 = vshrl.u32 %v4977, 16
    %v5090 = vrot.slane %v5088, 7
    %v5091 = vshll.u32 %v4977, 16
    %v5093 = vor.u32 %v5090, %v5091
    %v5095 = vshrl.u32 %v4978, 16
    %v5097 = vrot.slane %v5095, 7
    %v5098 = vshll.u32 %v4978, 16
    %v5100 = vor.u32 %v5097, %v5098
    %v5102 = vshrl.u32 %v4979, 16
    %v5104 = vrot.slane %v5102, 7
    %v5105 = vshll.u32 %v4979, 16
    %v5107 = vor.u32 %v5104, %v5105
    %v5109 = vshrl.u32 %v4980, 16
    %v5111 = vrot.slane %v5109, 7
    %v5112 = vshll.u32 %v4980, 16
    %v5114 = vor.u32 %v5111, %v5112
    %v5116 = vshrl.u32 %v4981, 16
    %v5118 = vrot.slane %v5116, 7
    %v5119 = vshll.u32 %v4981, 16
    %v5121 = vor.u32 %v5118, %v5119
    %v5123 = vshrl.u32 %v4982, 16
    %v5125 = vrot.slane %v5123, 7
    %v5126 = vshll.u32 %v4982, 16
    %v5128 = vor.u32 %v5125, %v5126
    %v5130 = vshrl.u32 %v4983, 16
    %v5132 = vrot.slane %v5130, 7
    %v5133 = vshll.u32 %v4983, 16
    %v5135 = vor.u32 %v5132, %v5133
    %v5137 = vshrl.u32 %v4984, 16
    %v5139 = vrot.slane %v5137, 7
    %v5140 = vshll.u32 %v4984, 16
    %v5142 = vor.u32 %v5139, %v5140
    %v5144 = vshrl.u32 %v4985, 16
    %v5146 = vrot.slane %v5144, 7
    %v5147 = vshll.u32 %v4985, 16
    %v5149 = vor.u32 %v5146, %v5147
    %v5151 = vshrl.u32 %v4986, 16
    %v5153 = vrot.slane %v5151, 7
    %v5154 = vshll.u32 %v4986, 16
    %v5156 = vor.u32 %v5153, %v5154
    %v5158 = vshrl.u32 %v4987, 16
    %v5160 = vrot.slane %v5158, 7
    %v5161 = vshll.u32 %v4987, 16
    %v5163 = vor.u32 %v5160, %v5161
    %v5165 = vshrl.u32 %v4988, 16
    %v5167 = vrot.slane %v5165, 7
    %v5168 = vshll.u32 %v4988, 16
    %v5170 = vor.u32 %v5167, %v5168
    %v5172 = vshrl.u32 %v4989, 16
    %v5174 = vrot.slane %v5172, 7
    %v5175 = vshll.u32 %v4989, 16
    %v5177 = vor.u32 %v5174, %v5175
    %v5179 = vshrl.u32 %v4990, 16
    %v5181 = vrot.slane %v5179, 7
    %v5182 = vshll.u32 %v4990, 16
    %v5184 = vor.u32 %v5181, %v5182
    %v5186 = vshrl.u32 %v4991, 16
    %v5188 = vrot.slane %v5186, 7
    %v5189 = vshll.u32 %v4991, 16
    %v5191 = vor.u32 %v5188, %v5189
    %v5193 = vshrl.u32 %v4992, 16
    %v5195 = vrot.slane %v5193, 7
    %v5196 = vshll.u32 %v4992, 16
    %v5198 = vor.u32 %v5195, %v5196
    %v5200 = vshrl.u32 %v4993, 16
    %v5202 = vrot.slane %v5200, 7
    %v5203 = vshll.u32 %v4993, 16
    %v5205 = vor.u32 %v5202, %v5203
    %v5207 = vshrl.u32 %v4994, 16
    %v5209 = vrot.slane %v5207, 7
    %v5210 = vshll.u32 %v4994, 16
    %v5212 = vor.u32 %v5209, %v5210
    %v5214 = vshrl.u32 %v4995, 16
    %v5216 = vrot.slane %v5214, 7
    %v5217 = vshll.u32 %v4995, 16
    %v5219 = vor.u32 %v5216, %v5217
    %v5284 = vsel %vm180, 0, %v5002
    %v5285 = vsel %vm180, 0, %v5009
    %v5286 = vsel %vm180, 0, %v5016
    %v5287 = vsel %vm180, 0, %v5023
    %v5288 = vsel %vm180, 0, %v5030
    %v5289 = vsel %vm180, 0, %v5037
    %v5290 = vsel %vm180, 0, %v5044
    %v5291 = vsel %vm180, 0, %v5051
    %v5292 = vsel %vm180, 0, %v5058
    %v5293 = vsel %vm180, 0, %v5065
    %v5294 = vsel %vm180, 0, %v5072
    %v5295 = vsel %vm180, 0, %v5079
    %v5296 = vsel %vm180, 0, %v5086
    %v5297 = vsel %vm180, 0, %v5093
    %v5298 = vsel %vm180, 0, %v5100
    %v5299 = vsel %vm180, 0, %v5107
    %v5300 = vsel %vm180, 0, %v5114
    %v5301 = vsel %vm180, 0, %v5121
    %v5302 = vsel %vm180, 0, %v5128
    %v5303 = vsel %vm180, 0, %v5135
    %v5304 = vsel %vm180, 0, %v5142
    %v5305 = vsel %vm180, 0, %v5149
    %v5306 = vsel %vm180, 0, %v5156
    %v5307 = vsel %vm180, 0, %v5163
    %v5308 = vsel %vm180, 0, %v5170
    %v5309 = vsel %vm180, 0, %v5177
    %v5310 = vsel %vm180, 0, %v5184
    %v5311 = vsel %vm180, 0, %v5191
    %v5312 = vsel %vm180, 0, %v5198
    %v5313 = vsel %vm180, 0, %v5205
    %v5314 = vsel %vm180, 0, %v5212
    %v5315 = vsel %vm180, 0, %v5219
    %v5316 = vsel %vm180, %v4999, 0
    %v5317 = vsel %vm180, %v5006, 0
    %v5318 = vsel %vm180, %v5013, 0
    %v5319 = vsel %vm180, %v5020, 0
    %v5320 = vsel %vm180, %v5027, 0
    %v5321 = vsel %vm180, %v5034, 0
    %v5322 = vsel %vm180, %v5041, 0
    %v5323 = vsel %vm180, %v5048, 0
    %v5324 = vsel %vm180, %v5055, 0
    %v5325 = vsel %vm180, %v5062, 0
    %v5326 = vsel %vm180, %v5069, 0
    %v5327 = vsel %vm180, %v5076, 0
    %v5328 = vsel %vm180, %v5083, 0
    %v5329 = vsel %vm180, %v5090, 0
    %v5330 = vsel %vm180, %v5097, 0
    %v5331 = vsel %vm180, %v5104, 0
    %v5332 = vsel %vm180, %v5111, 0
    %v5333 = vsel %vm180, %v5118, 0
    %v5334 = vsel %vm180, %v5125, 0
    %v5335 = vsel %vm180, %v5132, 0
    %v5336 = vsel %vm180, %v5139, 0
    %v5337 = vsel %vm180, %v5146, 0
    %v5338 = vsel %vm180, %v5153, 0
    %v5339 = vsel %vm180, %v5160, 0
    %v5340 = vsel %vm180, %v5167, 0
    %v5341 = vsel %vm180, %v5174, 0
    %v5342 = vsel %vm180, %v5181, 0
    %v5343 = vsel %vm180, %v5188, 0
    %v5344 = vsel %vm180, %v5195, 0
    %v5345 = vsel %vm180, %v5202, 0
    %v5346 = vsel %vm180, %v5209, 0
    %v5347 = vsel %vm180, %v5216, 0
    %v5349 = vshrl.u32 %v5284, 16
    %v5351 = vshll.u32 %v5284, 16
    %v5353 = vrot.slane %v5351, 1
    %v5354 = vor.u32 %v5349, %v5353
    %v5356 = vshll.u32 %v5316, 16
    %v5358 = vrot.slane %v5356, 1
    %v5359 = vsel %vm2274, %v5354, %v5358
    %v5361 = vshrl.u32 %v5285, 16
    %v5363 = vshll.u32 %v5285, 16
    %v5365 = vrot.slane %v5363, 1
    %v5366 = vor.u32 %v5361, %v5365
    %v5368 = vshll.u32 %v5317, 16
    %v5370 = vrot.slane %v5368, 1
    %v5371 = vsel %vm2274, %v5366, %v5370
    %v5373 = vshrl.u32 %v5286, 16
    %v5375 = vshll.u32 %v5286, 16
    %v5377 = vrot.slane %v5375, 1
    %v5378 = vor.u32 %v5373, %v5377
    %v5380 = vshll.u32 %v5318, 16
    %v5382 = vrot.slane %v5380, 1
    %v5383 = vsel %vm2274, %v5378, %v5382
    %v5385 = vshrl.u32 %v5287, 16
    %v5387 = vshll.u32 %v5287, 16
    %v5389 = vrot.slane %v5387, 1
    %v5390 = vor.u32 %v5385, %v5389
    %v5392 = vshll.u32 %v5319, 16
    %v5394 = vrot.slane %v5392, 1
    %v5395 = vsel %vm2274, %v5390, %v5394
    %v5397 = vshrl.u32 %v5288, 16
    %v5399 = vshll.u32 %v5288, 16
    %v5401 = vrot.slane %v5399, 1
    %v5402 = vor.u32 %v5397, %v5401
    %v5404 = vshll.u32 %v5320, 16
    %v5406 = vrot.slane %v5404, 1
    %v5407 = vsel %vm2274, %v5402, %v5406
    %v5409 = vshrl.u32 %v5289, 16
    %v5411 = vshll.u32 %v5289, 16
    %v5413 = vrot.slane %v5411, 1
    %v5414 = vor.u32 %v5409, %v5413
    %v5416 = vshll.u32 %v5321, 16
    %v5418 = vrot.slane %v5416, 1
    %v5419 = vsel %vm2274, %v5414, %v5418
    %v5421 = vshrl.u32 %v5290, 16
    %v5423 = vshll.u32 %v5290, 16
    %v5425 = vrot.slane %v5423, 1
    %v5426 = vor.u32 %v5421, %v5425
    %v5428 = vshll.u32 %v5322, 16
    %v5430 = vrot.slane %v5428, 1
    %v5431 = vsel %vm2274, %v5426, %v5430
    %v5433 = vshrl.u32 %v5291, 16
    %v5435 = vshll.u32 %v5291, 16
    %v5437 = vrot.slane %v5435, 1
    %v5438 = vor.u32 %v5433, %v5437
    %v5440 = vshll.u32 %v5323, 16
    %v5442 = vrot.slane %v5440, 1
    %v5443 = vsel %vm2274, %v5438, %v5442
    %v5445 = vshrl.u32 %v5292, 16
    %v5447 = vshll.u32 %v5292, 16
    %v5449 = vrot.slane %v5447, 1
    %v5450 = vor.u32 %v5445, %v5449
    %v5452 = vshll.u32 %v5324, 16
    %v5454 = vrot.slane %v5452, 1
    %v5455 = vsel %vm2274, %v5450, %v5454
    %v5457 = vshrl.u32 %v5293, 16
    %v5459 = vshll.u32 %v5293, 16
    %v5461 = vrot.slane %v5459, 1
    %v5462 = vor.u32 %v5457, %v5461
    %v5464 = vshll.u32 %v5325, 16
    %v5466 = vrot.slane %v5464, 1
    %v5467 = vsel %vm2274, %v5462, %v5466
    %v5469 = vshrl.u32 %v5294, 16
    %v5471 = vshll.u32 %v5294, 16
    %v5473 = vrot.slane %v5471, 1
    %v5474 = vor.u32 %v5469, %v5473
    %v5476 = vshll.u32 %v5326, 16
    %v5478 = vrot.slane %v5476, 1
    %v5479 = vsel %vm2274, %v5474, %v5478
    %v5481 = vshrl.u32 %v5295, 16
    %v5483 = vshll.u32 %v5295, 16
    %v5485 = vrot.slane %v5483, 1
    %v5486 = vor.u32 %v5481, %v5485
    %v5488 = vshll.u32 %v5327, 16
    %v5490 = vrot.slane %v5488, 1
    %v5491 = vsel %vm2274, %v5486, %v5490
    %v5493 = vshrl.u32 %v5296, 16
    %v5495 = vshll.u32 %v5296, 16
    %v5497 = vrot.slane %v5495, 1
    %v5498 = vor.u32 %v5493, %v5497
    %v5500 = vshll.u32 %v5328, 16
    %v5502 = vrot.slane %v5500, 1
    %v5503 = vsel %vm2274, %v5498, %v5502
    %v5505 = vshrl.u32 %v5297, 16
    %v5507 = vshll.u32 %v5297, 16
    %v5509 = vrot.slane %v5507, 1
    %v5510 = vor.u32 %v5505, %v5509
    %v5512 = vshll.u32 %v5329, 16
    %v5514 = vrot.slane %v5512, 1
    %v5515 = vsel %vm2274, %v5510, %v5514
    %v5517 = vshrl.u32 %v5298, 16
    %v5519 = vshll.u32 %v5298, 16
    %v5521 = vrot.slane %v5519, 1
    %v5522 = vor.u32 %v5517, %v5521
    %v5524 = vshll.u32 %v5330, 16
    %v5526 = vrot.slane %v5524, 1
    %v5527 = vsel %vm2274, %v5522, %v5526
    %v5529 = vshrl.u32 %v5300, 16
    %v5531 = vshll.u32 %v5300, 16
    %v5533 = vrot.slane %v5531, 1
    %v5534 = vor.u32 %v5529, %v5533
    %v5536 = vshll.u32 %v5332, 16
    %v5538 = vrot.slane %v5536, 1
    %v5539 = vsel %vm2274, %v5534, %v5538
    %v5541 = vshrl.u32 %v5301, 16
    %v5543 = vshll.u32 %v5301, 16
    %v5545 = vrot.slane %v5543, 1
    %v5546 = vor.u32 %v5541, %v5545
    %v5548 = vshll.u32 %v5333, 16
    %v5550 = vrot.slane %v5548, 1
    %v5551 = vsel %vm2274, %v5546, %v5550
    %v5553 = vshrl.u32 %v5302, 16
    %v5555 = vshll.u32 %v5302, 16
    %v5557 = vrot.slane %v5555, 1
    %v5558 = vor.u32 %v5553, %v5557
    %v5560 = vshll.u32 %v5334, 16
    %v5562 = vrot.slane %v5560, 1
    %v5563 = vsel %vm2274, %v5558, %v5562
    %v5565 = vshrl.u32 %v5303, 16
    %v5567 = vshll.u32 %v5303, 16
    %v5569 = vrot.slane %v5567, 1
    %v5570 = vor.u32 %v5565, %v5569
    %v5572 = vshll.u32 %v5335, 16
    %v5574 = vrot.slane %v5572, 1
    %v5575 = vsel %vm2274, %v5570, %v5574
    %v5577 = vshrl.u32 %v5304, 16
    %v5579 = vshll.u32 %v5304, 16
    %v5581 = vrot.slane %v5579, 1
    %v5582 = vor.u32 %v5577, %v5581
    %v5584 = vshll.u32 %v5336, 16
    %v5586 = vrot.slane %v5584, 1
    %v5587 = vsel %vm2274, %v5582, %v5586
    %v5589 = vshrl.u32 %v5305, 16
    %v5591 = vshll.u32 %v5305, 16
    %v5593 = vrot.slane %v5591, 1
    %v5594 = vor.u32 %v5589, %v5593
    %v5596 = vshll.u32 %v5337, 16
    %v5598 = vrot.slane %v5596, 1
    %v5599 = vsel %vm2274, %v5594, %v5598
    %v5601 = vshrl.u32 %v5306, 16
    %v5603 = vshll.u32 %v5306, 16
    %v5605 = vrot.slane %v5603, 1
    %v5606 = vor.u32 %v5601, %v5605
    %v5608 = vshll.u32 %v5338, 16
    %v5610 = vrot.slane %v5608, 1
    %v5611 = vsel %vm2274, %v5606, %v5610
    %v5613 = vshrl.u32 %v5307, 16
    %v5615 = vshll.u32 %v5307, 16
    %v5617 = vrot.slane %v5615, 1
    %v5618 = vor.u32 %v5613, %v5617
    %v5620 = vshll.u32 %v5339, 16
    %v5622 = vrot.slane %v5620, 1
    %v5623 = vsel %vm2274, %v5618, %v5622
    %v5625 = vshrl.u32 %v5308, 16
    %v5627 = vshll.u32 %v5308, 16
    %v5629 = vrot.slane %v5627, 1
    %v5630 = vor.u32 %v5625, %v5629
    %v5632 = vshll.u32 %v5340, 16
    %v5634 = vrot.slane %v5632, 1
    %v5635 = vsel %vm2274, %v5630, %v5634
    %v5637 = vshrl.u32 %v5309, 16
    %v5639 = vshll.u32 %v5309, 16
    %v5641 = vrot.slane %v5639, 1
    %v5642 = vor.u32 %v5637, %v5641
    %v5644 = vshll.u32 %v5341, 16
    %v5646 = vrot.slane %v5644, 1
    %v5647 = vsel %vm2274, %v5642, %v5646
    %v5649 = vshrl.u32 %v5310, 16
    %v5651 = vshll.u32 %v5310, 16
    %v5653 = vrot.slane %v5651, 1
    %v5654 = vor.u32 %v5649, %v5653
    %v5656 = vshll.u32 %v5342, 16
    %v5658 = vrot.slane %v5656, 1
    %v5659 = vsel %vm2274, %v5654, %v5658
    %v5661 = vshrl.u32 %v5311, 16
    %v5663 = vshll.u32 %v5311, 16
    %v5665 = vrot.slane %v5663, 1
    %v5666 = vor.u32 %v5661, %v5665
    %v5668 = vshll.u32 %v5343, 16
    %v5670 = vrot.slane %v5668, 1
    %v5671 = vsel %vm2274, %v5666, %v5670
    %v5673 = vshrl.u32 %v5312, 16
    %v5675 = vshll.u32 %v5312, 16
    %v5677 = vrot.slane %v5675, 1
    %v5678 = vor.u32 %v5673, %v5677
    %v5680 = vshll.u32 %v5344, 16
    %v5682 = vrot.slane %v5680, 1
    %v5683 = vsel %vm2274, %v5678, %v5682
    %v5685 = vshrl.u32 %v5313, 16
    %v5687 = vshll.u32 %v5313, 16
    %v5689 = vrot.slane %v5687, 1
    %v5690 = vor.u32 %v5685, %v5689
    %v5692 = vshll.u32 %v5345, 16
    %v5694 = vrot.slane %v5692, 1
    %v5695 = vsel %vm2274, %v5690, %v5694
    %v5697 = vshrl.u32 %v5314, 16
    %v5699 = vshll.u32 %v5314, 16
    %v5701 = vrot.slane %v5699, 1
    %v5702 = vor.u32 %v5697, %v5701
    %v5704 = vshll.u32 %v5346, 16
    %v5706 = vrot.slane %v5704, 1
    %v5707 = vsel %vm2274, %v5702, %v5706
    %5708 = vrot.lane.b32.xlu0 %v2286, 32
    %v5709 = vpop.permute.xlu0 %5708
    %5710 = vrot.lane.b32.xlu0 %v5359, 32
    %v5711 = vpop.permute.xlu0 %5710
    %5712 = vrot.lane.b32.xlu0 %v5371, 32
    %v5713 = vpop.permute.xlu0 %5712
    %5714 = vrot.lane.b32.xlu0 %v5383, 32
    %v5715 = vpop.permute.xlu0 %5714
    %5716 = vrot.lane.b32.xlu0 %v5395, 32
    %v5717 = vpop.permute.xlu0 %5716
    %5718 = vrot.lane.b32.xlu0 %v5407, 32
    %v5719 = vpop.permute.xlu0 %5718
    %5720 = vrot.lane.b32.xlu0 %v5419, 32
    %v5721 = vpop.permute.xlu0 %5720
    %5722 = vrot.lane.b32.xlu0 %v5431, 32
    %v5723 = vpop.permute.xlu0 %5722
    %5724 = vrot.lane.b32.xlu0 %v5443, 32
    %v5725 = vpop.permute.xlu0 %5724
    %5726 = vrot.lane.b32.xlu0 %v5455, 32
    %v5727 = vpop.permute.xlu0 %5726
    %5728 = vrot.lane.b32.xlu0 %v5467, 32
    %v5729 = vpop.permute.xlu0 %5728
    %5730 = vrot.lane.b32.xlu0 %v5479, 32
    %v5731 = vpop.permute.xlu0 %5730
    %5732 = vrot.lane.b32.xlu0 %v5491, 32
    %v5733 = vpop.permute.xlu0 %5732
    %5734 = vrot.lane.b32.xlu0 %v5503, 32
    %v5735 = vpop.permute.xlu0 %5734
    %5736 = vrot.lane.b32.xlu0 %v5515, 32
    %v5737 = vpop.permute.xlu0 %5736
    %5738 = vrot.lane.b32.xlu0 %v5527, 32
    %v5739 = vpop.permute.xlu0 %5738
    %5740 = vrot.lane.b32.xlu0 %v5539, 32
    %v5741 = vpop.permute.xlu0 %5740
    %5742 = vrot.lane.b32.xlu0 %v5551, 32
    %v5743 = vpop.permute.xlu0 %5742
    %5744 = vrot.lane.b32.xlu0 %v5563, 32
    %v5745 = vpop.permute.xlu0 %5744
    %5746 = vrot.lane.b32.xlu0 %v5575, 32
    %v5747 = vpop.permute.xlu0 %5746
    %5748 = vrot.lane.b32.xlu0 %v5587, 32
    %v5749 = vpop.permute.xlu0 %5748
    %5750 = vrot.lane.b32.xlu0 %v5599, 32
    %v5751 = vpop.permute.xlu0 %5750
    %5752 = vrot.lane.b32.xlu0 %v5611, 32
    %v5753 = vpop.permute.xlu0 %5752
    %5754 = vrot.lane.b32.xlu0 %v5623, 32
    %v5755 = vpop.permute.xlu0 %5754
    %5756 = vrot.lane.b32.xlu0 %v5635, 32
    %v5757 = vpop.permute.xlu0 %5756
    %5758 = vrot.lane.b32.xlu0 %v5647, 32
    %v5759 = vpop.permute.xlu0 %5758
    %5760 = vrot.lane.b32.xlu0 %v5659, 32
    %v5761 = vpop.permute.xlu0 %5760
    %5762 = vrot.lane.b32.xlu0 %v5671, 32
    %v5763 = vpop.permute.xlu0 %5762
    %5764 = vrot.lane.b32.xlu0 %v5683, 32
    %v5765 = vpop.permute.xlu0 %5764
    %5766 = vrot.lane.b32.xlu0 %v5695, 32
    %v5767 = vpop.permute.xlu0 %5766
    %5768 = vrot.lane.b32.xlu0 %v5707, 32
    %v5769 = vpop.permute.xlu0 %5768
    %v5830 = vrot.slane %v5284, 1
    %v5831 = vrot.slane %v5316, 1
    %v5832 = vsel %vm2771, %v5830, %v5831
    %v5833 = vrot.slane %v5285, 1
    %v5834 = vrot.slane %v5317, 1
    %v5835 = vsel %vm2771, %v5833, %v5834
    %v5836 = vrot.slane %v5286, 1
    %v5837 = vrot.slane %v5318, 1
    %v5838 = vsel %vm2771, %v5836, %v5837
    %v5839 = vrot.slane %v5287, 1
    %v5840 = vrot.slane %v5319, 1
    %v5841 = vsel %vm2771, %v5839, %v5840
    %v5842 = vrot.slane %v5288, 1
    %v5843 = vrot.slane %v5320, 1
    %v5844 = vsel %vm2771, %v5842, %v5843
    %v5845 = vrot.slane %v5289, 1
    %v5846 = vrot.slane %v5321, 1
    %v5847 = vsel %vm2771, %v5845, %v5846
    %v5848 = vrot.slane %v5290, 1
    %v5849 = vrot.slane %v5322, 1
    %v5850 = vsel %vm2771, %v5848, %v5849
    %v5851 = vrot.slane %v5291, 1
    %v5852 = vrot.slane %v5323, 1
    %v5853 = vsel %vm2771, %v5851, %v5852
    %v5854 = vrot.slane %v5292, 1
    %v5855 = vrot.slane %v5324, 1
    %v5856 = vsel %vm2771, %v5854, %v5855
    %v5857 = vrot.slane %v5293, 1
    %v5858 = vrot.slane %v5325, 1
    %v5859 = vsel %vm2771, %v5857, %v5858
    %v5860 = vrot.slane %v5294, 1
    %v5861 = vrot.slane %v5326, 1
    %v5862 = vsel %vm2771, %v5860, %v5861
    %v5863 = vrot.slane %v5295, 1
    %v5864 = vrot.slane %v5327, 1
    %v5865 = vsel %vm2771, %v5863, %v5864
    %v5866 = vrot.slane %v5296, 1
    %v5867 = vrot.slane %v5328, 1
    %v5868 = vsel %vm2771, %v5866, %v5867
    %v5869 = vrot.slane %v5297, 1
    %v5870 = vrot.slane %v5329, 1
    %v5871 = vsel %vm2771, %v5869, %v5870
    %v5872 = vrot.slane %v5298, 1
    %v5873 = vrot.slane %v5330, 1
    %v5874 = vsel %vm2771, %v5872, %v5873
    %v5875 = vrot.slane %v5300, 1
    %v5876 = vrot.slane %v5332, 1
    %v5877 = vsel %vm2771, %v5875, %v5876
    %v5878 = vrot.slane %v5301, 1
    %v5879 = vrot.slane %v5333, 1
    %v5880 = vsel %vm2771, %v5878, %v5879
    %v5881 = vrot.slane %v5302, 1
    %v5882 = vrot.slane %v5334, 1
    %v5883 = vsel %vm2771, %v5881, %v5882
    %v5884 = vrot.slane %v5303, 1
    %v5885 = vrot.slane %v5335, 1
    %v5886 = vsel %vm2771, %v5884, %v5885
    %v5887 = vrot.slane %v5304, 1
    %v5888 = vrot.slane %v5336, 1
    %v5889 = vsel %vm2771, %v5887, %v5888
    %v5890 = vrot.slane %v5305, 1
    %v5891 = vrot.slane %v5337, 1
    %v5892 = vsel %vm2771, %v5890, %v5891
    %v5893 = vrot.slane %v5306, 1
    %v5894 = vrot.slane %v5338, 1
    %v5895 = vsel %vm2771, %v5893, %v5894
    %v5896 = vrot.slane %v5307, 1
    %v5897 = vrot.slane %v5339, 1
    %v5898 = vsel %vm2771, %v5896, %v5897
    %v5899 = vrot.slane %v5308, 1
    %v5900 = vrot.slane %v5340, 1
    %v5901 = vsel %vm2771, %v5899, %v5900
    %v5902 = vrot.slane %v5309, 1
    %v5903 = vrot.slane %v5341, 1
    %v5904 = vsel %vm2771, %v5902, %v5903
    %v5905 = vrot.slane %v5310, 1
    %v5906 = vrot.slane %v5342, 1
    %v5907 = vsel %vm2771, %v5905, %v5906
    %v5908 = vrot.slane %v5311, 1
    %v5909 = vrot.slane %v5343, 1
    %v5910 = vsel %vm2771, %v5908, %v5909
    %v5911 = vrot.slane %v5312, 1
    %v5912 = vrot.slane %v5344, 1
    %v5913 = vsel %vm2771, %v5911, %v5912
    %v5914 = vrot.slane %v5313, 1
    %v5915 = vrot.slane %v5345, 1
    %v5916 = vsel %vm2771, %v5914, %v5915
    %v5917 = vrot.slane %v5314, 1
    %v5918 = vrot.slane %v5346, 1
    %v5919 = vsel %vm2771, %v5917, %v5918
    %5920 = vrot.lane.b32.xlu0 %v2774, 64
    %v5921 = vpop.permute.xlu0 %5920
    %5922 = vrot.lane.b32.xlu0 %v5832, 64
    %v5923 = vpop.permute.xlu0 %5922
    %5924 = vrot.lane.b32.xlu0 %v5835, 64
    %v5925 = vpop.permute.xlu0 %5924
    %5926 = vrot.lane.b32.xlu0 %v5838, 64
    %v5927 = vpop.permute.xlu0 %5926
    %5928 = vrot.lane.b32.xlu0 %v5841, 64
    %v5929 = vpop.permute.xlu0 %5928
    %5930 = vrot.lane.b32.xlu0 %v5844, 64
    %v5931 = vpop.permute.xlu0 %5930
    %5932 = vrot.lane.b32.xlu0 %v5847, 64
    %v5933 = vpop.permute.xlu0 %5932
    %5934 = vrot.lane.b32.xlu0 %v5850, 64
    %v5935 = vpop.permute.xlu0 %5934
    %5936 = vrot.lane.b32.xlu0 %v5853, 64
    %v5937 = vpop.permute.xlu0 %5936
    %5938 = vrot.lane.b32.xlu0 %v5856, 64
    %v5939 = vpop.permute.xlu0 %5938
    %5940 = vrot.lane.b32.xlu0 %v5859, 64
    %v5941 = vpop.permute.xlu0 %5940
    %5942 = vrot.lane.b32.xlu0 %v5862, 64
    %v5943 = vpop.permute.xlu0 %5942
    %5944 = vrot.lane.b32.xlu0 %v5865, 64
    %v5945 = vpop.permute.xlu0 %5944
    %5946 = vrot.lane.b32.xlu0 %v5868, 64
    %v5947 = vpop.permute.xlu0 %5946
    %5948 = vrot.lane.b32.xlu0 %v5871, 64
    %v5949 = vpop.permute.xlu0 %5948
    %5950 = vrot.lane.b32.xlu0 %v5874, 64
    %v5951 = vpop.permute.xlu0 %5950
    %5952 = vrot.lane.b32.xlu0 %v5877, 64
    %v5953 = vpop.permute.xlu0 %5952
    %5954 = vrot.lane.b32.xlu0 %v5880, 64
    %v5955 = vpop.permute.xlu0 %5954
    %5956 = vrot.lane.b32.xlu0 %v5883, 64
    %v5957 = vpop.permute.xlu0 %5956
    %5958 = vrot.lane.b32.xlu0 %v5886, 64
    %v5959 = vpop.permute.xlu0 %5958
    %5960 = vrot.lane.b32.xlu0 %v5889, 64
    %v5961 = vpop.permute.xlu0 %5960
    %5962 = vrot.lane.b32.xlu0 %v5892, 64
    %v5963 = vpop.permute.xlu0 %5962
    %5964 = vrot.lane.b32.xlu0 %v5895, 64
    %v5965 = vpop.permute.xlu0 %5964
    %5966 = vrot.lane.b32.xlu0 %v5898, 64
    %v5967 = vpop.permute.xlu0 %5966
    %5968 = vrot.lane.b32.xlu0 %v5901, 64
    %v5969 = vpop.permute.xlu0 %5968
    %5970 = vrot.lane.b32.xlu0 %v5904, 64
    %v5971 = vpop.permute.xlu0 %5970
    %5972 = vrot.lane.b32.xlu0 %v5907, 64
    %v5973 = vpop.permute.xlu0 %5972
    %5974 = vrot.lane.b32.xlu0 %v5910, 64
    %v5975 = vpop.permute.xlu0 %5974
    %5976 = vrot.lane.b32.xlu0 %v5913, 64
    %v5977 = vpop.permute.xlu0 %5976
    %5978 = vrot.lane.b32.xlu0 %v5916, 64
    %v5979 = vpop.permute.xlu0 %5978
    %5980 = vrot.lane.b32.xlu0 %v5919, 64
    %v5981 = vpop.permute.xlu0 %5980
    %5984 = vrot.lane.b32.xlu0 %v5284, 96
    %v5985 = vpop.permute.xlu0 %5984
    %5986 = vrot.lane.b32.xlu0 %v5285, 96
    %v5987 = vpop.permute.xlu0 %5986
    %5988 = vrot.lane.b32.xlu0 %v5286, 96
    %v5989 = vpop.permute.xlu0 %5988
    %5990 = vrot.lane.b32.xlu0 %v5287, 96
    %v5991 = vpop.permute.xlu0 %5990
    %5992 = vrot.lane.b32.xlu0 %v5288, 96
    %v5993 = vpop.permute.xlu0 %5992
    %5994 = vrot.lane.b32.xlu0 %v5289, 96
    %v5995 = vpop.permute.xlu0 %5994
    %5996 = vrot.lane.b32.xlu0 %v5290, 96
    %v5997 = vpop.permute.xlu0 %5996
    %5998 = vrot.lane.b32.xlu0 %v5291, 96
    %v5999 = vpop.permute.xlu0 %5998
    %6000 = vrot.lane.b32.xlu0 %v5292, 96
    %v6001 = vpop.permute.xlu0 %6000
    %6002 = vrot.lane.b32.xlu0 %v5293, 96
    %v6003 = vpop.permute.xlu0 %6002
    %6004 = vrot.lane.b32.xlu0 %v5294, 96
    %v6005 = vpop.permute.xlu0 %6004
    %6006 = vrot.lane.b32.xlu0 %v5295, 96
    %v6007 = vpop.permute.xlu0 %6006
    %6008 = vrot.lane.b32.xlu0 %v5296, 96
    %v6009 = vpop.permute.xlu0 %6008
    %6010 = vrot.lane.b32.xlu0 %v5297, 96
    %v6011 = vpop.permute.xlu0 %6010
    %6012 = vrot.lane.b32.xlu0 %v5298, 96
    %v6013 = vpop.permute.xlu0 %6012
    %6014 = vrot.lane.b32.xlu0 %v5299, 96
    %v6015 = vpop.permute.xlu0 %6014
    %6016 = vrot.lane.b32.xlu0 %v5300, 96
    %v6017 = vpop.permute.xlu0 %6016
    %6018 = vrot.lane.b32.xlu0 %v5301, 96
    %v6019 = vpop.permute.xlu0 %6018
    %6020 = vrot.lane.b32.xlu0 %v5302, 96
    %v6021 = vpop.permute.xlu0 %6020
    %6022 = vrot.lane.b32.xlu0 %v5303, 96
    %v6023 = vpop.permute.xlu0 %6022
    %6024 = vrot.lane.b32.xlu0 %v5304, 96
    %v6025 = vpop.permute.xlu0 %6024
    %6026 = vrot.lane.b32.xlu0 %v5305, 96
    %v6027 = vpop.permute.xlu0 %6026
    %6028 = vrot.lane.b32.xlu0 %v5306, 96
    %v6029 = vpop.permute.xlu0 %6028
    %6030 = vrot.lane.b32.xlu0 %v5307, 96
    %v6031 = vpop.permute.xlu0 %6030
    %6032 = vrot.lane.b32.xlu0 %v5308, 96
    %v6033 = vpop.permute.xlu0 %6032
    %6034 = vrot.lane.b32.xlu0 %v5309, 96
    %v6035 = vpop.permute.xlu0 %6034
    %6036 = vrot.lane.b32.xlu0 %v5310, 96
    %v6037 = vpop.permute.xlu0 %6036
    %6038 = vrot.lane.b32.xlu0 %v5311, 96
    %v6039 = vpop.permute.xlu0 %6038
    %6040 = vrot.lane.b32.xlu0 %v5312, 96
    %v6041 = vpop.permute.xlu0 %6040
    %6042 = vrot.lane.b32.xlu0 %v5313, 96
    %v6043 = vpop.permute.xlu0 %6042
    %6044 = vrot.lane.b32.xlu0 %v5314, 96
    %v6045 = vpop.permute.xlu0 %6044
    %6046 = vrot.lane.b32.xlu0 %v5315, 96
    %v6047 = vpop.permute.xlu0 %6046
    %v6049 = vshrl.u32 %v5299, 16
    %v6051 = vshll.u32 %v5299, 16
    %v6053 = vrot.slane %v6051, 1
    %v6054 = vor.u32 %v6049, %v6053
    %v6056 = vshll.u32 %v5331, 16
    %v6058 = vrot.slane %v6056, 1
    %v6059 = vsel %vm2274, %v6054, %v6058
    %v6061 = vshrl.u32 %v5315, 16
    %v6063 = vshll.u32 %v5315, 16
    %v6065 = vrot.slane %v6063, 1
    %v6066 = vor.u32 %v6061, %v6065
    %v6068 = vshll.u32 %v5347, 16
    %v6070 = vrot.slane %v6068, 1
    %v6071 = vsel %vm2274, %v6066, %v6070
    %v6074 = vrot.slane %v5299, 1
    %v6075 = vrot.slane %v5331, 1
    %v6076 = vsel %vm2771, %v6074, %v6075
    %v6077 = vrot.slane %v5315, 1
    %v6078 = vrot.slane %v5347, 1
    %v6079 = vsel %vm2771, %v6077, %v6078
    %6080 = vrot.lane.b32.xlu0 %v5832, 32
    %v6081 = vpop.permute.xlu0 %6080
    %6082 = vrot.lane.b32.xlu0 %v5835, 32
    %v6083 = vpop.permute.xlu0 %6082
    %6084 = vrot.lane.b32.xlu0 %v5838, 32
    %v6085 = vpop.permute.xlu0 %6084
    %6086 = vrot.lane.b32.xlu0 %v5841, 32
    %v6087 = vpop.permute.xlu0 %6086
    %6088 = vrot.lane.b32.xlu0 %v5844, 32
    %v6089 = vpop.permute.xlu0 %6088
    %6090 = vrot.lane.b32.xlu0 %v5847, 32
    %v6091 = vpop.permute.xlu0 %6090
    %6092 = vrot.lane.b32.xlu0 %v5850, 32
    %v6093 = vpop.permute.xlu0 %6092
    %6094 = vrot.lane.b32.xlu0 %v5853, 32
    %v6095 = vpop.permute.xlu0 %6094
    %6096 = vrot.lane.b32.xlu0 %v5856, 32
    %v6097 = vpop.permute.xlu0 %6096
    %6098 = vrot.lane.b32.xlu0 %v5859, 32
    %v6099 = vpop.permute.xlu0 %6098
    %6100 = vrot.lane.b32.xlu0 %v5862, 32
    %v6101 = vpop.permute.xlu0 %6100
    %6102 = vrot.lane.b32.xlu0 %v5865, 32
    %v6103 = vpop.permute.xlu0 %6102
    %6104 = vrot.lane.b32.xlu0 %v5868, 32
    %v6105 = vpop.permute.xlu0 %6104
    %6106 = vrot.lane.b32.xlu0 %v5871, 32
    %v6107 = vpop.permute.xlu0 %6106
    %6108 = vrot.lane.b32.xlu0 %v5874, 32
    %v6109 = vpop.permute.xlu0 %6108
    %6110 = vrot.lane.b32.xlu0 %v6076, 32
    %v6111 = vpop.permute.xlu0 %6110
    %6112 = vrot.lane.b32.xlu0 %v5877, 32
    %v6113 = vpop.permute.xlu0 %6112
    %6114 = vrot.lane.b32.xlu0 %v5880, 32
    %v6115 = vpop.permute.xlu0 %6114
    %6116 = vrot.lane.b32.xlu0 %v5883, 32
    %v6117 = vpop.permute.xlu0 %6116
    %6118 = vrot.lane.b32.xlu0 %v5886, 32
    %v6119 = vpop.permute.xlu0 %6118
    %6120 = vrot.lane.b32.xlu0 %v5889, 32
    %v6121 = vpop.permute.xlu0 %6120
    %6122 = vrot.lane.b32.xlu0 %v5892, 32
    %v6123 = vpop.permute.xlu0 %6122
    %6124 = vrot.lane.b32.xlu0 %v5895, 32
    %v6125 = vpop.permute.xlu0 %6124
    %6126 = vrot.lane.b32.xlu0 %v5898, 32
    %v6127 = vpop.permute.xlu0 %6126
    %6128 = vrot.lane.b32.xlu0 %v5901, 32
    %v6129 = vpop.permute.xlu0 %6128
    %6130 = vrot.lane.b32.xlu0 %v5904, 32
    %v6131 = vpop.permute.xlu0 %6130
    %6132 = vrot.lane.b32.xlu0 %v5907, 32
    %v6133 = vpop.permute.xlu0 %6132
    %6134 = vrot.lane.b32.xlu0 %v5910, 32
    %v6135 = vpop.permute.xlu0 %6134
    %6136 = vrot.lane.b32.xlu0 %v5913, 32
    %v6137 = vpop.permute.xlu0 %6136
    %6138 = vrot.lane.b32.xlu0 %v5916, 32
    %v6139 = vpop.permute.xlu0 %6138
    %6140 = vrot.lane.b32.xlu0 %v5919, 32
    %v6141 = vpop.permute.xlu0 %6140
    %6142 = vrot.lane.b32.xlu0 %v6079, 32
    %v6143 = vpop.permute.xlu0 %6142
    %6144 = vrot.lane.b32.xlu0 %v5285, 64
    %v6145 = vpop.permute.xlu0 %6144
    %6146 = vrot.lane.b32.xlu0 %v5286, 64
    %v6147 = vpop.permute.xlu0 %6146
    %6148 = vrot.lane.b32.xlu0 %v5287, 64
    %v6149 = vpop.permute.xlu0 %6148
    %6150 = vrot.lane.b32.xlu0 %v5288, 64
    %v6151 = vpop.permute.xlu0 %6150
    %6152 = vrot.lane.b32.xlu0 %v5289, 64
    %v6153 = vpop.permute.xlu0 %6152
    %6154 = vrot.lane.b32.xlu0 %v5290, 64
    %v6155 = vpop.permute.xlu0 %6154
    %6156 = vrot.lane.b32.xlu0 %v5291, 64
    %v6157 = vpop.permute.xlu0 %6156
    %6158 = vrot.lane.b32.xlu0 %v5292, 64
    %v6159 = vpop.permute.xlu0 %6158
    %6160 = vrot.lane.b32.xlu0 %v5293, 64
    %v6161 = vpop.permute.xlu0 %6160
    %6162 = vrot.lane.b32.xlu0 %v5294, 64
    %v6163 = vpop.permute.xlu0 %6162
    %6164 = vrot.lane.b32.xlu0 %v5295, 64
    %v6165 = vpop.permute.xlu0 %6164
    %6166 = vrot.lane.b32.xlu0 %v5296, 64
    %v6167 = vpop.permute.xlu0 %6166
    %6168 = vrot.lane.b32.xlu0 %v5297, 64
    %v6169 = vpop.permute.xlu0 %6168
    %6170 = vrot.lane.b32.xlu0 %v5298, 64
    %v6171 = vpop.permute.xlu0 %6170
    %6172 = vrot.lane.b32.xlu0 %v5299, 64
    %v6173 = vpop.permute.xlu0 %6172
    %6174 = vrot.lane.b32.xlu0 %v181, 64
    %v6175 = vpop.permute.xlu0 %6174
    %6176 = vrot.lane.b32.xlu0 %v5301, 64
    %v6177 = vpop.permute.xlu0 %6176
    %6178 = vrot.lane.b32.xlu0 %v5302, 64
    %v6179 = vpop.permute.xlu0 %6178
    %6180 = vrot.lane.b32.xlu0 %v5303, 64
    %v6181 = vpop.permute.xlu0 %6180
    %6182 = vrot.lane.b32.xlu0 %v5304, 64
    %v6183 = vpop.permute.xlu0 %6182
    %6184 = vrot.lane.b32.xlu0 %v5305, 64
    %v6185 = vpop.permute.xlu0 %6184
    %6186 = vrot.lane.b32.xlu0 %v5306, 64
    %v6187 = vpop.permute.xlu0 %6186
    %6188 = vrot.lane.b32.xlu0 %v5307, 64
    %v6189 = vpop.permute.xlu0 %6188
    %6190 = vrot.lane.b32.xlu0 %v5308, 64
    %v6191 = vpop.permute.xlu0 %6190
    %6192 = vrot.lane.b32.xlu0 %v5309, 64
    %v6193 = vpop.permute.xlu0 %6192
    %6194 = vrot.lane.b32.xlu0 %v5310, 64
    %v6195 = vpop.permute.xlu0 %6194
    %6196 = vrot.lane.b32.xlu0 %v5311, 64
    %v6197 = vpop.permute.xlu0 %6196
    %6198 = vrot.lane.b32.xlu0 %v5312, 64
    %v6199 = vpop.permute.xlu0 %6198
    %6200 = vrot.lane.b32.xlu0 %v5313, 64
    %v6201 = vpop.permute.xlu0 %6200
    %6202 = vrot.lane.b32.xlu0 %v5314, 64
    %v6203 = vpop.permute.xlu0 %6202
    %6204 = vrot.lane.b32.xlu0 %v5315, 64
    %v6205 = vpop.permute.xlu0 %6204
    %6206 = vrot.lane.b32.xlu0 %v5371, 96
    %v6207 = vpop.permute.xlu0 %6206
    %6208 = vrot.lane.b32.xlu0 %v5383, 96
    %v6209 = vpop.permute.xlu0 %6208
    %6210 = vrot.lane.b32.xlu0 %v5395, 96
    %v6211 = vpop.permute.xlu0 %6210
    %6212 = vrot.lane.b32.xlu0 %v5407, 96
    %v6213 = vpop.permute.xlu0 %6212
    %6214 = vrot.lane.b32.xlu0 %v5419, 96
    %v6215 = vpop.permute.xlu0 %6214
    %6216 = vrot.lane.b32.xlu0 %v5431, 96
    %v6217 = vpop.permute.xlu0 %6216
    %6218 = vrot.lane.b32.xlu0 %v5443, 96
    %v6219 = vpop.permute.xlu0 %6218
    %6220 = vrot.lane.b32.xlu0 %v5455, 96
    %v6221 = vpop.permute.xlu0 %6220
    %6222 = vrot.lane.b32.xlu0 %v5467, 96
    %v6223 = vpop.permute.xlu0 %6222
    %6224 = vrot.lane.b32.xlu0 %v5479, 96
    %v6225 = vpop.permute.xlu0 %6224
    %6226 = vrot.lane.b32.xlu0 %v5491, 96
    %v6227 = vpop.permute.xlu0 %6226
    %6228 = vrot.lane.b32.xlu0 %v5503, 96
    %v6229 = vpop.permute.xlu0 %6228
    %6230 = vrot.lane.b32.xlu0 %v5515, 96
    %v6231 = vpop.permute.xlu0 %6230
    %6232 = vrot.lane.b32.xlu0 %v5527, 96
    %v6233 = vpop.permute.xlu0 %6232
    %6234 = vrot.lane.b32.xlu0 %v6059, 96
    %v6235 = vpop.permute.xlu0 %6234
    %6236 = vrot.lane.b32.xlu0 %v2286, 96
    %v6237 = vpop.permute.xlu0 %6236
    %6238 = vrot.lane.b32.xlu0 %v5551, 96
    %v6239 = vpop.permute.xlu0 %6238
    %6240 = vrot.lane.b32.xlu0 %v5563, 96
    %v6241 = vpop.permute.xlu0 %6240
    %6242 = vrot.lane.b32.xlu0 %v5575, 96
    %v6243 = vpop.permute.xlu0 %6242
    %6244 = vrot.lane.b32.xlu0 %v5587, 96
    %v6245 = vpop.permute.xlu0 %6244
    %6246 = vrot.lane.b32.xlu0 %v5599, 96
    %v6247 = vpop.permute.xlu0 %6246
    %6248 = vrot.lane.b32.xlu0 %v5611, 96
    %v6249 = vpop.permute.xlu0 %6248
    %6250 = vrot.lane.b32.xlu0 %v5623, 96
    %v6251 = vpop.permute.xlu0 %6250
    %6252 = vrot.lane.b32.xlu0 %v5635, 96
    %v6253 = vpop.permute.xlu0 %6252
    %6254 = vrot.lane.b32.xlu0 %v5647, 96
    %v6255 = vpop.permute.xlu0 %6254
    %6256 = vrot.lane.b32.xlu0 %v5659, 96
    %v6257 = vpop.permute.xlu0 %6256
    %6258 = vrot.lane.b32.xlu0 %v5671, 96
    %v6259 = vpop.permute.xlu0 %6258
    %6260 = vrot.lane.b32.xlu0 %v5683, 96
    %v6261 = vpop.permute.xlu0 %6260
    %6262 = vrot.lane.b32.xlu0 %v5695, 96
    %v6263 = vpop.permute.xlu0 %6262
    %6264 = vrot.lane.b32.xlu0 %v5707, 96
    %v6265 = vpop.permute.xlu0 %6264
    %6266 = vrot.lane.b32.xlu0 %v6071, 96
    %v6267 = vpop.permute.xlu0 %6266
    %v6269 = vsel %vm555, %v181, %v5709
    %v6271 = vsel %vm555, %v5284, %v5711
    %v6273 = vsel %vm555, %v5285, %v5713
    %v6275 = vsel %vm555, %v5286, %v5715
    %v6277 = vsel %vm555, %v5287, %v5717
    %v6279 = vsel %vm555, %v5288, %v5719
    %v6281 = vsel %vm555, %v5289, %v5721
    %v6283 = vsel %vm555, %v5290, %v5723
    %v6285 = vsel %vm555, %v5291, %v5725
    %v6287 = vsel %vm555, %v5292, %v5727
    %v6289 = vsel %vm555, %v5293, %v5729
    %v6291 = vsel %vm555, %v5294, %v5731
    %v6293 = vsel %vm555, %v5295, %v5733
    %v6295 = vsel %vm555, %v5296, %v5735
    %v6297 = vsel %vm555, %v5297, %v5737
    %v6299 = vsel %vm555, %v5298, %v5739
    %v6301 = vsel %vm555, %v5300, %v5741
    %v6303 = vsel %vm555, %v5301, %v5743
    %v6305 = vsel %vm555, %v5302, %v5745
    %v6307 = vsel %vm555, %v5303, %v5747
    %v6309 = vsel %vm555, %v5304, %v5749
    %v6311 = vsel %vm555, %v5305, %v5751
    %v6313 = vsel %vm555, %v5306, %v5753
    %v6315 = vsel %vm555, %v5307, %v5755
    %v6317 = vsel %vm555, %v5308, %v5757
    %v6319 = vsel %vm555, %v5309, %v5759
    %v6321 = vsel %vm555, %v5310, %v5761
    %v6323 = vsel %vm555, %v5311, %v5763
    %v6325 = vsel %vm555, %v5312, %v5765
    %v6327 = vsel %vm555, %v5313, %v5767
    %v6329 = vsel %vm555, %v5314, %v5769
    %v6331 = vsel %vm586, %v6269, %v5921
    %v6333 = vsel %vm586, %v6271, %v5923
    %v6335 = vsel %vm586, %v6273, %v5925
    %v6337 = vsel %vm586, %v6275, %v5927
    %v6339 = vsel %vm586, %v6277, %v5929
    %v6341 = vsel %vm586, %v6279, %v5931
    %v6343 = vsel %vm586, %v6281, %v5933
    %v6345 = vsel %vm586, %v6283, %v5935
    %v6347 = vsel %vm586, %v6285, %v5937
    %v6349 = vsel %vm586, %v6287, %v5939
    %v6351 = vsel %vm586, %v6289, %v5941
    %v6353 = vsel %vm586, %v6291, %v5943
    %v6355 = vsel %vm586, %v6293, %v5945
    %v6357 = vsel %vm586, %v6295, %v5947
    %v6359 = vsel %vm586, %v6297, %v5949
    %v6361 = vsel %vm586, %v6299, %v5951
    %v6363 = vsel %vm586, %v6301, %v5953
    %v6365 = vsel %vm586, %v6303, %v5955
    %v6367 = vsel %vm586, %v6305, %v5957
    %v6369 = vsel %vm586, %v6307, %v5959
    %v6371 = vsel %vm586, %v6309, %v5961
    %v6373 = vsel %vm586, %v6311, %v5963
    %v6375 = vsel %vm586, %v6313, %v5965
    %v6377 = vsel %vm586, %v6315, %v5967
    %v6379 = vsel %vm586, %v6317, %v5969
    %v6381 = vsel %vm586, %v6319, %v5971
    %v6383 = vsel %vm586, %v6321, %v5973
    %v6385 = vsel %vm586, %v6323, %v5975
    %v6387 = vsel %vm586, %v6325, %v5977
    %v6389 = vsel %vm586, %v6327, %v5979
    %v6391 = vsel %vm586, %v6329, %v5981
    %v6393 = vsel %vm617, %v6331, %v5985
    %v6396 = vsel %vm617, %v6333, %v5987
    %v6399 = vsel %vm617, %v6335, %v5989
    %v6402 = vsel %vm617, %v6337, %v5991
    %v6405 = vsel %vm617, %v6339, %v5993
    %v6408 = vsel %vm617, %v6341, %v5995
    %v6411 = vsel %vm617, %v6343, %v5997
    %v6414 = vsel %vm617, %v6345, %v5999
    %v6417 = vsel %vm617, %v6347, %v6001
    %v6420 = vsel %vm617, %v6349, %v6003
    %v6423 = vsel %vm617, %v6351, %v6005
    %v6426 = vsel %vm617, %v6353, %v6007
    %v6429 = vsel %vm617, %v6355, %v6009
    %v6432 = vsel %vm617, %v6357, %v6011
    %v6435 = vsel %vm617, %v6359, %v6013
    %v6438 = vsel %vm617, %v6361, %v6015
    %v6441 = vsel %vm617, %v6331, %v6017
    %v6444 = vsel %vm617, %v6363, %v6019
    %v6447 = vsel %vm617, %v6365, %v6021
    %v6450 = vsel %vm617, %v6367, %v6023
    %v6453 = vsel %vm617, %v6369, %v6025
    %v6456 = vsel %vm617, %v6371, %v6027
    %v6459 = vsel %vm617, %v6373, %v6029
    %v6462 = vsel %vm617, %v6375, %v6031
    %v6465 = vsel %vm617, %v6377, %v6033
    %v6468 = vsel %vm617, %v6379, %v6035
    %v6471 = vsel %vm617, %v6381, %v6037
    %v6474 = vsel %vm617, %v6383, %v6039
    %v6477 = vsel %vm617, %v6385, %v6041
    %v6480 = vsel %vm617, %v6387, %v6043
    %v6483 = vsel %vm617, %v6389, %v6045
    %v6486 = vsel %vm617, %v6391, %v6047
    %v6490 = vsel %vm555, %v5359, %v6081
    %v6493 = vsel %vm555, %v5371, %v6083
    %v6496 = vsel %vm555, %v5383, %v6085
    %v6499 = vsel %vm555, %v5395, %v6087
    %v6502 = vsel %vm555, %v5407, %v6089
    %v6505 = vsel %vm555, %v5419, %v6091
    %v6508 = vsel %vm555, %v5431, %v6093
    %v6511 = vsel %vm555, %v5443, %v6095
    %v6514 = vsel %vm555, %v5455, %v6097
    %v6517 = vsel %vm555, %v5467, %v6099
    %v6520 = vsel %vm555, %v5479, %v6101
    %v6523 = vsel %vm555, %v5491, %v6103
    %v6526 = vsel %vm555, %v5503, %v6105
    %v6529 = vsel %vm555, %v5515, %v6107
    %v6532 = vsel %vm555, %v5527, %v6109
    %v6535 = vsel %vm555, %v6059, %v6111
    %v6538 = vsel %vm555, %v5539, %v6113
    %v6541 = vsel %vm555, %v5551, %v6115
    %v6544 = vsel %vm555, %v5563, %v6117
    %v6547 = vsel %vm555, %v5575, %v6119
    %v6550 = vsel %vm555, %v5587, %v6121
    %v6553 = vsel %vm555, %v5599, %v6123
    %v6556 = vsel %vm555, %v5611, %v6125
    %v6559 = vsel %vm555, %v5623, %v6127
    %v6562 = vsel %vm555, %v5635, %v6129
    %v6565 = vsel %vm555, %v5647, %v6131
    %v6568 = vsel %vm555, %v5659, %v6133
    %v6571 = vsel %vm555, %v5671, %v6135
    %v6574 = vsel %vm555, %v5683, %v6137
    %v6577 = vsel %vm555, %v5695, %v6139
    %v6580 = vsel %vm555, %v5707, %v6141
    %v6583 = vsel %vm555, %v6071, %v6143
    %v6585 = vsel %vm586, %v6490, %v6145
    %v6587 = vsel %vm586, %v6493, %v6147
    %v6589 = vsel %vm586, %v6496, %v6149
    %v6591 = vsel %vm586, %v6499, %v6151
    %v6593 = vsel %vm586, %v6502, %v6153
    %v6595 = vsel %vm586, %v6505, %v6155
    %v6597 = vsel %vm586, %v6508, %v6157
    %v6599 = vsel %vm586, %v6511, %v6159
    %v6601 = vsel %vm586, %v6514, %v6161
    %v6603 = vsel %vm586, %v6517, %v6163
    %v6605 = vsel %vm586, %v6520, %v6165
    %v6607 = vsel %vm586, %v6523, %v6167
    %v6609 = vsel %vm586, %v6526, %v6169
    %v6611 = vsel %vm586, %v6529, %v6171
    %v6613 = vsel %vm586, %v6532, %v6173
    %v6615 = vsel %vm586, %v6535, %v6175
    %v6617 = vsel %vm586, %v6538, %v6177
    %v6619 = vsel %vm586, %v6541, %v6179
    %v6621 = vsel %vm586, %v6544, %v6181
    %v6623 = vsel %vm586, %v6547, %v6183
    %v6625 = vsel %vm586, %v6550, %v6185
    %v6627 = vsel %vm586, %v6553, %v6187
    %v6629 = vsel %vm586, %v6556, %v6189
    %v6631 = vsel %vm586, %v6559, %v6191
    %v6633 = vsel %vm586, %v6562, %v6193
    %v6635 = vsel %vm586, %v6565, %v6195
    %v6637 = vsel %vm586, %v6568, %v6197
    %v6639 = vsel %vm586, %v6571, %v6199
    %v6641 = vsel %vm586, %v6574, %v6201
    %v6643 = vsel %vm586, %v6577, %v6203
    %v6645 = vsel %vm586, %v6580, %v6205
    %v6646 = vsel %vm586, %v6583, %v6175
    %v6648 = vsel %vm617, %v6585, %v6207
    %v6651 = vsel %vm617, %v6587, %v6209
    %v6654 = vsel %vm617, %v6589, %v6211
    %v6657 = vsel %vm617, %v6591, %v6213
    %v6660 = vsel %vm617, %v6593, %v6215
    %v6663 = vsel %vm617, %v6595, %v6217
    %v6666 = vsel %vm617, %v6597, %v6219
    %v6669 = vsel %vm617, %v6599, %v6221
    %v6672 = vsel %vm617, %v6601, %v6223
    %v6675 = vsel %vm617, %v6603, %v6225
    %v6678 = vsel %vm617, %v6605, %v6227
    %v6681 = vsel %vm617, %v6607, %v6229
    %v6684 = vsel %vm617, %v6609, %v6231
    %v6687 = vsel %vm617, %v6611, %v6233
    %v6690 = vsel %vm617, %v6613, %v6235
    %v6693 = vsel %vm617, %v6615, %v6237
    %v6696 = vsel %vm617, %v6617, %v6239
    %v6699 = vsel %vm617, %v6619, %v6241
    %v6702 = vsel %vm617, %v6621, %v6243
    %v6705 = vsel %vm617, %v6623, %v6245
    %v6708 = vsel %vm617, %v6625, %v6247
    %v6711 = vsel %vm617, %v6627, %v6249
    %v6714 = vsel %vm617, %v6629, %v6251
    %v6717 = vsel %vm617, %v6631, %v6253
    %v6720 = vsel %vm617, %v6633, %v6255
    %v6723 = vsel %vm617, %v6635, %v6257
    %v6726 = vsel %vm617, %v6637, %v6259
    %v6729 = vsel %vm617, %v6639, %v6261
    %v6732 = vsel %vm617, %v6641, %v6263
    %v6735 = vsel %vm617, %v6643, %v6265
    %v6738 = vsel %vm617, %v6645, %v6267
    %v6740 = vsel %vm617, %v6646, %v6237
    %v6742 = vld [vmem:[%s4] sm:$0xf]
    %v6743 = vld [vmem:[%s4 + $0x4] sm:$0xf]
    %v6744 = vld [vmem:[%s4 + $0x8] sm:$0xf]
    %v6745 = vld [vmem:[%s4 + $0xc] sm:$0xf]
    %v6746 = vld [vmem:[%s4 + $0x10] sm:$0xf]
    %v6747 = vld [vmem:[%s4 + $0x14] sm:$0xf]
    %v6748 = vld [vmem:[%s4 + $0x18] sm:$0xf]
    %v6749 = vld [vmem:[%s4 + $0x1c] sm:$0xf]
    %v6750 = vld [vmem:[%s4 + $0x20] sm:$0xf]
    %v6751 = vld [vmem:[%s4 + $0x24] sm:$0xf]
    %v6752 = vld [vmem:[%s4 + $0x28] sm:$0xf]
    %v6753 = vld [vmem:[%s4 + $0x2c] sm:$0xf]
    %v6754 = vld [vmem:[%s4 + $0x30] sm:$0xf]
    %v6755 = vld [vmem:[%s4 + $0x34] sm:$0xf]
    %v6756 = vld [vmem:[%s4 + $0x38] sm:$0xf]
    %v6757 = vld [vmem:[%s4 + $0x3c] sm:$0xf]
    %v6758 = vld [vmem:[%s4 + $0x40] sm:$0xf]
    %v6759 = vld [vmem:[%s4 + $0x44] sm:$0xf]
    %v6760 = vld [vmem:[%s4 + $0x48] sm:$0xf]
    %v6761 = vld [vmem:[%s4 + $0x4c] sm:$0xf]
    %v6762 = vld [vmem:[%s4 + $0x50] sm:$0xf]
    %v6763 = vld [vmem:[%s4 + $0x54] sm:$0xf]
    %v6764 = vld [vmem:[%s4 + $0x58] sm:$0xf]
    %v6765 = vld [vmem:[%s4 + $0x5c] sm:$0xf]
    %v6766 = vld [vmem:[%s4 + $0x60] sm:$0xf]
    %v6767 = vld [vmem:[%s4 + $0x64] sm:$0xf]
    %v6768 = vld [vmem:[%s4 + $0x68] sm:$0xf]
    %v6769 = vld [vmem:[%s4 + $0x6c] sm:$0xf]
    %v6770 = vld [vmem:[%s4 + $0x70] sm:$0xf]
    %v6771 = vld [vmem:[%s4 + $0x74] sm:$0xf]
    %v6772 = vld [vmem:[%s4 + $0x78] sm:$0xf]
    %v6773 = vld [vmem:[%s4 + $0x7c] sm:$0xf]
    %v6774 = vld [vmem:[%s4 + $0x80] sm:$0xf]
    %v6775 = vld [vmem:[%s4 + $0x84] sm:$0xf]
    %v6776 = vld [vmem:[%s4 + $0x88] sm:$0xf]
    %v6777 = vld [vmem:[%s4 + $0x8c] sm:$0xf]
    %v6814 = vunpack.c.l.b16 %v6742
    %v6815 = vunpack.c.l.b16 %v6743
    %v6816 = vunpack.c.l.b16 %v6744
    %v6817 = vunpack.c.l.b16 %v6745
    %v6818 = vunpack.c.l.b16 %v6746
    %v6819 = vunpack.c.l.b16 %v6747
    %v6820 = vunpack.c.l.b16 %v6748
    %v6821 = vunpack.c.l.b16 %v6749
    %v6822 = vunpack.c.l.b16 %v6750
    %v6823 = vunpack.c.l.b16 %v6751
    %v6824 = vunpack.c.l.b16 %v6752
    %v6825 = vunpack.c.l.b16 %v6753
    %v6826 = vunpack.c.l.b16 %v6754
    %v6827 = vunpack.c.l.b16 %v6755
    %v6828 = vunpack.c.l.b16 %v6756
    %v6829 = vunpack.c.l.b16 %v6757
    %v6830 = vunpack.c.l.b16 %v6758
    %v6831 = vunpack.c.l.b16 %v6759
    %v6832 = vunpack.c.l.b16 %v6760
    %v6833 = vunpack.c.l.b16 %v6761
    %v6834 = vunpack.c.l.b16 %v6762
    %v6835 = vunpack.c.l.b16 %v6763
    %v6836 = vunpack.c.l.b16 %v6764
    %v6837 = vunpack.c.l.b16 %v6765
    %v6838 = vunpack.c.l.b16 %v6766
    %v6839 = vunpack.c.l.b16 %v6767
    %v6840 = vunpack.c.l.b16 %v6768
    %v6841 = vunpack.c.l.b16 %v6769
    %v6842 = vunpack.c.l.b16 %v6770
    %v6843 = vunpack.c.l.b16 %v6771
    %v6844 = vunpack.c.l.b16 %v6772
    %v6845 = vunpack.c.l.b16 %v6773
    %v6846 = vunpack.c.l.b16 %v6774
    %v6847 = vunpack.c.l.b16 %v6775
    %v6848 = vunpack.c.l.b16 %v6776
    %v6849 = vunpack.c.l.b16 %v6777
    %v6850 = vpack.c.b16 %v6815, %v6814
    %v6851 = vpack.c.b16 %v6817, %v6816
    %v6852 = vpack.c.b16 %v6819, %v6818
    %v6853 = vpack.c.b16 %v6821, %v6820
    %v6854 = vpack.c.b16 %v6823, %v6822
    %v6855 = vpack.c.b16 %v6825, %v6824
    %v6856 = vpack.c.b16 %v6827, %v6826
    %v6857 = vpack.c.b16 %v6829, %v6828
    %v6858 = vpack.c.b16 %v6831, %v6830
    %v6859 = vpack.c.b16 %v6833, %v6832
    %v6860 = vpack.c.b16 %v6835, %v6834
    %v6861 = vpack.c.b16 %v6837, %v6836
    %v6862 = vpack.c.b16 %v6839, %v6838
    %v6863 = vpack.c.b16 %v6841, %v6840
    %v6864 = vpack.c.b16 %v6843, %v6842
    %v6865 = vpack.c.b16 %v6845, %v6844
    %v6866 = vpack.c.b16 %v6847, %v6846
    %v6867 = vpack.c.b16 %v6849, %v6848
    %v6887 = vsel %vm555, %v5835, 0
    %v6890 = vsel %vm555, %v5838, 0
    %v6893 = vsel %vm555, %v5841, 0
    %v6896 = vsel %vm555, %v5844, 0
    %v6899 = vsel %vm555, %v5847, 0
    %v6902 = vsel %vm555, %v5850, 0
    %v6905 = vsel %vm555, %v5853, 0
    %v6908 = vsel %vm555, %v5856, 0
    %v6911 = vsel %vm555, %v5859, 0
    %v6914 = vsel %vm555, %v5862, 0
    %v6917 = vsel %vm555, %v5865, 0
    %v6920 = vsel %vm555, %v5868, 0
    %v6923 = vsel %vm555, %v5871, 0
    %v6926 = vsel %vm555, %v5874, 0
    %v6929 = vsel %vm555, %v6076, 0
    %v6931 = vsel %vm555, %v2774, 0
    %v6934 = vsel %vm555, %v5880, 0
    %v6937 = vsel %vm555, %v5883, 0
    %v6940 = vsel %vm555, %v5886, 0
    %v6943 = vsel %vm555, %v5889, 0
    %v6946 = vsel %vm555, %v5892, 0
    %v6949 = vsel %vm555, %v5895, 0
    %v6952 = vsel %vm555, %v5898, 0
    %v6955 = vsel %vm555, %v5901, 0
    %v6958 = vsel %vm555, %v5904, 0
    %v6961 = vsel %vm555, %v5907, 0
    %v6964 = vsel %vm555, %v5910, 0
    %v6967 = vsel %vm555, %v5913, 0
    %v6970 = vsel %vm555, %v5916, 0
    %v6973 = vsel %vm555, %v5919, 0
    %v6976 = vsel %vm555, %v6079, 0
    %6978 = vmatpush.bf16.msra.mxu0 %v6857
    %6979 = vmatpush.bf16.msra.mxu0 %v6856
    %6980 = vmatpush.bf16.msra.mxu0 %v6855
    %6981 = vmatpush.bf16.msra.mxu0 %v6854
    %6982 = vmatpush.bf16.msra.mxu0 %v6853
    %6983 = vmatpush.bf16.msra.mxu0 %v6852
    %6984 = vmatpush.bf16.msra.mxu0 %v6851
    %6985 = vmatpush.bf16.msra.mxu0 %v6850
    %6986 = vmatmul.bf16.gmra.mxu0 %v6393
    %v6987 = vpop.f32.mrf.mxu0
    %v6988 = vadd.f32 0.0, %v6987
    %v6989 = vpop.f32.mrf.mxu0
    %v6990 = vadd.f32 0.0, %v6989
    %6991 = vmatmul.bf16.gmra.mxu0 %v6396
    %v6992 = vpop.f32.mrf.mxu0
    %v6993 = vadd.f32 0.0, %v6992
    %v6994 = vpop.f32.mrf.mxu0
    %v6995 = vadd.f32 0.0, %v6994
    %6996 = vmatmul.bf16.gmra.mxu0 %v6399
    %v6997 = vpop.f32.mrf.mxu0
    %v6998 = vadd.f32 0.0, %v6997
    %v6999 = vpop.f32.mrf.mxu0
    %v7000 = vadd.f32 0.0, %v6999
    %7001 = vmatmul.bf16.gmra.mxu0 %v6402
    %v7002 = vpop.f32.mrf.mxu0
    %v7003 = vadd.f32 0.0, %v7002
    %v7004 = vpop.f32.mrf.mxu0
    %v7005 = vadd.f32 0.0, %v7004
    %7006 = vmatmul.bf16.gmra.mxu0 %v6405
    %v7007 = vpop.f32.mrf.mxu0
    %v7008 = vadd.f32 0.0, %v7007
    %v7009 = vpop.f32.mrf.mxu0
    %v7010 = vadd.f32 0.0, %v7009
    %7011 = vmatmul.bf16.gmra.mxu0 %v6408
    %v7012 = vpop.f32.mrf.mxu0
    %v7013 = vadd.f32 0.0, %v7012
    %v7014 = vpop.f32.mrf.mxu0
    %v7015 = vadd.f32 0.0, %v7014
    %7016 = vmatmul.bf16.gmra.mxu0 %v6411
    %v7017 = vpop.f32.mrf.mxu0
    %v7018 = vadd.f32 0.0, %v7017
    %v7019 = vpop.f32.mrf.mxu0
    %v7020 = vadd.f32 0.0, %v7019
    %7021 = vmatmul.bf16.gmra.mxu0 %v6414
    %v7022 = vpop.f32.mrf.mxu0
    %v7023 = vadd.f32 0.0, %v7022
    %v7024 = vpop.f32.mrf.mxu0
    %v7025 = vadd.f32 0.0, %v7024
    %7026 = vmatmul.bf16.gmra.mxu0 %v6417
    %v7027 = vpop.f32.mrf.mxu0
    %v7028 = vadd.f32 0.0, %v7027
    %v7029 = vpop.f32.mrf.mxu0
    %v7030 = vadd.f32 0.0, %v7029
    %7031 = vmatmul.bf16.gmra.mxu0 %v6420
    %v7032 = vpop.f32.mrf.mxu0
    %v7033 = vadd.f32 0.0, %v7032
    %v7034 = vpop.f32.mrf.mxu0
    %v7035 = vadd.f32 0.0, %v7034
    %7036 = vmatmul.bf16.gmra.mxu0 %v6423
    %v7037 = vpop.f32.mrf.mxu0
    %v7038 = vadd.f32 0.0, %v7037
    %v7039 = vpop.f32.mrf.mxu0
    %v7040 = vadd.f32 0.0, %v7039
    %7041 = vmatmul.bf16.gmra.mxu0 %v6426
    %v7042 = vpop.f32.mrf.mxu0
    %v7043 = vadd.f32 0.0, %v7042
    %v7044 = vpop.f32.mrf.mxu0
    %v7045 = vadd.f32 0.0, %v7044
    %7046 = vmatmul.bf16.gmra.mxu0 %v6429
    %v7047 = vpop.f32.mrf.mxu0
    %v7048 = vadd.f32 0.0, %v7047
    %v7049 = vpop.f32.mrf.mxu0
    %v7050 = vadd.f32 0.0, %v7049
    %7051 = vmatmul.bf16.gmra.mxu0 %v6432
    %v7052 = vpop.f32.mrf.mxu0
    %v7053 = vadd.f32 0.0, %v7052
    %v7054 = vpop.f32.mrf.mxu0
    %v7055 = vadd.f32 0.0, %v7054
    %7056 = vmatmul.bf16.gmra.mxu0 %v6435
    %v7057 = vpop.f32.mrf.mxu0
    %v7058 = vadd.f32 0.0, %v7057
    %v7059 = vpop.f32.mrf.mxu0
    %v7060 = vadd.f32 0.0, %v7059
    %7061 = vmatmul.bf16.gmra.mxu0 %v6438
    %v7062 = vpop.f32.mrf.mxu0
    %v7063 = vadd.f32 0.0, %v7062
    %v7064 = vpop.f32.mrf.mxu0
    %v7065 = vadd.f32 0.0, %v7064
    %7066 = vmatmul.bf16.gmra.mxu0 %v6441
    %v7067 = vpop.f32.mrf.mxu0
    %v7068 = vadd.f32 0.0, %v7067
    %v7069 = vpop.f32.mrf.mxu0
    %v7070 = vadd.f32 0.0, %v7069
    %7071 = vmatmul.bf16.gmra.mxu0 %v6444
    %v7072 = vpop.f32.mrf.mxu0
    %v7073 = vadd.f32 0.0, %v7072
    %v7074 = vpop.f32.mrf.mxu0
    %v7075 = vadd.f32 0.0, %v7074
    %7076 = vmatmul.bf16.gmra.mxu0 %v6447
    %v7077 = vpop.f32.mrf.mxu0
    %v7078 = vadd.f32 0.0, %v7077
    %v7079 = vpop.f32.mrf.mxu0
    %v7080 = vadd.f32 0.0, %v7079
    %7081 = vmatmul.bf16.gmra.mxu0 %v6450
    %v7082 = vpop.f32.mrf.mxu0
    %v7083 = vadd.f32 0.0, %v7082
    %v7084 = vpop.f32.mrf.mxu0
    %v7085 = vadd.f32 0.0, %v7084
    %7086 = vmatmul.bf16.gmra.mxu0 %v6453
    %v7087 = vpop.f32.mrf.mxu0
    %v7088 = vadd.f32 0.0, %v7087
    %v7089 = vpop.f32.mrf.mxu0
    %v7090 = vadd.f32 0.0, %v7089
    %7091 = vmatmul.bf16.gmra.mxu0 %v6456
    %v7092 = vpop.f32.mrf.mxu0
    %v7093 = vadd.f32 0.0, %v7092
    %v7094 = vpop.f32.mrf.mxu0
    %v7095 = vadd.f32 0.0, %v7094
    %7096 = vmatmul.bf16.gmra.mxu0 %v6459
    %v7097 = vpop.f32.mrf.mxu0
    %v7098 = vadd.f32 0.0, %v7097
    %v7099 = vpop.f32.mrf.mxu0
    %v7100 = vadd.f32 0.0, %v7099
    %7101 = vmatmul.bf16.gmra.mxu0 %v6462
    %v7102 = vpop.f32.mrf.mxu0
    %v7103 = vadd.f32 0.0, %v7102
    %v7104 = vpop.f32.mrf.mxu0
    %v7105 = vadd.f32 0.0, %v7104
    %7106 = vmatmul.bf16.gmra.mxu0 %v6465
    %v7107 = vpop.f32.mrf.mxu0
    %v7108 = vadd.f32 0.0, %v7107
    %v7109 = vpop.f32.mrf.mxu0
    %v7110 = vadd.f32 0.0, %v7109
    %7111 = vmatmul.bf16.gmra.mxu0 %v6468
    %v7112 = vpop.f32.mrf.mxu0
    %v7113 = vadd.f32 0.0, %v7112
    %v7114 = vpop.f32.mrf.mxu0
    %v7115 = vadd.f32 0.0, %v7114
    %7116 = vmatmul.bf16.gmra.mxu0 %v6471
    %v7117 = vpop.f32.mrf.mxu0
    %v7118 = vadd.f32 0.0, %v7117
    %v7119 = vpop.f32.mrf.mxu0
    %v7120 = vadd.f32 0.0, %v7119
    %7121 = vmatmul.bf16.gmra.mxu0 %v6474
    %v7122 = vpop.f32.mrf.mxu0
    %v7123 = vadd.f32 0.0, %v7122
    %v7124 = vpop.f32.mrf.mxu0
    %v7125 = vadd.f32 0.0, %v7124
    %7126 = vmatmul.bf16.gmra.mxu0 %v6477
    %v7127 = vpop.f32.mrf.mxu0
    %v7128 = vadd.f32 0.0, %v7127
    %v7129 = vpop.f32.mrf.mxu0
    %v7130 = vadd.f32 0.0, %v7129
    %7131 = vmatmul.bf16.gmra.mxu0 %v6480
    %v7132 = vpop.f32.mrf.mxu0
    %v7133 = vadd.f32 0.0, %v7132
    %v7134 = vpop.f32.mrf.mxu0
    %v7135 = vadd.f32 0.0, %v7134
    %7136 = vmatmul.bf16.gmra.mxu0 %v6483
    %v7137 = vpop.f32.mrf.mxu0
    %v7138 = vadd.f32 0.0, %v7137
    %v7139 = vpop.f32.mrf.mxu0
    %v7140 = vadd.f32 0.0, %v7139
    %7141 = vmatmul.bf16.gmra.mxu0 %v6486
    %v7142 = vpop.f32.mrf.mxu0
    %v7143 = vadd.f32 0.0, %v7142
    %v7144 = vpop.f32.mrf.mxu0
    %v7145 = vadd.f32 0.0, %v7144
    %7146 = vdwg.mxu0
    %7147 = vmatpush.bf16.msra.mxu0 %v6865
    %7148 = vmatpush.bf16.msra.mxu0 %v6864
    %7149 = vmatpush.bf16.msra.mxu0 %v6863
    %7150 = vmatpush.bf16.msra.mxu0 %v6862
    %7151 = vmatpush.bf16.msra.mxu0 %v6861
    %7152 = vmatpush.bf16.msra.mxu0 %v6860
    %7153 = vmatpush.bf16.msra.mxu0 %v6859
    %7154 = vmatpush.bf16.msra.mxu0 %v6858
    %7155 = vmatmul.bf16.gmra.mxu0 %v6648
    %v7156 = vpop.f32.mrf.mxu0
    %v7157 = vadd.f32 %v6988, %v7156
    %v7158 = vpop.f32.mrf.mxu0
    %v7159 = vadd.f32 %v6990, %v7158
    %7160 = vmatmul.bf16.gmra.mxu0 %v6651
    %v7161 = vpop.f32.mrf.mxu0
    %v7162 = vadd.f32 %v6993, %v7161
    %v7163 = vpop.f32.mrf.mxu0
    %v7164 = vadd.f32 %v6995, %v7163
    %7165 = vmatmul.bf16.gmra.mxu0 %v6654
    %v7166 = vpop.f32.mrf.mxu0
    %v7167 = vadd.f32 %v6998, %v7166
    %v7168 = vpop.f32.mrf.mxu0
    %v7169 = vadd.f32 %v7000, %v7168
    %7170 = vmatmul.bf16.gmra.mxu0 %v6657
    %v7171 = vpop.f32.mrf.mxu0
    %v7172 = vadd.f32 %v7003, %v7171
    %v7173 = vpop.f32.mrf.mxu0
    %v7174 = vadd.f32 %v7005, %v7173
    %7175 = vmatmul.bf16.gmra.mxu0 %v6660
    %v7176 = vpop.f32.mrf.mxu0
    %v7177 = vadd.f32 %v7008, %v7176
    %v7178 = vpop.f32.mrf.mxu0
    %v7179 = vadd.f32 %v7010, %v7178
    %7180 = vmatmul.bf16.gmra.mxu0 %v6663
    %v7181 = vpop.f32.mrf.mxu0
    %v7182 = vadd.f32 %v7013, %v7181
    %v7183 = vpop.f32.mrf.mxu0
    %v7184 = vadd.f32 %v7015, %v7183
    %7185 = vmatmul.bf16.gmra.mxu0 %v6666
    %v7186 = vpop.f32.mrf.mxu0
    %v7187 = vadd.f32 %v7018, %v7186
    %v7188 = vpop.f32.mrf.mxu0
    %v7189 = vadd.f32 %v7020, %v7188
    %7190 = vmatmul.bf16.gmra.mxu0 %v6669
    %v7191 = vpop.f32.mrf.mxu0
    %v7192 = vadd.f32 %v7023, %v7191
    %v7193 = vpop.f32.mrf.mxu0
    %v7194 = vadd.f32 %v7025, %v7193
    %7195 = vmatmul.bf16.gmra.mxu0 %v6672
    %v7196 = vpop.f32.mrf.mxu0
    %v7197 = vadd.f32 %v7028, %v7196
    %v7198 = vpop.f32.mrf.mxu0
    %v7199 = vadd.f32 %v7030, %v7198
    %7200 = vmatmul.bf16.gmra.mxu0 %v6675
    %v7201 = vpop.f32.mrf.mxu0
    %v7202 = vadd.f32 %v7033, %v7201
    %v7203 = vpop.f32.mrf.mxu0
    %v7204 = vadd.f32 %v7035, %v7203
    %7205 = vmatmul.bf16.gmra.mxu0 %v6678
    %v7206 = vpop.f32.mrf.mxu0
    %v7207 = vadd.f32 %v7038, %v7206
    %v7208 = vpop.f32.mrf.mxu0
    %v7209 = vadd.f32 %v7040, %v7208
    %7210 = vmatmul.bf16.gmra.mxu0 %v6681
    %v7211 = vpop.f32.mrf.mxu0
    %v7212 = vadd.f32 %v7043, %v7211
    %v7213 = vpop.f32.mrf.mxu0
    %v7214 = vadd.f32 %v7045, %v7213
    %7215 = vmatmul.bf16.gmra.mxu0 %v6684
    %v7216 = vpop.f32.mrf.mxu0
    %v7217 = vadd.f32 %v7048, %v7216
    %v7218 = vpop.f32.mrf.mxu0
    %v7219 = vadd.f32 %v7050, %v7218
    %7220 = vmatmul.bf16.gmra.mxu0 %v6687
    %v7221 = vpop.f32.mrf.mxu0
    %v7222 = vadd.f32 %v7053, %v7221
    %v7223 = vpop.f32.mrf.mxu0
    %v7224 = vadd.f32 %v7055, %v7223
    %7225 = vmatmul.bf16.gmra.mxu0 %v6690
    %v7226 = vpop.f32.mrf.mxu0
    %v7227 = vadd.f32 %v7058, %v7226
    %v7228 = vpop.f32.mrf.mxu0
    %v7229 = vadd.f32 %v7060, %v7228
    %7230 = vmatmul.bf16.gmra.mxu0 %v6693
    %v7231 = vpop.f32.mrf.mxu0
    %v7232 = vadd.f32 %v7063, %v7231
    %v7233 = vpop.f32.mrf.mxu0
    %v7234 = vadd.f32 %v7065, %v7233
    %7235 = vmatmul.bf16.gmra.mxu0 %v6696
    %v7236 = vpop.f32.mrf.mxu0
    %v7237 = vadd.f32 %v7068, %v7236
    %v7238 = vpop.f32.mrf.mxu0
    %v7239 = vadd.f32 %v7070, %v7238
    %7240 = vmatmul.bf16.gmra.mxu0 %v6699
    %v7241 = vpop.f32.mrf.mxu0
    %v7242 = vadd.f32 %v7073, %v7241
    %v7243 = vpop.f32.mrf.mxu0
    %v7244 = vadd.f32 %v7075, %v7243
    %7245 = vmatmul.bf16.gmra.mxu0 %v6702
    %v7246 = vpop.f32.mrf.mxu0
    %v7247 = vadd.f32 %v7078, %v7246
    %v7248 = vpop.f32.mrf.mxu0
    %v7249 = vadd.f32 %v7080, %v7248
    %7250 = vmatmul.bf16.gmra.mxu0 %v6705
    %v7251 = vpop.f32.mrf.mxu0
    %v7252 = vadd.f32 %v7083, %v7251
    %v7253 = vpop.f32.mrf.mxu0
    %v7254 = vadd.f32 %v7085, %v7253
    %7255 = vmatmul.bf16.gmra.mxu0 %v6708
    %v7256 = vpop.f32.mrf.mxu0
    %v7257 = vadd.f32 %v7088, %v7256
    %v7258 = vpop.f32.mrf.mxu0
    %v7259 = vadd.f32 %v7090, %v7258
    %7260 = vmatmul.bf16.gmra.mxu0 %v6711
    %v7261 = vpop.f32.mrf.mxu0
    %v7262 = vadd.f32 %v7093, %v7261
    %v7263 = vpop.f32.mrf.mxu0
    %v7264 = vadd.f32 %v7095, %v7263
    %7265 = vmatmul.bf16.gmra.mxu0 %v6714
    %v7266 = vpop.f32.mrf.mxu0
    %v7267 = vadd.f32 %v7098, %v7266
    %v7268 = vpop.f32.mrf.mxu0
    %v7269 = vadd.f32 %v7100, %v7268
    %7270 = vmatmul.bf16.gmra.mxu0 %v6717
    %v7271 = vpop.f32.mrf.mxu0
    %v7272 = vadd.f32 %v7103, %v7271
    %v7273 = vpop.f32.mrf.mxu0
    %v7274 = vadd.f32 %v7105, %v7273
    %7275 = vmatmul.bf16.gmra.mxu0 %v6720
    %v7276 = vpop.f32.mrf.mxu0
    %v7277 = vadd.f32 %v7108, %v7276
    %v7278 = vpop.f32.mrf.mxu0
    %v7279 = vadd.f32 %v7110, %v7278
    %7280 = vmatmul.bf16.gmra.mxu0 %v6723
    %v7281 = vpop.f32.mrf.mxu0
    %v7282 = vadd.f32 %v7113, %v7281
    %v7283 = vpop.f32.mrf.mxu0
    %v7284 = vadd.f32 %v7115, %v7283
    %7285 = vmatmul.bf16.gmra.mxu0 %v6726
    %v7286 = vpop.f32.mrf.mxu0
    %v7287 = vadd.f32 %v7118, %v7286
    %v7288 = vpop.f32.mrf.mxu0
    %v7289 = vadd.f32 %v7120, %v7288
    %7290 = vmatmul.bf16.gmra.mxu0 %v6729
    %v7291 = vpop.f32.mrf.mxu0
    %v7292 = vadd.f32 %v7123, %v7291
    %v7293 = vpop.f32.mrf.mxu0
    %v7294 = vadd.f32 %v7125, %v7293
    %7295 = vmatmul.bf16.gmra.mxu0 %v6732
    %v7296 = vpop.f32.mrf.mxu0
    %v7297 = vadd.f32 %v7128, %v7296
    %v7298 = vpop.f32.mrf.mxu0
    %v7299 = vadd.f32 %v7130, %v7298
    %7300 = vmatmul.bf16.gmra.mxu0 %v6735
    %v7301 = vpop.f32.mrf.mxu0
    %v7302 = vadd.f32 %v7133, %v7301
    %v7303 = vpop.f32.mrf.mxu0
    %v7304 = vadd.f32 %v7135, %v7303
    %7305 = vmatmul.bf16.gmra.mxu0 %v6738
    %v7306 = vpop.f32.mrf.mxu0
    %v7307 = vadd.f32 %v7138, %v7306
    %v7308 = vpop.f32.mrf.mxu0
    %v7309 = vadd.f32 %v7140, %v7308
    %7310 = vmatmul.bf16.gmra.mxu0 %v6740
    %v7311 = vpop.f32.mrf.mxu0
    %v7312 = vadd.f32 %v7143, %v7311
    %v7313 = vpop.f32.mrf.mxu0
    %v7314 = vadd.f32 %v7145, %v7313
    %7315 = vdwg.mxu0
    %7316 = vmatpush.bf16.msra.mxu0 0
    %7317 = vmatpush.bf16.msra.mxu0 0
    %7318 = vmatpush.bf16.msra.mxu0 0
    %7319 = vmatpush.bf16.msra.mxu0 0
    %7320 = vmatpush.bf16.msra.mxu0 0
    %7321 = vmatpush.bf16.msra.mxu0 0
    %7322 = vmatpush.bf16.msra.mxu0 %v6867
    %7323 = vmatpush.bf16.msra.mxu0 %v6866
    %7324 = vmatmul.bf16.gmra.mxu0 %v6887
    %v7325 = vpop.f32.mrf.mxu0
    %v7326 = vadd.f32 %v7157, %v7325
    %v7327 = vpop.f32.mrf.mxu0
    %v7328 = vadd.f32 %v7159, %v7327
    %7329 = vmatmul.bf16.gmra.mxu0 %v6890
    %v7330 = vpop.f32.mrf.mxu0
    %v7331 = vadd.f32 %v7162, %v7330
    %v7332 = vpop.f32.mrf.mxu0
    %v7333 = vadd.f32 %v7164, %v7332
    %7334 = vmatmul.bf16.gmra.mxu0 %v6893
    %v7335 = vpop.f32.mrf.mxu0
    %v7336 = vadd.f32 %v7167, %v7335
    %v7337 = vpop.f32.mrf.mxu0
    %v7338 = vadd.f32 %v7169, %v7337
    %7339 = vmatmul.bf16.gmra.mxu0 %v6896
    %v7340 = vpop.f32.mrf.mxu0
    %v7341 = vadd.f32 %v7172, %v7340
    %v7342 = vpop.f32.mrf.mxu0
    %v7343 = vadd.f32 %v7174, %v7342
    %7344 = vmatmul.bf16.gmra.mxu0 %v6899
    %v7345 = vpop.f32.mrf.mxu0
    %v7346 = vadd.f32 %v7177, %v7345
    %v7347 = vpop.f32.mrf.mxu0
    %v7348 = vadd.f32 %v7179, %v7347
    %7349 = vmatmul.bf16.gmra.mxu0 %v6902
    %v7350 = vpop.f32.mrf.mxu0
    %v7351 = vadd.f32 %v7182, %v7350
    %v7352 = vpop.f32.mrf.mxu0
    %v7353 = vadd.f32 %v7184, %v7352
    %7354 = vmatmul.bf16.gmra.mxu0 %v6905
    %v7355 = vpop.f32.mrf.mxu0
    %v7356 = vadd.f32 %v7187, %v7355
    %v7357 = vpop.f32.mrf.mxu0
    %v7358 = vadd.f32 %v7189, %v7357
    %7359 = vmatmul.bf16.gmra.mxu0 %v6908
    %v7360 = vpop.f32.mrf.mxu0
    %v7361 = vadd.f32 %v7192, %v7360
    %v7362 = vpop.f32.mrf.mxu0
    %v7363 = vadd.f32 %v7194, %v7362
    %7364 = vmatmul.bf16.gmra.mxu0 %v6911
    %v7365 = vpop.f32.mrf.mxu0
    %v7366 = vadd.f32 %v7197, %v7365
    %v7367 = vpop.f32.mrf.mxu0
    %v7368 = vadd.f32 %v7199, %v7367
    %7369 = vmatmul.bf16.gmra.mxu0 %v6914
    %v7370 = vpop.f32.mrf.mxu0
    %v7371 = vadd.f32 %v7202, %v7370
    %v7372 = vpop.f32.mrf.mxu0
    %v7373 = vadd.f32 %v7204, %v7372
    %7374 = vmatmul.bf16.gmra.mxu0 %v6917
    %v7375 = vpop.f32.mrf.mxu0
    %v7376 = vadd.f32 %v7207, %v7375
    %v7377 = vpop.f32.mrf.mxu0
    %v7378 = vadd.f32 %v7209, %v7377
    %7379 = vmatmul.bf16.gmra.mxu0 %v6920
    %v7380 = vpop.f32.mrf.mxu0
    %v7381 = vadd.f32 %v7212, %v7380
    %v7382 = vpop.f32.mrf.mxu0
    %v7383 = vadd.f32 %v7214, %v7382
    %7384 = vmatmul.bf16.gmra.mxu0 %v6923
    %v7385 = vpop.f32.mrf.mxu0
    %v7386 = vadd.f32 %v7217, %v7385
    %v7387 = vpop.f32.mrf.mxu0
    %v7388 = vadd.f32 %v7219, %v7387
    %7389 = vmatmul.bf16.gmra.mxu0 %v6926
    %v7390 = vpop.f32.mrf.mxu0
    %v7391 = vadd.f32 %v7222, %v7390
    %v7392 = vpop.f32.mrf.mxu0
    %v7393 = vadd.f32 %v7224, %v7392
    %7394 = vmatmul.bf16.gmra.mxu0 %v6929
    %v7395 = vpop.f32.mrf.mxu0
    %v7396 = vadd.f32 %v7227, %v7395
    %v7397 = vpop.f32.mrf.mxu0
    %v7398 = vadd.f32 %v7229, %v7397
    %7399 = vmatmul.bf16.gmra.mxu0 %v6931
    %v7400 = vpop.f32.mrf.mxu0
    %v7401 = vadd.f32 %v7232, %v7400
    %v7402 = vpop.f32.mrf.mxu0
    %v7403 = vadd.f32 %v7234, %v7402
    %7404 = vmatmul.bf16.gmra.mxu0 %v6934
    %v7405 = vpop.f32.mrf.mxu0
    %v7406 = vadd.f32 %v7237, %v7405
    %v7407 = vpop.f32.mrf.mxu0
    %v7408 = vadd.f32 %v7239, %v7407
    %7409 = vmatmul.bf16.gmra.mxu0 %v6937
    %v7410 = vpop.f32.mrf.mxu0
    %v7411 = vadd.f32 %v7242, %v7410
    %v7412 = vpop.f32.mrf.mxu0
    %v7413 = vadd.f32 %v7244, %v7412
    %7414 = vmatmul.bf16.gmra.mxu0 %v6940
    %v7415 = vpop.f32.mrf.mxu0
    %v7416 = vadd.f32 %v7247, %v7415
    %v7417 = vpop.f32.mrf.mxu0
    %v7418 = vadd.f32 %v7249, %v7417
    %7419 = vmatmul.bf16.gmra.mxu0 %v6943
    %v7420 = vpop.f32.mrf.mxu0
    %v7421 = vadd.f32 %v7252, %v7420
    %v7422 = vpop.f32.mrf.mxu0
    %v7423 = vadd.f32 %v7254, %v7422
    %7424 = vmatmul.bf16.gmra.mxu0 %v6946
    %v7425 = vpop.f32.mrf.mxu0
    %v7426 = vadd.f32 %v7257, %v7425
    %v7427 = vpop.f32.mrf.mxu0
    %v7428 = vadd.f32 %v7259, %v7427
    %7429 = vmatmul.bf16.gmra.mxu0 %v6949
    %v7430 = vpop.f32.mrf.mxu0
    %v7431 = vadd.f32 %v7262, %v7430
    %v7432 = vpop.f32.mrf.mxu0
    %v7433 = vadd.f32 %v7264, %v7432
    %7434 = vmatmul.bf16.gmra.mxu0 %v6952
    %v7435 = vpop.f32.mrf.mxu0
    %v7436 = vadd.f32 %v7267, %v7435
    %v7437 = vpop.f32.mrf.mxu0
    %v7438 = vadd.f32 %v7269, %v7437
    %7439 = vmatmul.bf16.gmra.mxu0 %v6955
    %v7440 = vpop.f32.mrf.mxu0
    %v7441 = vadd.f32 %v7272, %v7440
    %v7442 = vpop.f32.mrf.mxu0
    %v7443 = vadd.f32 %v7274, %v7442
    %7444 = vmatmul.bf16.gmra.mxu0 %v6958
    %v7445 = vpop.f32.mrf.mxu0
    %v7446 = vadd.f32 %v7277, %v7445
    %v7447 = vpop.f32.mrf.mxu0
    %v7448 = vadd.f32 %v7279, %v7447
    %7449 = vmatmul.bf16.gmra.mxu0 %v6961
    %v7450 = vpop.f32.mrf.mxu0
    %v7451 = vadd.f32 %v7282, %v7450
    %v7452 = vpop.f32.mrf.mxu0
    %v7453 = vadd.f32 %v7284, %v7452
    %7454 = vmatmul.bf16.gmra.mxu0 %v6964
    %v7455 = vpop.f32.mrf.mxu0
    %v7456 = vadd.f32 %v7287, %v7455
    %v7457 = vpop.f32.mrf.mxu0
    %v7458 = vadd.f32 %v7289, %v7457
    %7459 = vmatmul.bf16.gmra.mxu0 %v6967
    %v7460 = vpop.f32.mrf.mxu0
    %v7461 = vadd.f32 %v7292, %v7460
    %v7462 = vpop.f32.mrf.mxu0
    %v7463 = vadd.f32 %v7294, %v7462
    %7464 = vmatmul.bf16.gmra.mxu0 %v6970
    %v7465 = vpop.f32.mrf.mxu0
    %v7466 = vadd.f32 %v7297, %v7465
    %v7467 = vpop.f32.mrf.mxu0
    %v7468 = vadd.f32 %v7299, %v7467
    %7469 = vmatmul.bf16.gmra.mxu0 %v6973
    %v7470 = vpop.f32.mrf.mxu0
    %v7471 = vadd.f32 %v7302, %v7470
    %v7472 = vpop.f32.mrf.mxu0
    %v7473 = vadd.f32 %v7304, %v7472
    %7474 = vmatmul.bf16.gmra.mxu0 %v6976
    %v7475 = vpop.f32.mrf.mxu0
    %v7476 = vadd.f32 %v7307, %v7475
    %v7477 = vpop.f32.mrf.mxu0
    %v7478 = vadd.f32 %v7309, %v7477
    %7479 = vmatmul.bf16.gmra.mxu0 %v6931
    %v7480 = vpop.f32.mrf.mxu0
    %v7481 = vadd.f32 %v7312, %v7480
    %v7482 = vpop.f32.mrf.mxu0
    %v7483 = vadd.f32 %v7314, %v7482
    %7484 = vdwg.mxu0
    %v7485 = vperm.slane %v25, 4
    %v7486 = vmul.f32 %v7326, %v7485
    %v7487 = vmul.f32 %v7328, %v7485
    %v7488 = vmul.f32 %v7331, %v7485
    %v7489 = vmul.f32 %v7333, %v7485
    %v7490 = vmul.f32 %v7336, %v7485
    %v7491 = vmul.f32 %v7338, %v7485
    %v7492 = vmul.f32 %v7341, %v7485
    %v7493 = vmul.f32 %v7343, %v7485
    %v7494 = vmul.f32 %v7346, %v7485
    %v7495 = vmul.f32 %v7348, %v7485
    %v7496 = vmul.f32 %v7351, %v7485
    %v7497 = vmul.f32 %v7353, %v7485
    %v7498 = vmul.f32 %v7356, %v7485
    %v7499 = vmul.f32 %v7358, %v7485
    %v7500 = vmul.f32 %v7361, %v7485
    %v7501 = vmul.f32 %v7363, %v7485
    %v7502 = vmul.f32 %v7366, %v7485
    %v7503 = vmul.f32 %v7368, %v7485
    %v7504 = vmul.f32 %v7371, %v7485
    %v7505 = vmul.f32 %v7373, %v7485
    %v7506 = vmul.f32 %v7376, %v7485
    %v7507 = vmul.f32 %v7378, %v7485
    %v7508 = vmul.f32 %v7381, %v7485
    %v7509 = vmul.f32 %v7383, %v7485
    %v7510 = vmul.f32 %v7386, %v7485
    %v7511 = vmul.f32 %v7388, %v7485
    %v7512 = vmul.f32 %v7391, %v7485
    %v7513 = vmul.f32 %v7393, %v7485
    %v7514 = vmul.f32 %v7396, %v7485
    %v7515 = vmul.f32 %v7398, %v7485
    %v7516 = vmul.f32 %v7401, %v7485
    %v7517 = vmul.f32 %v7403, %v7485
    %v7518 = vmul.f32 %v7406, %v7485
    %v7519 = vmul.f32 %v7408, %v7485
    %v7520 = vmul.f32 %v7411, %v7485
    %v7521 = vmul.f32 %v7413, %v7485
    %v7522 = vmul.f32 %v7416, %v7485
    %v7523 = vmul.f32 %v7418, %v7485
    %v7524 = vmul.f32 %v7421, %v7485
    %v7525 = vmul.f32 %v7423, %v7485
    %v7526 = vmul.f32 %v7426, %v7485
    %v7527 = vmul.f32 %v7428, %v7485
    %v7528 = vmul.f32 %v7431, %v7485
    %v7529 = vmul.f32 %v7433, %v7485
    %v7530 = vmul.f32 %v7436, %v7485
    %v7531 = vmul.f32 %v7438, %v7485
    %v7532 = vmul.f32 %v7441, %v7485
    %v7533 = vmul.f32 %v7443, %v7485
    %v7534 = vmul.f32 %v7446, %v7485
    %v7535 = vmul.f32 %v7448, %v7485
    %v7536 = vmul.f32 %v7451, %v7485
    %v7537 = vmul.f32 %v7453, %v7485
    %v7538 = vmul.f32 %v7456, %v7485
    %v7539 = vmul.f32 %v7458, %v7485
    %v7540 = vmul.f32 %v7461, %v7485
    %v7541 = vmul.f32 %v7463, %v7485
    %v7542 = vmul.f32 %v7466, %v7485
    %v7543 = vmul.f32 %v7468, %v7485
    %v7544 = vmul.f32 %v7471, %v7485
    %v7545 = vmul.f32 %v7473, %v7485
    %v7546 = vmul.f32 %v7476, %v7485
    %v7547 = vmul.f32 %v7478, %v7485
    %v7548 = vmul.f32 %v7481, %v7485
    %v7549 = vmul.f32 %v7483, %v7485
    %v7550 = vperm.slane %v25, 5
    %v7551 = vadd.f32 %v7486, %v7550
    %v7552 = vadd.f32 %v7487, %v7550
    %v7553 = vadd.f32 %v7488, %v7550
    %v7554 = vadd.f32 %v7489, %v7550
    %v7555 = vadd.f32 %v7490, %v7550
    %v7556 = vadd.f32 %v7491, %v7550
    %v7557 = vadd.f32 %v7492, %v7550
    %v7558 = vadd.f32 %v7493, %v7550
    %v7559 = vadd.f32 %v7494, %v7550
    %v7560 = vadd.f32 %v7495, %v7550
    %v7561 = vadd.f32 %v7496, %v7550
    %v7562 = vadd.f32 %v7497, %v7550
    %v7563 = vadd.f32 %v7498, %v7550
    %v7564 = vadd.f32 %v7499, %v7550
    %v7565 = vadd.f32 %v7500, %v7550
    %v7566 = vadd.f32 %v7501, %v7550
    %v7567 = vadd.f32 %v7502, %v7550
    %v7568 = vadd.f32 %v7503, %v7550
    %v7569 = vadd.f32 %v7504, %v7550
    %v7570 = vadd.f32 %v7505, %v7550
    %v7571 = vadd.f32 %v7506, %v7550
    %v7572 = vadd.f32 %v7507, %v7550
    %v7573 = vadd.f32 %v7508, %v7550
    %v7574 = vadd.f32 %v7509, %v7550
    %v7575 = vadd.f32 %v7510, %v7550
    %v7576 = vadd.f32 %v7511, %v7550
    %v7577 = vadd.f32 %v7512, %v7550
    %v7578 = vadd.f32 %v7513, %v7550
    %v7579 = vadd.f32 %v7514, %v7550
    %v7580 = vadd.f32 %v7515, %v7550
    %v7581 = vadd.f32 %v7516, %v7550
    %v7582 = vadd.f32 %v7517, %v7550
    %v7583 = vadd.f32 %v7518, %v7550
    %v7584 = vadd.f32 %v7519, %v7550
    %v7585 = vadd.f32 %v7520, %v7550
    %v7586 = vadd.f32 %v7521, %v7550
    %v7587 = vadd.f32 %v7522, %v7550
    %v7588 = vadd.f32 %v7523, %v7550
    %v7589 = vadd.f32 %v7524, %v7550
    %v7590 = vadd.f32 %v7525, %v7550
    %v7591 = vadd.f32 %v7526, %v7550
    %v7592 = vadd.f32 %v7527, %v7550
    %v7593 = vadd.f32 %v7528, %v7550
    %v7594 = vadd.f32 %v7529, %v7550
    %v7595 = vadd.f32 %v7530, %v7550
    %v7596 = vadd.f32 %v7531, %v7550
    %v7597 = vadd.f32 %v7532, %v7550
    %v7598 = vadd.f32 %v7533, %v7550
    %v7599 = vadd.f32 %v7534, %v7550
    %v7600 = vadd.f32 %v7535, %v7550
    %v7601 = vadd.f32 %v7536, %v7550
    %v7602 = vadd.f32 %v7537, %v7550
    %v7603 = vadd.f32 %v7538, %v7550
    %v7604 = vadd.f32 %v7539, %v7550
    %v7605 = vadd.f32 %v7540, %v7550
    %v7606 = vadd.f32 %v7541, %v7550
    %v7607 = vadd.f32 %v7542, %v7550
    %v7608 = vadd.f32 %v7543, %v7550
    %v7609 = vadd.f32 %v7544, %v7550
    %v7610 = vadd.f32 %v7545, %v7550
    %v7611 = vadd.f32 %v7546, %v7550
    %v7612 = vadd.f32 %v7547, %v7550
    %v7613 = vadd.f32 %v7548, %v7550
    %v7614 = vadd.f32 %v7549, %v7550
    %v7615 = vmax.f32 %v7551, 0.0
    %v7616 = vmax.f32 %v7552, 0.0
    %v7617 = vmax.f32 %v7553, 0.0
    %v7618 = vmax.f32 %v7554, 0.0
    %v7619 = vmax.f32 %v7555, 0.0
    %v7620 = vmax.f32 %v7556, 0.0
    %v7621 = vmax.f32 %v7557, 0.0
    %v7622 = vmax.f32 %v7558, 0.0
    %v7623 = vmax.f32 %v7559, 0.0
    %v7624 = vmax.f32 %v7560, 0.0
    %v7625 = vmax.f32 %v7561, 0.0
    %v7626 = vmax.f32 %v7562, 0.0
    %v7627 = vmax.f32 %v7563, 0.0
    %v7628 = vmax.f32 %v7564, 0.0
    %v7629 = vmax.f32 %v7565, 0.0
    %v7630 = vmax.f32 %v7566, 0.0
    %v7631 = vmax.f32 %v7567, 0.0
    %v7632 = vmax.f32 %v7568, 0.0
    %v7633 = vmax.f32 %v7569, 0.0
    %v7634 = vmax.f32 %v7570, 0.0
    %v7635 = vmax.f32 %v7571, 0.0
    %v7636 = vmax.f32 %v7572, 0.0
    %v7637 = vmax.f32 %v7573, 0.0
    %v7638 = vmax.f32 %v7574, 0.0
    %v7639 = vmax.f32 %v7575, 0.0
    %v7640 = vmax.f32 %v7576, 0.0
    %v7641 = vmax.f32 %v7577, 0.0
    %v7642 = vmax.f32 %v7578, 0.0
    %v7643 = vmax.f32 %v7579, 0.0
    %v7644 = vmax.f32 %v7580, 0.0
    %v7645 = vmax.f32 %v7581, 0.0
    %v7646 = vmax.f32 %v7582, 0.0
    %v7647 = vmax.f32 %v7583, 0.0
    %v7648 = vmax.f32 %v7584, 0.0
    %v7649 = vmax.f32 %v7585, 0.0
    %v7650 = vmax.f32 %v7586, 0.0
    %v7651 = vmax.f32 %v7587, 0.0
    %v7652 = vmax.f32 %v7588, 0.0
    %v7653 = vmax.f32 %v7589, 0.0
    %v7654 = vmax.f32 %v7590, 0.0
    %v7655 = vmax.f32 %v7591, 0.0
    %v7656 = vmax.f32 %v7592, 0.0
    %v7657 = vmax.f32 %v7593, 0.0
    %v7658 = vmax.f32 %v7594, 0.0
    %v7659 = vmax.f32 %v7595, 0.0
    %v7660 = vmax.f32 %v7596, 0.0
    %v7661 = vmax.f32 %v7597, 0.0
    %v7662 = vmax.f32 %v7598, 0.0
    %v7663 = vmax.f32 %v7599, 0.0
    %v7664 = vmax.f32 %v7600, 0.0
    %v7665 = vmax.f32 %v7601, 0.0
    %v7666 = vmax.f32 %v7602, 0.0
    %v7667 = vmax.f32 %v7603, 0.0
    %v7668 = vmax.f32 %v7604, 0.0
    %v7669 = vmax.f32 %v7605, 0.0
    %v7670 = vmax.f32 %v7606, 0.0
    %v7671 = vmax.f32 %v7607, 0.0
    %v7672 = vmax.f32 %v7608, 0.0
    %v7673 = vmax.f32 %v7609, 0.0
    %v7674 = vmax.f32 %v7610, 0.0
    %v7675 = vmax.f32 %v7611, 0.0
    %v7676 = vmax.f32 %v7612, 0.0
    %v7677 = vmax.f32 %v7613, 0.0
    %v7678 = vmax.f32 %v7614, 0.0
    %7679 = vst.msk [vmem:[#allocation2] sm:$0xff] %vm555, %v7615
    %7680 = vst.msk [vmem:[#allocation2 + $0x8] sm:$0xff] %vm555, %v7616
    %7681 = vst.msk [vmem:[#allocation2 + $0x10] sm:$0xff] %vm555, %v7617
    %7682 = vst.msk [vmem:[#allocation2 + $0x18] sm:$0xff] %vm555, %v7618
    %7683 = vst.msk [vmem:[#allocation2 + $0x20] sm:$0xff] %vm555, %v7619
    %7684 = vst.msk [vmem:[#allocation2 + $0x28] sm:$0xff] %vm555, %v7620
    %7685 = vst.msk [vmem:[#allocation2 + $0x30] sm:$0xff] %vm555, %v7621
    %7686 = vst.msk [vmem:[#allocation2 + $0x38] sm:$0xff] %vm555, %v7622
    %7687 = vst.msk [vmem:[#allocation2 + $0x40] sm:$0xff] %vm555, %v7623
    %7688 = vst.msk [vmem:[#allocation2 + $0x48] sm:$0xff] %vm555, %v7624
    %7689 = vst.msk [vmem:[#allocation2 + $0x50] sm:$0xff] %vm555, %v7625
    %7690 = vst.msk [vmem:[#allocation2 + $0x58] sm:$0xff] %vm555, %v7626
    %7691 = vst.msk [vmem:[#allocation2 + $0x60] sm:$0xff] %vm555, %v7627
    %7692 = vst.msk [vmem:[#allocation2 + $0x68] sm:$0xff] %vm555, %v7628
    %7693 = vst.msk [vmem:[#allocation2 + $0x70] sm:$0xff] %vm555, %v7629
    %7694 = vst.msk [vmem:[#allocation2 + $0x78] sm:$0xff] %vm555, %v7630
    %7695 = vst.msk [vmem:[#allocation2 + $0x80] sm:$0xff] %vm555, %v7631
    %7696 = vst.msk [vmem:[#allocation2 + $0x88] sm:$0xff] %vm555, %v7632
    %7697 = vst.msk [vmem:[#allocation2 + $0x90] sm:$0xff] %vm555, %v7633
    %7698 = vst.msk [vmem:[#allocation2 + $0x98] sm:$0xff] %vm555, %v7634
    %7699 = vst.msk [vmem:[#allocation2 + $0xa0] sm:$0xff] %vm555, %v7635
    %7700 = vst.msk [vmem:[#allocation2 + $0xa8] sm:$0xff] %vm555, %v7636
    %7701 = vst.msk [vmem:[#allocation2 + $0xb0] sm:$0xff] %vm555, %v7637
    %7702 = vst.msk [vmem:[#allocation2 + $0xb8] sm:$0xff] %vm555, %v7638
    %7703 = vst.msk [vmem:[#allocation2 + $0xc0] sm:$0xff] %vm555, %v7639
    %7704 = vst.msk [vmem:[#allocation2 + $0xc8] sm:$0xff] %vm555, %v7640
    %7705 = vst.msk [vmem:[#allocation2 + $0xd0] sm:$0xff] %vm555, %v7641
    %7706 = vst.msk [vmem:[#allocation2 + $0xd8] sm:$0xff] %vm555, %v7642
    %7707 = vst.msk [vmem:[#allocation2 + $0xe0] sm:$0xff] %vm555, %v7643
    %7708 = vst.msk [vmem:[#allocation2 + $0xe8] sm:$0xff] %vm555, %v7644
    %7709 = vst.msk [vmem:[#allocation2 + $0xf0] sm:$0xff] %vm555, %v7645
    %7710 = vst.msk [vmem:[#allocation2 + $0xf8] sm:$0xff] %vm555, %v7646
    %7711 = vst.msk [vmem:[#allocation2 + $0x100] sm:$0xff] %vm555, %v7647
    %7712 = vst.msk [vmem:[#allocation2 + $0x108] sm:$0xff] %vm555, %v7648
    %7713 = vst.msk [vmem:[#allocation2 + $0x110] sm:$0xff] %vm555, %v7649
    %7714 = vst.msk [vmem:[#allocation2 + $0x118] sm:$0xff] %vm555, %v7650
    %7715 = vst.msk [vmem:[#allocation2 + $0x120] sm:$0xff] %vm555, %v7651
    %7716 = vst.msk [vmem:[#allocation2 + $0x128] sm:$0xff] %vm555, %v7652
    %7717 = vst.msk [vmem:[#allocation2 + $0x130] sm:$0xff] %vm555, %v7653
    %7718 = vst.msk [vmem:[#allocation2 + $0x138] sm:$0xff] %vm555, %v7654
    %7719 = vst.msk [vmem:[#allocation2 + $0x140] sm:$0xff] %vm555, %v7655
    %7720 = vst.msk [vmem:[#allocation2 + $0x148] sm:$0xff] %vm555, %v7656
    %7721 = vst.msk [vmem:[#allocation2 + $0x150] sm:$0xff] %vm555, %v7657
    %7722 = vst.msk [vmem:[#allocation2 + $0x158] sm:$0xff] %vm555, %v7658
    %7723 = vst.msk [vmem:[#allocation2 + $0x160] sm:$0xff] %vm555, %v7659
    %7724 = vst.msk [vmem:[#allocation2 + $0x168] sm:$0xff] %vm555, %v7660
    %7725 = vst.msk [vmem:[#allocation2 + $0x170] sm:$0xff] %vm555, %v7661
    %7726 = vst.msk [vmem:[#allocation2 + $0x178] sm:$0xff] %vm555, %v7662
    %7727 = vst.msk [vmem:[#allocation2 + $0x180] sm:$0xff] %vm555, %v7663
    %7728 = vst.msk [vmem:[#allocation2 + $0x188] sm:$0xff] %vm555, %v7664
    %7729 = vst.msk [vmem:[#allocation2 + $0x190] sm:$0xff] %vm555, %v7665
    %7730 = vst.msk [vmem:[#allocation2 + $0x198] sm:$0xff] %vm555, %v7666
    %7731 = vst.msk [vmem:[#allocation2 + $0x1a0] sm:$0xff] %vm555, %v7667
    %7732 = vst.msk [vmem:[#allocation2 + $0x1a8] sm:$0xff] %vm555, %v7668
    %7733 = vst.msk [vmem:[#allocation2 + $0x1b0] sm:$0xff] %vm555, %v7669
    %7734 = vst.msk [vmem:[#allocation2 + $0x1b8] sm:$0xff] %vm555, %v7670
    %7735 = vst.msk [vmem:[#allocation2 + $0x1c0] sm:$0xff] %vm555, %v7671
    %7736 = vst.msk [vmem:[#allocation2 + $0x1c8] sm:$0xff] %vm555, %v7672
    %7737 = vst.msk [vmem:[#allocation2 + $0x1d0] sm:$0xff] %vm555, %v7673
    %7738 = vst.msk [vmem:[#allocation2 + $0x1d8] sm:$0xff] %vm555, %v7674
    %7739 = vst.msk [vmem:[#allocation2 + $0x1e0] sm:$0xff] %vm555, %v7675
    %7740 = vst.msk [vmem:[#allocation2 + $0x1e8] sm:$0xff] %vm555, %v7676
    %7741 = vst.msk [vmem:[#allocation2 + $0x1f0] sm:$0xff] %vm555, %v7677
    %7742 = vst.msk [vmem:[#allocation2 + $0x1f8] sm:$0xff] %vm555, %v7678
    // Predicated region
    $region26: #{base_forward.1} parent=1 // pred_check
      _
    $region27: #{base_forward.1} parent=1 // pred_check_branch
      %7744 = sbr.rel (0) target = $region29
    $region28: #{base_forward.1} parent=1 // pred_region
      %7746 = vsyncadd [#allocation3], 0
      %s7747 = sshll.u32 [#allocation2], 4
      %s7748 = int_to_ptr.vmem [resolvable:$true] %s7747
      %s7749 = sshll.u32 %s6, 4
      %s7750 = int_to_ptr.hbm [resolvable:$true] %s7749
      %7755 = dma.vmem_to_hbm [thread:$0]  %s7748, 8192, %s7750, [#allocation3], 128, 128, 8
    $region29: #{base_forward.1} parent=1 // pred_fallthru
      _
    // Predicated region
    $region30: #{base_forward.1} parent=1 // pred_check
      _
    $region31: #{base_forward.1} parent=1 // pred_check_branch
      %7757 = sbr.rel (0) target = $region33
    $region32: #{base_forward.1} parent=1 // pred_region
      %7759 = dma.done [#allocation3], 8192
    $region33: #{base_forward.1} parent=1 // pred_fallthru
      _
    %7760 = vsyncpa [#allocation3], 1

</llo_original>
